<compile_context>
chip_gen: v7x
topology: tpu7x:2x2x1
jax: 0.10.0
libtpu: 0.0.40
codegen_flags: <defaults>
</compile_context>

<pallas_src>
import functools

import jax
import jax.numpy as jnp
import numpy as np
from jax import lax
from jax.experimental import pallas as pl
from jax.experimental.pallas import tpu as pltpu


def _softmax_lastdim(x):
    m = jnp.max(x, axis=-1, keepdims=True)
    e = jnp.exp(x - m)
    return e * (1.0 / jnp.sum(e, axis=-1, keepdims=True))


def _masa_kernel(temp_ref, x_ref, wqkv_ref, wdw_ref, o_ref, *,
                 num_heads, height, width):
    H, W = height, width
    HW = H * W
    C = x_ref.shape[1]
    C4 = wqkv_ref.shape[0]
    d = C // num_heads
    ph, pw = H // 8, W // 8

    # ---- 1x1 conv straight into NCHW-flat layout: (4C, C) @ (C, HW) -> (4C, HW)
    x2d = x_ref[0].astype(jnp.bfloat16)                        # (C, HW)
    w1 = wqkv_ref[...].astype(jnp.bfloat16)                    # (4C, C)
    y = lax.dot_general(w1, x2d, (((1,), (0,)), ((), ())),
                        preferred_element_type=jnp.float32)    # (4C, HW) f32

    # ---- index helpers, built once and shared by conv masks and pooling -----
    # (float floor-div only; no vector integer div/mod needed)
    s_i = lax.broadcasted_iota(jnp.int32, (1, HW), 1)          # flat pixel index
    sf = s_i.astype(jnp.float32)
    rowf = jnp.floor(sf / W)                                   # exact row index
    colf = sf - rowf * W                                       # exact col index
    row_ge1 = s_i >= W                                         # i >= 1
    row_leh = s_i < (HW - W)                                   # i <= H-2
    col_ge1 = colf >= 0.5                                      # j >= 1
    col_lew = colf <= (W - 1.5)                                # j <= W-2

    def _edge_mask(ddy, ddx):
        m = None
        if ddy == -1:
            m = row_ge1
        elif ddy == 1:
            m = row_leh
        if ddx == -1:
            m = col_ge1 if m is None else jnp.logical_and(m, col_ge1)
        elif ddx == 1:
            m = col_lew if m is None else jnp.logical_and(m, col_lew)
        return m

    # ---- depthwise 3x3 conv (padding=1): lane rolls + edge masks, no scratch.
    taps = wdw_ref[...]                                        # (4C, 9), once
    z = y * taps[:, 4:5]                                       # centre tap
    for ddy in (-1, 0, 1):
        for ddx in (-1, 0, 1):
            if ddy == 0 and ddx == 0:
                continue
            tap_idx = (ddy + 1) * 3 + (ddx + 1)
            off = ddy * W + ddx                                # want y[:, s + off]
            shifted = pltpu.roll(y, (-off) % HW, axis=1)       # XLU lane rotate
            contrib = jnp.where(_edge_mask(ddy, ddx), shifted, 0.0)
            z = z + contrib * taps[:, tap_idx:tap_idx + 1]

    # ---- agent = AdaptiveAvgPool2d((8,8)) of the 'a' chunk: one MXU matmul
    #      against an iota-generated 0/1 cell-indicator (no HBM constant).
    cellf = jnp.floor(rowf / ph) * 8.0 + jnp.floor(colf / pw)  # (1, HW)
    pidxf = lax.broadcasted_iota(jnp.int32, (64, 1), 0).astype(jnp.float32)
    pmat = (cellf == pidxf).astype(jnp.bfloat16)               # (64, HW), exact 0/1
    a_b = z[3 * C:4 * C, :].astype(jnp.bfloat16)               # (C, HW)
    agent_t = lax.dot_general(a_b, pmat, (((1,), (1,)), ((), ())),
                              preferred_element_type=jnp.float32) * (1.0 / (ph * pw))
    # agent_t: (C, 64) = pooled agent tokens, channels-major

    # ---- per-head agent attention; everything stays (channels, spatial) -----
    q_all = z[0:C, :]
    k_all = z[C:2 * C, :]
    v_all_b = z[2 * C:3 * C, :].astype(jnp.bfloat16)
    qsq = q_all * q_all                                        # hoisted out of head loop
    ksq = k_all * k_all
    eps = 1e-12                                                # F.normalize default

    outs = []
    # TODO(synk): switch to lax.fori_loop for large num_heads.
    for hi in range(num_heads):
        lo, up = hi * d, (hi + 1) * d
        temp = temp_ref[hi]

        q_inv = 1.0 / jnp.maximum(
            jnp.sqrt(jnp.sum(qsq[lo:up, :], axis=0, keepdims=True)), eps)
        k_inv = 1.0 / jnp.maximum(
            jnp.sqrt(jnp.sum(ksq[lo:up, :], axis=0, keepdims=True)), eps)
        qn_b = (q_all[lo:up, :] * q_inv).astype(jnp.bfloat16)   # (d, HW)
        kn_b = (k_all[lo:up, :] * k_inv).astype(jnp.bfloat16)   # (d, HW)
        ag_b = agent_t[lo:up, :].astype(jnp.bfloat16)           # (d, 64)
        v_b = v_all_b[lo:up, :]                                 # (d, HW)

        # q_attn = softmax(qn @ agent^T * T)               -> (HW, 64)
        sq = lax.dot_general(qn_b, ag_b, (((0,), (0,)), ((), ())),
                             preferred_element_type=jnp.float32) * temp
        sq = _softmax_lastdim(sq)
        # k_attn = softmax(agent @ kn^T * T)               -> (64, HW)
        sk = lax.dot_general(ag_b, kn_b, (((0,), (0,)), ((), ())),
                             preferred_element_type=jnp.float32) * temp
        sk = _softmax_lastdim(sk)

        sq_b = sq.astype(jnp.bfloat16)
        sk_b = sk.astype(jnp.bfloat16)
        # agent_v^T = v^T @ k_attn^T                        -> (d, 64)
        agent_v_t = lax.dot_general(v_b, sk_b, (((1,), (1,)), ((), ())),
                                    preferred_element_type=jnp.float32)
        # out^T = agent_v^T @ q_attn^T                      -> (d, HW), NCHW-flat
        out_t = lax.dot_general(agent_v_t.astype(jnp.bfloat16), sq_b,
                                (((1,), (1,)), ((), ())),
                                preferred_element_type=jnp.float32)
        outs.append(out_t)

    out_full = outs[0] if num_heads == 1 else jnp.concatenate(outs, axis=0)  # (C, HW)

    # ---- fused SimAM (per channel over all HW pixels); sigmoid via tanh (EUP).
    inv_n = 1.0 / float(HW - 1)
    mu = jnp.mean(out_full, axis=1, keepdims=True)
    xms = (out_full - mu) ** 2
    denom = 4.0 * (jnp.sum(xms, axis=1, keepdims=True) * inv_n + 1e-4)
    yv = xms * (1.0 / denom) + 0.5
    o_ref[0] = out_full * (0.5 + 0.5 * jnp.tanh(0.5 * yv))


def masa_forward(x, w_qkv, w_dw, temperature, num_heads):
    """x: (b,c,h,w) f32 NCHW; w_qkv: (4c,c); w_dw: (4c,3,3); temperature: (heads,)."""
    b, c, h, w = x.shape
    assert c % num_heads == 0 and h % 8 == 0 and w % 8 == 0
    c4 = 4 * c
    hw = h * w

    x_flat = x.reshape(b, c, hw)             # free (contiguous)
    wdw_flat = w_dw.reshape(c4, 9)           # free (contiguous); col k = dy*3+dx

    kern = functools.partial(_masa_kernel, num_heads=num_heads, height=h, width=w)
    out = pl.pallas_call(
        kern,
        grid=(b,),
        in_specs=[
            pl.BlockSpec(memory_space=pltpu.MemorySpace.SMEM),  # temperature scalars
            pl.BlockSpec((1, c, hw), lambda bi: (bi, 0, 0)),    # x, NCHW-flat
            pl.BlockSpec((c4, c), lambda bi: (0, 0)),           # 1x1 conv weight (tiny)
            pl.BlockSpec((c4, 9), lambda bi: (0, 0)),           # depthwise taps (tiny)
        ],
        out_specs=pl.BlockSpec((1, c, hw), lambda bi: (bi, 0, 0)),
        out_shape=jax.ShapeDtypeStruct((b, c, hw), jnp.float32),
        compiler_params=pltpu.CompilerParams(
            dimension_semantics=("parallel",),
            vmem_limit_bytes=40 * 1024 * 1024),
    )(temperature, x_flat, w_qkv, wdw_flat)

    return out.reshape(b, c, h, w)           # free (contiguous)


# ---------------------------------------------------------------------------
# Pure-JAX f32 reference (sanity check only).
# ---------------------------------------------------------------------------
def masa_ref(x, w_qkv, w_dw, temperature, num_heads):
    b, c, h, w = x.shape
    d = c // num_heads
    y = jnp.einsum('bchw,oc->bohw', x, w_qkv)
    yp = jnp.pad(y, ((0, 0), (0, 0), (1, 1), (1, 1)))
    z = jnp.zeros_like(y)
    for dy in range(3):
        for dx in range(3):
            z = z + yp[:, :, dy:dy + h, dx:dx + w] * w_dw[None, :, dy, dx, None, None]
    q, k, v, a = jnp.split(z, 4, axis=1)
    agent = a.reshape(b, c, 8, h // 8, 8, w // 8).mean(axis=(3, 5))

    def rearr(t):
        B, C, H, W = t.shape
        return t.reshape(B, num_heads, d, H * W).transpose(0, 1, 3, 2)

    q, k, v, agent = rearr(q), rearr(k), rearr(v), rearr(agent)
    qn = q / jnp.maximum(jnp.sqrt(jnp.sum(q * q, -1, keepdims=True)), 1e-12)
    kn = k / jnp.maximum(jnp.sqrt(jnp.sum(k * k, -1, keepdims=True)), 1e-12)
    temp = temperature.reshape(1, num_heads, 1, 1)
    q_attn = jax.nn.softmax(jnp.einsum('bhqd,bhkd->bhqk', qn, agent) * temp, axis=-1)
    k_attn = jax.nn.softmax(jnp.einsum('bhkd,bhqd->bhkq', agent, kn) * temp, axis=-1)
    agent_v = jnp.einsum('bhkq,bhqd->bhkd', k_attn, v)
    out = jnp.einsum('bhqk,bhkd->bhqd', q_attn, agent_v)
    out = out.transpose(0, 1, 3, 2).reshape(b, c, h, w)
    n = h * w - 1
    mu = out.mean(axis=(2, 3), keepdims=True)
    xms = (out - mu) ** 2
    yv = xms / (4.0 * (xms.sum(axis=(2, 3), keepdims=True) / n + 1e-4)) + 0.5
    return out * jax.nn.sigmoid(yv)


if __name__ == "__main__":
    # Small shapes consistent with the module: b=2, channels=8, heads=2, 16x16.
    b, c, h, w = 2, 8, 16, 16
    num_heads = 2
    c4 = 4 * c

    key = jax.random.PRNGKey(0)
    k1, k2, k3 = jax.random.split(key, 3)
    x = jax.random.normal(k3, (b, c, h, w), jnp.float32)
    w_qkv = 0.2 * jax.random.normal(k1, (c4, c), jnp.float32)      # Conv2d(c,4c,1)
    w_dw = 0.2 * jax.random.normal(k2, (c4, 3, 3), jnp.float32)    # depthwise 3x3
    temperature = jnp.ones((num_heads,), jnp.float32)              # nn.Parameter ones

    out = jax.block_until_ready(masa_forward(x, w_qkv, w_dw, temperature, num_heads))

    ref = jax.block_until_ready(masa_ref(x, w_qkv, w_dw, temperature, num_heads))
    # bf16 MXU operands -> slightly looser tolerance than pure f32.
    np.testing.assert_allclose(np.asarray(out), np.asarray(ref), rtol=2e-2, atol=2e-2)

    print("KERNEL_OK")
</pallas_src>

<mosaic_0001>
module attributes {stable_mosaic.version = 11 : i64} {
  func.func @_masa_kernel(%arg0: i32, %arg1: memref<2xf32, #tpu.memory_space<smem>>, %arg2: memref<1x8x256xf32, #tpu.memory_space<vmem>>, %arg3: memref<32x8xf32, #tpu.memory_space<vmem>>, %arg4: memref<32x9xf32, #tpu.memory_space<vmem>>, %arg5: memref<1x8x256xf32, #tpu.memory_space<vmem>>) attributes {dimension_semantics = [#tpu.dimension_semantics<parallel>], iteration_bounds = array<i64: 2>, scalar_prefetch = 0 : i64, scratch_operands = 0 : i64, tpu.core_type = #tpu.core_type<tc>, window_params = [{transform_indices = @transform_0, window_bounds = array<i64: 2>}, {transform_indices = @transform_1, window_bounds = array<i64: 1, 8, 256>}, {pipeline_mode = #tpu.pipeline_mode<synchronous>, transform_indices = @transform_2, window_bounds = array<i64: 32, 8>}, {pipeline_mode = #tpu.pipeline_mode<synchronous>, transform_indices = @transform_3, window_bounds = array<i64: 32, 9>}, {transform_indices = @transform_4, window_bounds = array<i64: 1, 8, 256>}]} {
    %c0 = arith.constant 0 : index
    %c0_0 = arith.constant 0 : index
    %c0_1 = arith.constant 0 : index
    %0 = vector.load %arg2[%c0, %c0_0, %c0_1] : memref<1x8x256xf32, #tpu.memory_space<vmem>>, vector<1x8x256xf32>
    %1 = vector.shape_cast %0 : vector<1x8x256xf32> to vector<8x256xf32>
    %2 = arith.truncf %1 : vector<8x256xf32> to vector<8x256xbf16>
    %c0_2 = arith.constant 0 : index
    %c0_3 = arith.constant 0 : index
    %3 = vector.load %arg3[%c0_2, %c0_3] : memref<32x8xf32, #tpu.memory_space<vmem>>, vector<32x8xf32>
    %4 = arith.truncf %3 : vector<32x8xf32> to vector<32x8xbf16>
    %cst = arith.constant dense<0.000000e+00> : vector<32x256xf32>
    %5 = tpu.matmul %4, %2, %cst {dimension_numbers = #tpu.dot_dimension_numbers<[1], [0], [0], [1], [0, 0, 1, 1], [], []>} : vector<32x8xbf16>, vector<8x256xbf16>, vector<32x256xf32> -> vector<32x256xf32>
    %6 = tpu.iota {dimensions = array<i32: 1>} : vector<1x256xi32>
    %7 = arith.sitofp %6 : vector<1x256xi32> to vector<1x256xf32>
    %cst_4 = arith.constant 1.600000e+01 : f32
    %8 = vector.broadcast %cst_4 : f32 to vector<1x256xf32>
    %9 = arith.divf %7, %8 : vector<1x256xf32>
    %10 = math.floor %9 : vector<1x256xf32>
    %cst_5 = arith.constant 1.600000e+01 : f32
    %11 = vector.broadcast %cst_5 : f32 to vector<1x256xf32>
    %12 = arith.mulf %10, %11 : vector<1x256xf32>
    %13 = arith.subf %7, %12 : vector<1x256xf32>
    %c16_i32 = arith.constant 16 : i32
    %14 = vector.broadcast %c16_i32 : i32 to vector<1x256xi32>
    %15 = arith.cmpi sge, %6, %14 : vector<1x256xi32>
    %c240_i32 = arith.constant 240 : i32
    %16 = vector.broadcast %c240_i32 : i32 to vector<1x256xi32>
    %17 = arith.cmpi slt, %6, %16 : vector<1x256xi32>
    %cst_6 = arith.constant 5.000000e-01 : f32
    %18 = vector.broadcast %cst_6 : f32 to vector<1x256xf32>
    %19 = arith.cmpf oge, %13, %18 : vector<1x256xf32>
    %cst_7 = arith.constant 1.450000e+01 : f32
    %20 = vector.broadcast %cst_7 : f32 to vector<1x256xf32>
    %21 = arith.cmpf ole, %13, %20 : vector<1x256xf32>
    %c0_8 = arith.constant 0 : index
    %c0_9 = arith.constant 0 : index
    %22 = vector.load %arg4[%c0_8, %c0_9] : memref<32x9xf32, #tpu.memory_space<vmem>>, vector<32x9xf32>
    %23 = vector.extract_strided_slice %22 {offsets = [0, 4], sizes = [32, 1], strides = [1, 1]} : vector<32x9xf32> to vector<32x1xf32>
    %24 = vector.broadcast %23 : vector<32x1xf32> to vector<32x256xf32>
    %25 = arith.mulf %5, %24 : vector<32x256xf32>
    %c17_i32 = arith.constant 17 : i32
    %26 = tpu.dynamic_rotate %5 by %c17_i32 dim 1 : vector<32x256xf32>, i32 -> vector<32x256xf32>
    %27 = arith.andi %15, %19 : vector<1x256xi1>
    %cst_10 = arith.constant 0.000000e+00 : f32
    %28 = vector.shape_cast %27 : vector<1x256xi1> to vector<1x256xi1>
    %29 = vector.broadcast %28 : vector<1x256xi1> to vector<32x256xi1>
    %30 = vector.broadcast %cst_10 : f32 to vector<32x256xf32>
    %31 = arith.select %29, %26, %30 : vector<32x256xi1>, vector<32x256xf32>
    %32 = vector.extract_strided_slice %22 {offsets = [0, 0], sizes = [32, 1], strides = [1, 1]} : vector<32x9xf32> to vector<32x1xf32>
    %33 = vector.broadcast %32 : vector<32x1xf32> to vector<32x256xf32>
    %34 = arith.mulf %31, %33 : vector<32x256xf32>
    %35 = arith.addf %25, %34 : vector<32x256xf32>
    %c16_i32_11 = arith.constant 16 : i32
    %36 = tpu.dynamic_rotate %5 by %c16_i32_11 dim 1 : vector<32x256xf32>, i32 -> vector<32x256xf32>
    %cst_12 = arith.constant 0.000000e+00 : f32
    %37 = vector.shape_cast %15 : vector<1x256xi1> to vector<1x256xi1>
    %38 = vector.broadcast %37 : vector<1x256xi1> to vector<32x256xi1>
    %39 = vector.broadcast %cst_12 : f32 to vector<32x256xf32>
    %40 = arith.select %38, %36, %39 : vector<32x256xi1>, vector<32x256xf32>
    %41 = vector.extract_strided_slice %22 {offsets = [0, 1], sizes = [32, 1], strides = [1, 1]} : vector<32x9xf32> to vector<32x1xf32>
    %42 = vector.broadcast %41 : vector<32x1xf32> to vector<32x256xf32>
    %43 = arith.mulf %40, %42 : vector<32x256xf32>
    %44 = arith.addf %35, %43 : vector<32x256xf32>
    %c15_i32 = arith.constant 15 : i32
    %45 = tpu.dynamic_rotate %5 by %c15_i32 dim 1 : vector<32x256xf32>, i32 -> vector<32x256xf32>
    %46 = arith.andi %15, %21 : vector<1x256xi1>
    %cst_13 = arith.constant 0.000000e+00 : f32
    %47 = vector.shape_cast %46 : vector<1x256xi1> to vector<1x256xi1>
    %48 = vector.broadcast %47 : vector<1x256xi1> to vector<32x256xi1>
    %49 = vector.broadcast %cst_13 : f32 to vector<32x256xf32>
    %50 = arith.select %48, %45, %49 : vector<32x256xi1>, vector<32x256xf32>
    %51 = vector.extract_strided_slice %22 {offsets = [0, 2], sizes = [32, 1], strides = [1, 1]} : vector<32x9xf32> to vector<32x1xf32>
    %52 = vector.broadcast %51 : vector<32x1xf32> to vector<32x256xf32>
    %53 = arith.mulf %50, %52 : vector<32x256xf32>
    %54 = arith.addf %44, %53 : vector<32x256xf32>
    %c1_i32 = arith.constant 1 : i32
    %55 = tpu.dynamic_rotate %5 by %c1_i32 dim 1 : vector<32x256xf32>, i32 -> vector<32x256xf32>
    %cst_14 = arith.constant 0.000000e+00 : f32
    %56 = vector.shape_cast %19 : vector<1x256xi1> to vector<1x256xi1>
    %57 = vector.broadcast %56 : vector<1x256xi1> to vector<32x256xi1>
    %58 = vector.broadcast %cst_14 : f32 to vector<32x256xf32>
    %59 = arith.select %57, %55, %58 : vector<32x256xi1>, vector<32x256xf32>
    %60 = vector.extract_strided_slice %22 {offsets = [0, 3], sizes = [32, 1], strides = [1, 1]} : vector<32x9xf32> to vector<32x1xf32>
    %61 = vector.broadcast %60 : vector<32x1xf32> to vector<32x256xf32>
    %62 = arith.mulf %59, %61 : vector<32x256xf32>
    %63 = arith.addf %54, %62 : vector<32x256xf32>
    %c255_i32 = arith.constant 255 : i32
    %64 = tpu.dynamic_rotate %5 by %c255_i32 dim 1 : vector<32x256xf32>, i32 -> vector<32x256xf32>
    %cst_15 = arith.constant 0.000000e+00 : f32
    %65 = vector.shape_cast %21 : vector<1x256xi1> to vector<1x256xi1>
    %66 = vector.broadcast %65 : vector<1x256xi1> to vector<32x256xi1>
    %67 = vector.broadcast %cst_15 : f32 to vector<32x256xf32>
    %68 = arith.select %66, %64, %67 : vector<32x256xi1>, vector<32x256xf32>
    %69 = vector.extract_strided_slice %22 {offsets = [0, 5], sizes = [32, 1], strides = [1, 1]} : vector<32x9xf32> to vector<32x1xf32>
    %70 = vector.broadcast %69 : vector<32x1xf32> to vector<32x256xf32>
    %71 = arith.mulf %68, %70 : vector<32x256xf32>
    %72 = arith.addf %63, %71 : vector<32x256xf32>
    %c241_i32 = arith.constant 241 : i32
    %73 = tpu.dynamic_rotate %5 by %c241_i32 dim 1 : vector<32x256xf32>, i32 -> vector<32x256xf32>
    %74 = arith.andi %17, %19 : vector<1x256xi1>
    %cst_16 = arith.constant 0.000000e+00 : f32
    %75 = vector.shape_cast %74 : vector<1x256xi1> to vector<1x256xi1>
    %76 = vector.broadcast %75 : vector<1x256xi1> to vector<32x256xi1>
    %77 = vector.broadcast %cst_16 : f32 to vector<32x256xf32>
    %78 = arith.select %76, %73, %77 : vector<32x256xi1>, vector<32x256xf32>
    %79 = vector.extract_strided_slice %22 {offsets = [0, 6], sizes = [32, 1], strides = [1, 1]} : vector<32x9xf32> to vector<32x1xf32>
    %80 = vector.broadcast %79 : vector<32x1xf32> to vector<32x256xf32>
    %81 = arith.mulf %78, %80 : vector<32x256xf32>
    %82 = arith.addf %72, %81 : vector<32x256xf32>
    %c240_i32_17 = arith.constant 240 : i32
    %83 = tpu.dynamic_rotate %5 by %c240_i32_17 dim 1 : vector<32x256xf32>, i32 -> vector<32x256xf32>
    %cst_18 = arith.constant 0.000000e+00 : f32
    %84 = vector.shape_cast %17 : vector<1x256xi1> to vector<1x256xi1>
    %85 = vector.broadcast %84 : vector<1x256xi1> to vector<32x256xi1>
    %86 = vector.broadcast %cst_18 : f32 to vector<32x256xf32>
    %87 = arith.select %85, %83, %86 : vector<32x256xi1>, vector<32x256xf32>
    %88 = vector.extract_strided_slice %22 {offsets = [0, 7], sizes = [32, 1], strides = [1, 1]} : vector<32x9xf32> to vector<32x1xf32>
    %89 = vector.broadcast %88 : vector<32x1xf32> to vector<32x256xf32>
    %90 = arith.mulf %87, %89 : vector<32x256xf32>
    %91 = arith.addf %82, %90 : vector<32x256xf32>
    %c239_i32 = arith.constant 239 : i32
    %92 = tpu.dynamic_rotate %5 by %c239_i32 dim 1 : vector<32x256xf32>, i32 -> vector<32x256xf32>
    %93 = arith.andi %17, %21 : vector<1x256xi1>
    %cst_19 = arith.constant 0.000000e+00 : f32
    %94 = vector.shape_cast %93 : vector<1x256xi1> to vector<1x256xi1>
    %95 = vector.broadcast %94 : vector<1x256xi1> to vector<32x256xi1>
    %96 = vector.broadcast %cst_19 : f32 to vector<32x256xf32>
    %97 = arith.select %95, %92, %96 : vector<32x256xi1>, vector<32x256xf32>
    %98 = vector.extract_strided_slice %22 {offsets = [0, 8], sizes = [32, 1], strides = [1, 1]} : vector<32x9xf32> to vector<32x1xf32>
    %99 = vector.broadcast %98 : vector<32x1xf32> to vector<32x256xf32>
    %100 = arith.mulf %97, %99 : vector<32x256xf32>
    %101 = arith.addf %91, %100 : vector<32x256xf32>
    %cst_20 = arith.constant 2.000000e+00 : f32
    %102 = vector.broadcast %cst_20 : f32 to vector<1x256xf32>
    %103 = arith.divf %10, %102 : vector<1x256xf32>
    %104 = math.floor %103 : vector<1x256xf32>
    %cst_21 = arith.constant 8.000000e+00 : f32
    %105 = vector.broadcast %cst_21 : f32 to vector<1x256xf32>
    %106 = arith.mulf %104, %105 : vector<1x256xf32>
    %cst_22 = arith.constant 2.000000e+00 : f32
    %107 = vector.broadcast %cst_22 : f32 to vector<1x256xf32>
    %108 = arith.divf %13, %107 : vector<1x256xf32>
    %109 = math.floor %108 : vector<1x256xf32>
    %110 = arith.addf %106, %109 : vector<1x256xf32>
    %111 = tpu.iota {dimensions = array<i32: 0>} : vector<64x1xi32>
    %112 = arith.sitofp %111 : vector<64x1xi32> to vector<64x1xf32>
    %113 = vector.broadcast %110 : vector<1x256xf32> to vector<64x256xf32>
    %114 = vector.broadcast %112 : vector<64x1xf32> to vector<64x256xf32>
    %115 = arith.cmpf oeq, %113, %114 : vector<64x256xf32>
    %116 = arith.extui %115 : vector<64x256xi1> to vector<64x256xi32>
    %117 = arith.sitofp %116 : vector<64x256xi32> to vector<64x256xf32>
    %118 = arith.truncf %117 : vector<64x256xf32> to vector<64x256xbf16>
    %119 = vector.extract_strided_slice %101 {offsets = [24, 0], sizes = [8, 256], strides = [1, 1]} : vector<32x256xf32> to vector<8x256xf32>
    %120 = arith.truncf %119 : vector<8x256xf32> to vector<8x256xbf16>
    %cst_23 = arith.constant dense<0.000000e+00> : vector<8x64xf32>
    %121 = tpu.matmul %120, %118, %cst_23 {dimension_numbers = #tpu.dot_dimension_numbers<[1], [1], [0], [0], [0, 0, 1, 0], [], []>} : vector<8x256xbf16>, vector<64x256xbf16>, vector<8x64xf32> -> vector<8x64xf32>
    %cst_24 = arith.constant 2.500000e-01 : f32
    %122 = vector.broadcast %cst_24 : f32 to vector<8x64xf32>
    %123 = arith.mulf %121, %122 : vector<8x64xf32>
    %124 = vector.extract_strided_slice %101 {offsets = [0, 0], sizes = [8, 256], strides = [1, 1]} : vector<32x256xf32> to vector<8x256xf32>
    %125 = vector.extract_strided_slice %101 {offsets = [8, 0], sizes = [8, 256], strides = [1, 1]} : vector<32x256xf32> to vector<8x256xf32>
    %126 = vector.extract_strided_slice %101 {offsets = [16, 0], sizes = [8, 256], strides = [1, 1]} : vector<32x256xf32> to vector<8x256xf32>
    %127 = arith.truncf %126 : vector<8x256xf32> to vector<8x256xbf16>
    %128 = arith.mulf %124, %124 : vector<8x256xf32>
    %129 = arith.mulf %125, %125 : vector<8x256xf32>
    %c0_25 = arith.constant 0 : index
    %130 = memref.load %arg1[%c0_25] : memref<2xf32, #tpu.memory_space<smem>>
    %131 = vector.extract_strided_slice %128 {offsets = [0, 0], sizes = [4, 256], strides = [1, 1]} : vector<8x256xf32> to vector<4x256xf32>
    %cst_26 = arith.constant dense<0.000000e+00> : vector<256xf32>
    %132 = vector.multi_reduction <add>, %131, %cst_26 [0] : vector<4x256xf32> to vector<256xf32>
    %133 = vector.shape_cast %132 : vector<256xf32> to vector<1x256xf32>
    %134 = math.sqrt %133 : vector<1x256xf32>
    %cst_27 = arith.constant 9.99999996E-13 : f32
    %135 = vector.broadcast %cst_27 : f32 to vector<1x256xf32>
    %136 = arith.maximumf %134, %135 : vector<1x256xf32>
    %cst_28 = arith.constant 1.000000e+00 : f32
    %137 = vector.broadcast %cst_28 : f32 to vector<1x256xf32>
    %138 = arith.divf %137, %136 : vector<1x256xf32>
    %139 = vector.extract_strided_slice %129 {offsets = [0, 0], sizes = [4, 256], strides = [1, 1]} : vector<8x256xf32> to vector<4x256xf32>
    %cst_29 = arith.constant dense<0.000000e+00> : vector<256xf32>
    %140 = vector.multi_reduction <add>, %139, %cst_29 [0] : vector<4x256xf32> to vector<256xf32>
    %141 = vector.shape_cast %140 : vector<256xf32> to vector<1x256xf32>
    %142 = math.sqrt %141 : vector<1x256xf32>
    %cst_30 = arith.constant 9.99999996E-13 : f32
    %143 = vector.broadcast %cst_30 : f32 to vector<1x256xf32>
    %144 = arith.maximumf %142, %143 : vector<1x256xf32>
    %cst_31 = arith.constant 1.000000e+00 : f32
    %145 = vector.broadcast %cst_31 : f32 to vector<1x256xf32>
    %146 = arith.divf %145, %144 : vector<1x256xf32>
    %147 = vector.extract_strided_slice %124 {offsets = [0, 0], sizes = [4, 256], strides = [1, 1]} : vector<8x256xf32> to vector<4x256xf32>
    %148 = vector.broadcast %138 : vector<1x256xf32> to vector<4x256xf32>
    %149 = arith.mulf %147, %148 : vector<4x256xf32>
    %150 = arith.truncf %149 : vector<4x256xf32> to vector<4x256xbf16>
    %151 = vector.extract_strided_slice %125 {offsets = [0, 0], sizes = [4, 256], strides = [1, 1]} : vector<8x256xf32> to vector<4x256xf32>
    %152 = vector.broadcast %146 : vector<1x256xf32> to vector<4x256xf32>
    %153 = arith.mulf %151, %152 : vector<4x256xf32>
    %154 = arith.truncf %153 : vector<4x256xf32> to vector<4x256xbf16>
    %155 = vector.extract_strided_slice %123 {offsets = [0, 0], sizes = [4, 64], strides = [1, 1]} : vector<8x64xf32> to vector<4x64xf32>
    %156 = arith.truncf %155 : vector<4x64xf32> to vector<4x64xbf16>
    %157 = vector.extract_strided_slice %127 {offsets = [0, 0], sizes = [4, 256], strides = [1, 1]} : vector<8x256xbf16> to vector<4x256xbf16>
    %cst_32 = arith.constant dense<0.000000e+00> : vector<256x64xf32>
    %158 = tpu.matmul %150, %156, %cst_32 {dimension_numbers = #tpu.dot_dimension_numbers<[0], [0], [1], [1], [0, 1, 1, 1], [], []>} : vector<4x256xbf16>, vector<4x64xbf16>, vector<256x64xf32> -> vector<256x64xf32>
    %159 = vector.broadcast %130 : f32 to vector<256x64xf32>
    %160 = arith.mulf %158, %159 : vector<256x64xf32>
    %cst_33 = arith.constant dense<0xFF800000> : vector<256xf32>
    %161 = vector.multi_reduction <maximumf>, %160, %cst_33 [1] : vector<256x64xf32> to vector<256xf32>
    %162 = vector.shape_cast %161 : vector<256xf32> to vector<256x1xf32>
    %163 = vector.broadcast %162 : vector<256x1xf32> to vector<256x64xf32>
    %164 = arith.subf %160, %163 : vector<256x64xf32>
    %165 = math.exp %164 : vector<256x64xf32>
    %cst_34 = arith.constant dense<0.000000e+00> : vector<256xf32>
    %166 = vector.multi_reduction <add>, %165, %cst_34 [1] : vector<256x64xf32> to vector<256xf32>
    %167 = vector.shape_cast %166 : vector<256xf32> to vector<256x1xf32>
    %cst_35 = arith.constant 1.000000e+00 : f32
    %168 = vector.broadcast %cst_35 : f32 to vector<256x1xf32>
    %169 = arith.divf %168, %167 : vector<256x1xf32>
    %170 = vector.broadcast %169 : vector<256x1xf32> to vector<256x64xf32>
    %171 = arith.mulf %165, %170 : vector<256x64xf32>
    %cst_36 = arith.constant dense<0.000000e+00> : vector<64x256xf32>
    %172 = tpu.matmul %156, %154, %cst_36 {dimension_numbers = #tpu.dot_dimension_numbers<[0], [0], [1], [1], [0, 1, 1, 1], [], []>} : vector<4x64xbf16>, vector<4x256xbf16>, vector<64x256xf32> -> vector<64x256xf32>
    %173 = vector.broadcast %130 : f32 to vector<64x256xf32>
    %174 = arith.mulf %172, %173 : vector<64x256xf32>
    %cst_37 = arith.constant dense<0xFF800000> : vector<64xf32>
    %175 = vector.multi_reduction <maximumf>, %174, %cst_37 [1] : vector<64x256xf32> to vector<64xf32>
    %176 = vector.shape_cast %175 : vector<64xf32> to vector<64x1xf32>
    %177 = vector.broadcast %176 : vector<64x1xf32> to vector<64x256xf32>
    %178 = arith.subf %174, %177 : vector<64x256xf32>
    %179 = math.exp %178 : vector<64x256xf32>
    %cst_38 = arith.constant dense<0.000000e+00> : vector<64xf32>
    %180 = vector.multi_reduction <add>, %179, %cst_38 [1] : vector<64x256xf32> to vector<64xf32>
    %181 = vector.shape_cast %180 : vector<64xf32> to vector<64x1xf32>
    %cst_39 = arith.constant 1.000000e+00 : f32
    %182 = vector.broadcast %cst_39 : f32 to vector<64x1xf32>
    %183 = arith.divf %182, %181 : vector<64x1xf32>
    %184 = vector.broadcast %183 : vector<64x1xf32> to vector<64x256xf32>
    %185 = arith.mulf %179, %184 : vector<64x256xf32>
    %186 = arith.truncf %171 : vector<256x64xf32> to vector<256x64xbf16>
    %187 = arith.truncf %185 : vector<64x256xf32> to vector<64x256xbf16>
    %cst_40 = arith.constant dense<0.000000e+00> : vector<4x64xf32>
    %188 = tpu.matmul %157, %187, %cst_40 {dimension_numbers = #tpu.dot_dimension_numbers<[1], [1], [0], [0], [0, 0, 1, 0], [], []>} : vector<4x256xbf16>, vector<64x256xbf16>, vector<4x64xf32> -> vector<4x64xf32>
    %189 = arith.truncf %188 : vector<4x64xf32> to vector<4x64xbf16>
    %cst_41 = arith.constant dense<0.000000e+00> : vector<4x256xf32>
    %190 = tpu.matmul %189, %186, %cst_41 {dimension_numbers = #tpu.dot_dimension_numbers<[1], [1], [0], [0], [0, 0, 1, 0], [], []>} : vector<4x64xbf16>, vector<256x64xbf16>, vector<4x256xf32> -> vector<4x256xf32>
    %c1 = arith.constant 1 : index
    %191 = memref.load %arg1[%c1] : memref<2xf32, #tpu.memory_space<smem>>
    %192 = vector.extract_strided_slice %128 {offsets = [4, 0], sizes = [4, 256], strides = [1, 1]} : vector<8x256xf32> to vector<4x256xf32>
    %cst_42 = arith.constant dense<0.000000e+00> : vector<256xf32>
    %193 = vector.multi_reduction <add>, %192, %cst_42 [0] : vector<4x256xf32> to vector<256xf32>
    %194 = vector.shape_cast %193 : vector<256xf32> to vector<1x256xf32>
    %195 = math.sqrt %194 : vector<1x256xf32>
    %cst_43 = arith.constant 9.99999996E-13 : f32
    %196 = vector.broadcast %cst_43 : f32 to vector<1x256xf32>
    %197 = arith.maximumf %195, %196 : vector<1x256xf32>
    %cst_44 = arith.constant 1.000000e+00 : f32
    %198 = vector.broadcast %cst_44 : f32 to vector<1x256xf32>
    %199 = arith.divf %198, %197 : vector<1x256xf32>
    %200 = vector.extract_strided_slice %129 {offsets = [4, 0], sizes = [4, 256], strides = [1, 1]} : vector<8x256xf32> to vector<4x256xf32>
    %cst_45 = arith.constant dense<0.000000e+00> : vector<256xf32>
    %201 = vector.multi_reduction <add>, %200, %cst_45 [0] : vector<4x256xf32> to vector<256xf32>
    %202 = vector.shape_cast %201 : vector<256xf32> to vector<1x256xf32>
    %203 = math.sqrt %202 : vector<1x256xf32>
    %cst_46 = arith.constant 9.99999996E-13 : f32
    %204 = vector.broadcast %cst_46 : f32 to vector<1x256xf32>
    %205 = arith.maximumf %203, %204 : vector<1x256xf32>
    %cst_47 = arith.constant 1.000000e+00 : f32
    %206 = vector.broadcast %cst_47 : f32 to vector<1x256xf32>
    %207 = arith.divf %206, %205 : vector<1x256xf32>
    %208 = vector.extract_strided_slice %124 {offsets = [4, 0], sizes = [4, 256], strides = [1, 1]} : vector<8x256xf32> to vector<4x256xf32>
    %209 = vector.broadcast %199 : vector<1x256xf32> to vector<4x256xf32>
    %210 = arith.mulf %208, %209 : vector<4x256xf32>
    %211 = arith.truncf %210 : vector<4x256xf32> to vector<4x256xbf16>
    %212 = vector.extract_strided_slice %125 {offsets = [4, 0], sizes = [4, 256], strides = [1, 1]} : vector<8x256xf32> to vector<4x256xf32>
    %213 = vector.broadcast %207 : vector<1x256xf32> to vector<4x256xf32>
    %214 = arith.mulf %212, %213 : vector<4x256xf32>
    %215 = arith.truncf %214 : vector<4x256xf32> to vector<4x256xbf16>
    %216 = vector.extract_strided_slice %123 {offsets = [4, 0], sizes = [4, 64], strides = [1, 1]} : vector<8x64xf32> to vector<4x64xf32>
    %217 = arith.truncf %216 : vector<4x64xf32> to vector<4x64xbf16>
    %218 = vector.extract_strided_slice %127 {offsets = [4, 0], sizes = [4, 256], strides = [1, 1]} : vector<8x256xbf16> to vector<4x256xbf16>
    %cst_48 = arith.constant dense<0.000000e+00> : vector<256x64xf32>
    %219 = tpu.matmul %211, %217, %cst_48 {dimension_numbers = #tpu.dot_dimension_numbers<[0], [0], [1], [1], [0, 1, 1, 1], [], []>} : vector<4x256xbf16>, vector<4x64xbf16>, vector<256x64xf32> -> vector<256x64xf32>
    %220 = vector.broadcast %191 : f32 to vector<256x64xf32>
    %221 = arith.mulf %219, %220 : vector<256x64xf32>
    %cst_49 = arith.constant dense<0xFF800000> : vector<256xf32>
    %222 = vector.multi_reduction <maximumf>, %221, %cst_49 [1] : vector<256x64xf32> to vector<256xf32>
    %223 = vector.shape_cast %222 : vector<256xf32> to vector<256x1xf32>
    %224 = vector.broadcast %223 : vector<256x1xf32> to vector<256x64xf32>
    %225 = arith.subf %221, %224 : vector<256x64xf32>
    %226 = math.exp %225 : vector<256x64xf32>
    %cst_50 = arith.constant dense<0.000000e+00> : vector<256xf32>
    %227 = vector.multi_reduction <add>, %226, %cst_50 [1] : vector<256x64xf32> to vector<256xf32>
    %228 = vector.shape_cast %227 : vector<256xf32> to vector<256x1xf32>
    %cst_51 = arith.constant 1.000000e+00 : f32
    %229 = vector.broadcast %cst_51 : f32 to vector<256x1xf32>
    %230 = arith.divf %229, %228 : vector<256x1xf32>
    %231 = vector.broadcast %230 : vector<256x1xf32> to vector<256x64xf32>
    %232 = arith.mulf %226, %231 : vector<256x64xf32>
    %cst_52 = arith.constant dense<0.000000e+00> : vector<64x256xf32>
    %233 = tpu.matmul %217, %215, %cst_52 {dimension_numbers = #tpu.dot_dimension_numbers<[0], [0], [1], [1], [0, 1, 1, 1], [], []>} : vector<4x64xbf16>, vector<4x256xbf16>, vector<64x256xf32> -> vector<64x256xf32>
    %234 = vector.broadcast %191 : f32 to vector<64x256xf32>
    %235 = arith.mulf %233, %234 : vector<64x256xf32>
    %cst_53 = arith.constant dense<0xFF800000> : vector<64xf32>
    %236 = vector.multi_reduction <maximumf>, %235, %cst_53 [1] : vector<64x256xf32> to vector<64xf32>
    %237 = vector.shape_cast %236 : vector<64xf32> to vector<64x1xf32>
    %238 = vector.broadcast %237 : vector<64x1xf32> to vector<64x256xf32>
    %239 = arith.subf %235, %238 : vector<64x256xf32>
    %240 = math.exp %239 : vector<64x256xf32>
    %cst_54 = arith.constant dense<0.000000e+00> : vector<64xf32>
    %241 = vector.multi_reduction <add>, %240, %cst_54 [1] : vector<64x256xf32> to vector<64xf32>
    %242 = vector.shape_cast %241 : vector<64xf32> to vector<64x1xf32>
    %cst_55 = arith.constant 1.000000e+00 : f32
    %243 = vector.broadcast %cst_55 : f32 to vector<64x1xf32>
    %244 = arith.divf %243, %242 : vector<64x1xf32>
    %245 = vector.broadcast %244 : vector<64x1xf32> to vector<64x256xf32>
    %246 = arith.mulf %240, %245 : vector<64x256xf32>
    %247 = arith.truncf %232 : vector<256x64xf32> to vector<256x64xbf16>
    %248 = arith.truncf %246 : vector<64x256xf32> to vector<64x256xbf16>
    %cst_56 = arith.constant dense<0.000000e+00> : vector<4x64xf32>
    %249 = tpu.matmul %218, %248, %cst_56 {dimension_numbers = #tpu.dot_dimension_numbers<[1], [1], [0], [0], [0, 0, 1, 0], [], []>} : vector<4x256xbf16>, vector<64x256xbf16>, vector<4x64xf32> -> vector<4x64xf32>
    %250 = arith.truncf %249 : vector<4x64xf32> to vector<4x64xbf16>
    %cst_57 = arith.constant dense<0.000000e+00> : vector<4x256xf32>
    %251 = tpu.matmul %250, %247, %cst_57 {dimension_numbers = #tpu.dot_dimension_numbers<[1], [1], [0], [0], [0, 0, 1, 0], [], []>} : vector<4x64xbf16>, vector<256x64xbf16>, vector<4x256xf32> -> vector<4x256xf32>
    %252 = tpu.concatenate %190, %251 in 0 : vector<4x256xf32>, vector<4x256xf32> -> vector<8x256xf32>
    %cst_58 = arith.constant dense<0.000000e+00> : vector<8xf32>
    %253 = vector.multi_reduction <add>, %252, %cst_58 [1] : vector<8x256xf32> to vector<8xf32>
    %254 = vector.shape_cast %253 : vector<8xf32> to vector<8x1xf32>
    %cst_59 = arith.constant 2.560000e+02 : f32
    %255 = vector.broadcast %cst_59 : f32 to vector<8x1xf32>
    %256 = arith.divf %254, %255 : vector<8x1xf32>
    %257 = vector.broadcast %256 : vector<8x1xf32> to vector<8x256xf32>
    %258 = arith.subf %252, %257 : vector<8x256xf32>
    %259 = arith.mulf %258, %258 : vector<8x256xf32>
    %cst_60 = arith.constant dense<0.000000e+00> : vector<8xf32>
    %260 = vector.multi_reduction <add>, %259, %cst_60 [1] : vector<8x256xf32> to vector<8xf32>
    %261 = vector.shape_cast %260 : vector<8xf32> to vector<8x1xf32>
    %cst_61 = arith.constant 0.00392156886 : f32
    %262 = vector.broadcast %cst_61 : f32 to vector<8x1xf32>
    %263 = arith.mulf %261, %262 : vector<8x1xf32>
    %cst_62 = arith.constant 9.99999974E-5 : f32
    %264 = vector.broadcast %cst_62 : f32 to vector<8x1xf32>
    %265 = arith.addf %263, %264 : vector<8x1xf32>
    %cst_63 = arith.constant 4.000000e+00 : f32
    %266 = vector.broadcast %cst_63 : f32 to vector<8x1xf32>
    %267 = arith.mulf %266, %265 : vector<8x1xf32>
    %cst_64 = arith.constant 1.000000e+00 : f32
    %268 = vector.broadcast %cst_64 : f32 to vector<8x1xf32>
    %269 = arith.divf %268, %267 : vector<8x1xf32>
    %270 = vector.broadcast %269 : vector<8x1xf32> to vector<8x256xf32>
    %271 = arith.mulf %259, %270 : vector<8x256xf32>
    %cst_65 = arith.constant 5.000000e-01 : f32
    %272 = vector.broadcast %cst_65 : f32 to vector<8x256xf32>
    %273 = arith.addf %271, %272 : vector<8x256xf32>
    %cst_66 = arith.constant 5.000000e-01 : f32
    %274 = vector.broadcast %cst_66 : f32 to vector<8x256xf32>
    %275 = arith.mulf %274, %273 : vector<8x256xf32>
    %276 = math.tanh %275 : vector<8x256xf32>
    %cst_67 = arith.constant 5.000000e-01 : f32
    %277 = vector.broadcast %cst_67 : f32 to vector<8x256xf32>
    %278 = arith.mulf %277, %276 : vector<8x256xf32>
    %cst_68 = arith.constant 5.000000e-01 : f32
    %279 = vector.broadcast %cst_68 : f32 to vector<8x256xf32>
    %280 = arith.addf %279, %278 : vector<8x256xf32>
    %281 = arith.mulf %252, %280 : vector<8x256xf32>
    %c0_69 = arith.constant 0 : index
    %c0_70 = arith.constant 0 : index
    %c0_71 = arith.constant 0 : index
    %282 = vector.load %arg5[%c0_69, %c0_70, %c0_71] : memref<1x8x256xf32, #tpu.memory_space<vmem>>, vector<1x8x256xf32>
    %283 = vector.shape_cast %282 : vector<1x8x256xf32> to vector<8x256xf32>
    %284 = vector.shape_cast %281 : vector<8x256xf32> to vector<1x8x256xf32>
    tpu.vector_store %arg5[%c0_69, %c0_70, %c0_71], %284 {strides = array<i32>} : memref<1x8x256xf32, #tpu.memory_space<vmem>>, vector<1x8x256xf32>,
    return
  }
  func.func @transform_0(%arg0: i32) -> i32 {
    %c0_i32 = arith.constant 0 : i32
    %c0_i32_0 = arith.constant 0 : i32
    return %c0_i32 : i32
  }
  func.func @transform_1(%arg0: i32) -> (i32, i32, i32) {
    %c0_i32 = arith.constant 0 : i32
    %c0_i32_0 = arith.constant 0 : i32
    %c0_i32_1 = arith.constant 0 : i32
    return %arg0, %c0_i32, %c0_i32_0 : i32, i32, i32
  }
  func.func @transform_2(%arg0: i32) -> (i32, i32) {
    %c0_i32 = arith.constant 0 : i32
    %c0_i32_0 = arith.constant 0 : i32
    %c0_i32_1 = arith.constant 0 : i32
    return %c0_i32, %c0_i32_0 : i32, i32
  }
  func.func @transform_3(%arg0: i32) -> (i32, i32) {
    %c0_i32 = arith.constant 0 : i32
    %c0_i32_0 = arith.constant 0 : i32
    %c0_i32_1 = arith.constant 0 : i32
    return %c0_i32, %c0_i32_0 : i32, i32
  }
  func.func @transform_4(%arg0: i32) -> (i32, i32, i32) {
    %c0_i32 = arith.constant 0 : i32
    %c0_i32_0 = arith.constant 0 : i32
    %c0_i32_1 = arith.constant 0 : i32
    return %arg0, %c0_i32, %c0_i32_0 : i32, i32, i32
  }
}

</mosaic_0001>

<llo_original>
// kernel: tpu_custom_call.1
$region0: #{tpu_custom_call.1}
  #allocation0 [shape = 'u32[]', space=smem, size = 0x4, offset = 0x4, fixed_abs, tag = 'smem constant byte address 0x4 - core index']
  #allocation1 [shape = 'u32[144,128]{1,0:T(1,128)}', space=vmem, size = 0x12000, scoped, tag = 'internal scratch']
  %s0 = inlined_call_operand.vmem [shape: f32[2], index: 0, kind: input, shape index: {}]
  %s1 = inlined_call_operand.vmem [shape: f32[2,8,256], index: 1, kind: input, shape index: {}]
  %s2 = inlined_call_operand.vmem [shape: f32[32,8], index: 2, kind: input, shape index: {}]
  %s3 = inlined_call_operand.vmem [shape: f32[32,9], index: 3, kind: input, shape index: {}]
  %s4 = inlined_call_operand.hbm [shape: f32[2,8,256], index: 4, kind: output, shape index: {}]
  %s5 = sld [smem:[#allocation0]]
  $region53: #{tpu_custom_call.1} parent=0
    _
  %s7 = ssub.s32 1, %s5
  %s8 = scalar_select 0, %s7, %s5
  $region1: #{tpu_custom_call.1} parent=0
    #allocation2 [shape = 'u8[512]{0}', space=smem, size = 0x200, scoped, tag = 'input window, operand 0, single buffered']
    #allocation3 [shape = 's32[2]{0}', space=sflag, size = 0x8, scoped, tag = 'scoped memory for tpu_custom_call.1']
    #allocation4 [shape = 's32[2]{0}', space=sflag, size = 0x8, scoped, tag = 'scoped memory for tpu_custom_call.1']
    #allocation5 [shape = 'u8[16384]{0}', space=vmem, size = 0x4000, scoped, tag = 'output window, operand 0']
    %9 = vsyncpa [#allocation4], 0
    %10 = vsyncpa [#allocation3], 0
    %s11 = scalar_lea.sflag [#allocation3], 1
    %12 = vsyncpa %s11, 0
    loop: start=0, step=1, limit=4
    $region2: #{tpu_custom_call.1} parent=1 // loop_pre_header
      _
    $region3: #{tpu_custom_call.1} parent=1 // loop_header
      %s14 = sphi 0, %s18
      %p15 = scmp.ge.s32.totalorder %s14, 4
      %s22 = sphi 0, %s22
      %s24 = sphi 0, %s22
      %s25 = sphi 0, %s24
      %s39 = sphi 0, %s25
      %s45 = sphi 0, %s47
      %s48 = sphi 0, %s45
      %s49 = sphi 0, %s48
      %s65 = sphi 0, %s49
      %s69 = sphi 0, %s69
      %s71 = sphi 0, %s69
      %s72 = sphi 0, %s71
      %s86 = sphi 0, %s72
      %s90 = sphi 0, %s90
      %s92 = sphi 0, %s90
      %s93 = sphi 0, %s92
      %s107 = sphi 0, %s93
      %s113 = sphi 0, %s115
      %s116 = sphi 0, %s113
      %s117 = sphi 0, %s116
      %s133 = sphi 0, %s117
    $region4: #{tpu_custom_call.1} parent=1 // loop_header_branch
      %17 = sbr.rel (%p15) target = $region8
    $region5: #{tpu_custom_call.1} parent=1 // loop_body
      %s19 = ssub.s32 %s14, 1
      %s20 = ssub.s32 %s14, 2
      %s21 = sadd.s32 %s14, 1
      %s23 = sadd.s32 %s22, 1
      %p26 = scmp.eq.s32.totalorder %s14, 1
      %p27 = scmp.ne.s32.totalorder %s22, %s24
      %p28 = scmp.eq.s32.totalorder %s14, 0
      %p29 = por %p27, %p28
      %p30 = scmp.ne.s32.totalorder %s22, %s24
      %p31 = scmp.eq.s32.totalorder %s19, 1
      %p32 = por %p30, %p31
      %p33 = scmp.ne.s32.totalorder %s24, %s25
      %p34 = scmp.eq.s32.totalorder %s19, 0
      %p35 = por %p33, %p34
      %p36 = scmp.ne.s32.totalorder %s24, %s25
      %p37 = scmp.eq.s32.totalorder %s20, 1
      %p38 = por %p36, %p37
      %p40 = scmp.ne.s32.totalorder %s25, %s39
      %p41 = scmp.eq.s32.totalorder %s20, 0
      %p42 = por %p40, %p41
      %s43 = ssub.s32 %s14, %s21
      %p44 = scmp.eq.s32.totalorder %s43, 0
      %s46 = sadd.s32 %s45, 1
      %s47 = scalar_select %p44, %s45, %s46
      %p50 = pneg %p44
      %p51 = scmp.eq.s32.totalorder %s14, 1
      %p52 = por %p50, %p51
      %p53 = scmp.ne.s32.totalorder %s45, %s48
      %p54 = scmp.eq.s32.totalorder %s14, 0
      %p55 = por %p53, %p54
      %p56 = scmp.ne.s32.totalorder %s45, %s48
      %p57 = scmp.eq.s32.totalorder %s19, 1
      %p58 = por %p56, %p57
      %p59 = scmp.ne.s32.totalorder %s48, %s49
      %p60 = scmp.eq.s32.totalorder %s19, 0
      %p61 = por %p59, %p60
      %p62 = scmp.ne.s32.totalorder %s48, %s49
      %p63 = scmp.eq.s32.totalorder %s20, 1
      %p64 = por %p62, %p63
      %p66 = scmp.ne.s32.totalorder %s49, %s65
      %p67 = scmp.eq.s32.totalorder %s20, 0
      %p68 = por %p66, %p67
      %s70 = sadd.s32 %s69, 1
      %p73 = scmp.eq.s32.totalorder %s14, 1
      %p74 = scmp.ne.s32.totalorder %s69, %s71
      %p75 = scmp.eq.s32.totalorder %s14, 0
      %p76 = por %p74, %p75
      %p77 = scmp.ne.s32.totalorder %s69, %s71
      %p78 = scmp.eq.s32.totalorder %s19, 1
      %p79 = por %p77, %p78
      %p80 = scmp.ne.s32.totalorder %s71, %s72
      %p81 = scmp.eq.s32.totalorder %s19, 0
      %p82 = por %p80, %p81
      %p83 = scmp.ne.s32.totalorder %s71, %s72
      %p84 = scmp.eq.s32.totalorder %s20, 1
      %p85 = por %p83, %p84
      %p87 = scmp.ne.s32.totalorder %s72, %s86
      %p88 = scmp.eq.s32.totalorder %s20, 0
      %p89 = por %p87, %p88
      %s91 = sadd.s32 %s90, 1
      %p94 = scmp.eq.s32.totalorder %s14, 1
      %p95 = scmp.ne.s32.totalorder %s90, %s92
      %p96 = scmp.eq.s32.totalorder %s14, 0
      %p97 = por %p95, %p96
      %p98 = scmp.ne.s32.totalorder %s90, %s92
      %p99 = scmp.eq.s32.totalorder %s19, 1
      %p100 = por %p98, %p99
      %p101 = scmp.ne.s32.totalorder %s92, %s93
      %p102 = scmp.eq.s32.totalorder %s19, 0
      %p103 = por %p101, %p102
      %p104 = scmp.ne.s32.totalorder %s92, %s93
      %p105 = scmp.eq.s32.totalorder %s20, 1
      %p106 = por %p104, %p105
      %p108 = scmp.ne.s32.totalorder %s93, %s107
      %p109 = scmp.eq.s32.totalorder %s20, 0
      %p110 = por %p108, %p109
      %s111 = ssub.s32 %s14, %s21
      %p112 = scmp.eq.s32.totalorder %s111, 0
      %s114 = sadd.s32 %s113, 1
      %s115 = scalar_select %p112, %s113, %s114
      %p118 = pneg %p112
      %p119 = scmp.eq.s32.totalorder %s14, 1
      %p120 = por %p118, %p119
      %p121 = scmp.ne.s32.totalorder %s113, %s116
      %p122 = scmp.eq.s32.totalorder %s14, 0
      %p123 = por %p121, %p122
      %p124 = scmp.ne.s32.totalorder %s113, %s116
      %p125 = scmp.eq.s32.totalorder %s19, 1
      %p126 = por %p124, %p125
      %p127 = scmp.ne.s32.totalorder %s116, %s117
      %p128 = scmp.eq.s32.totalorder %s19, 0
      %p129 = por %p127, %p128
      %p130 = scmp.ne.s32.totalorder %s116, %s117
      %p131 = scmp.eq.s32.totalorder %s20, 1
      %p132 = por %p130, %p131
      %p134 = scmp.ne.s32.totalorder %s117, %s133
      %p135 = scmp.eq.s32.totalorder %s20, 0
      %p136 = por %p134, %p135
      %p137 = scmp.le.s32.totalorder 1, %s14
      %p138 = scmp.lt.s32.totalorder %s14, 3
      %p139 = pnand %p137, %p138
      %p140 = pneg %p139
      // Predicated region
      $region9: #{tpu_custom_call.1} parent=5 // pred_check
        _
      $region10: #{tpu_custom_call.1} parent=5 // pred_check_branch
        %142 = sbr.rel (%p139) target = $region12
      $region11: #{tpu_custom_call.1} parent=5 // pred_region
        %s143 = ssub.s32 %s14, 1
        // Predicated region
        $region13: #{tpu_custom_call.1} parent=11 // pred_check
          %p144 = pneg %p35
        $region14: #{tpu_custom_call.1} parent=11 // pred_check_branch
          %146 = sbr.rel (%p144) target = $region16
        $region15: #{tpu_custom_call.1} parent=11 // pred_region
          %s148 = ssub.s32 16, 16
          %149 = vsyncadd [#allocation4], %s148
          %s151 = sshll.u32 %s0, 4
          %s152 = int_to_ptr.vmem [resolvable:$true] %s151
          %154 = dma.vmem_to_smem %s152, 16, [#allocation2], [#allocation4]
        $region16: #{tpu_custom_call.1} parent=11 // pred_fallthru
          _
        // Predicated region
        $region17: #{tpu_custom_call.1} parent=11 // pred_check
          %p155 = pneg %p82
        $region18: #{tpu_custom_call.1} parent=11 // pred_check_branch
          %157 = sbr.rel (%p155) target = $region20
        $region19: #{tpu_custom_call.1} parent=11 // pred_region
          _
        $region20: #{tpu_custom_call.1} parent=11 // pred_fallthru
          _
        // Predicated region
        $region21: #{tpu_custom_call.1} parent=11 // pred_check
          %p158 = pneg %p103
        $region22: #{tpu_custom_call.1} parent=11 // pred_check_branch
          %160 = sbr.rel (%p158) target = $region24
        $region23: #{tpu_custom_call.1} parent=11 // pred_region
          _
        $region24: #{tpu_custom_call.1} parent=11 // pred_fallthru
          _
      $region12: #{tpu_custom_call.1} parent=5 // pred_fallthru
        _
      %p161 = scmp.lt.s32.totalorder %s14, 2
      // Predicated region
      $region25: #{tpu_custom_call.1} parent=5 // pred_check
        %p162 = pneg %p161
      $region26: #{tpu_custom_call.1} parent=5 // pred_check_branch
        %164 = sbr.rel (%p162) target = $region28
      $region27: #{tpu_custom_call.1} parent=5 // pred_region
        // Predicated region
        $region29: #{tpu_custom_call.1} parent=27 // pred_check
          %p165 = pneg %p55
        $region30: #{tpu_custom_call.1} parent=27 // pred_check_branch
          %167 = sbr.rel (%p165) target = $region32
        $region31: #{tpu_custom_call.1} parent=27 // pred_region
          %p168 = scmp.lt.s32.totalorder %s14, 1
          %s169 = scalar_select %p168, %s14, 1
          %s170 = smul.addr %s169, 2
          %s171 = smul.addr %s170, 8
          %s172 = scalar_lea.vmem %s1, %s171
        $region32: #{tpu_custom_call.1} parent=27 // pred_fallthru
          _
      $region28: #{tpu_custom_call.1} parent=5 // pred_fallthru
        _
      %p173 = scmp.le.s32.totalorder 1, %s14
      %p174 = scmp.lt.s32.totalorder %s14, 3
      %p175 = pnand %p173, %p174
      %p176 = pneg %p175
      // Predicated region
      $region33: #{tpu_custom_call.1} parent=5 // pred_check
        _
      $region34: #{tpu_custom_call.1} parent=5 // pred_check_branch
        %178 = sbr.rel (%p175) target = $region36
      $region35: #{tpu_custom_call.1} parent=5 // pred_region
        %s179 = ssub.s32 %s14, 1
        // Predicated region
        $region37: #{tpu_custom_call.1} parent=35 // pred_check
          %p180 = pneg %p35
        $region38: #{tpu_custom_call.1} parent=35 // pred_check_branch
          %182 = sbr.rel (%p180) target = $region40
        $region39: #{tpu_custom_call.1} parent=35 // pred_region
          %183 = dma.done [#allocation4], 16
        $region40: #{tpu_custom_call.1} parent=35 // pred_fallthru
          _
        %184 = sfence
        %p185 = pneg %p35
        %p186 = pneg %p32
        %p187 = scmp.lt.s32.totalorder %s19, 1
        %s188 = scalar_select %p187, %s19, 1
        %s189 = smul.addr %s188, 2
        %s190 = smul.addr %s189, 8
        %s191 = scalar_lea.vmem %s1, %s190
        %p192 = pneg %p61
        %p193 = pneg %p58
        %p194 = pneg %p82
        %p195 = pneg %p79
        %p196 = pneg %p103
        %p197 = pneg %p100
        %p198 = pneg %p129
        %p199 = pneg %p126
        %s200 = sand.u32 %s116, 1
        %s201 = scalar_lea.sflag [#allocation3], %s200
        %s202 = sand.u32 %s116, 1
        %s203 = smul.addr %s202, 16
        %s204 = scalar_lea.vmem [#allocation5], %s203
        %p205 = scmp.lt.s32.totalorder %s19, 1
        %s206 = scalar_select %p205, %s19, 1
        %s207 = smul.addr %s206, 2
        %s208 = smul.addr %s207, 8
        %s209 = scalar_lea.vmem %s1, %s208
        %v211 = vld [vmem:[%s209] sm:$0xff]
        %v212 = vld [vmem:[%s209 + $0x8] sm:$0xff]
        %v213 = vpack.c.bf16 %v211, %v211
        %v214 = vpack.c.bf16 %v212, %v212
        %v215 = vld [vmem:[%s2] sm:$0xff]
        %v216 = vld [vmem:[%s2 + $0x8] sm:$0xff]
        %v217 = vld [vmem:[%s2 + $0x10] sm:$0xff]
        %v218 = vld [vmem:[%s2 + $0x18] sm:$0xff]
        %v219 = vpack.c.bf16 %v216, %v215
        %v220 = vpack.c.bf16 %v218, %v217
        %vm221 = vcmask 64512
        %v223 = vsel %vm221, %v219, 0
        %v226 = vsel %vm221, %v220, 0
        %vm228 = vcmask 1043456
        %v230 = vsel %vm228, %v213, 0
        %v233 = vsel %vm228, %v214, 0
        %235 = vmatprep.subr.bf16.mxu0 %v233
        %236 = vmatpush1.bf16.msra.mxu0 %v230
        %237 = vmatprep.subr.bf16.mxu0 0
        %238 = vmatpush1.bf16.msra.mxu0 0
        %239 = vmatprep.subr.bf16.mxu0 0
        %240 = vmatpush1.bf16.msra.mxu0 0
        %241 = vmatprep.subr.bf16.mxu0 0
        %242 = vmatpush1.bf16.msra.mxu0 0
        %243 = vmatprep.subr.bf16.mxu0 0
        %244 = vmatpush1.bf16.msra.mxu0 0
        %245 = vmatprep.subr.bf16.mxu0 0
        %246 = vmatpush1.bf16.msra.mxu0 0
        %247 = vmatprep.subr.bf16.mxu0 0
        %248 = vmatpush1.bf16.msra.mxu0 0
        %249 = vmatprep.subr.bf16.mxu0 0
        %250 = vmatpush1.bf16.msra.mxu0 0
        %251 = vmatprep.subr.bf16.mxu0 0
        %252 = vmatpush1.bf16.msra.mxu0 0
        %253 = vmatprep.subr.bf16.mxu0 0
        %254 = vmatpush1.bf16.msra.mxu0 0
        %255 = vmatprep.subr.bf16.mxu0 0
        %256 = vmatpush1.bf16.msra.mxu0 0
        %257 = vmatprep.subr.bf16.mxu0 0
        %258 = vmatpush1.bf16.msra.mxu0 0
        %259 = vmatprep.subr.bf16.mxu0 0
        %260 = vmatpush1.bf16.msra.mxu0 0
        %261 = vmatprep.subr.bf16.mxu0 0
        %262 = vmatpush1.bf16.msra.mxu0 0
        %263 = vmatprep.subr.bf16.mxu0 0
        %264 = vmatpush1.bf16.msra.mxu0 0
        %265 = vmatprep.subr.bf16.mxu0 0
        %266 = vmatpush1.bf16.msra.mxu0 0
        %267 = vmatprep.mubr.bf16.mxu0 0
        %268 = vmatmul.mubr.bf16.gmra.mrb[0].mxu0 %v223
        %v269 = vpop.f32.mrb[0].mxu0
        %v270 = vadd.f32 0.0, %v269
        %v271 = vpop.f32.mrb[0].mxu0
        %v272 = vadd.f32 0.0, %v271
        %v273 = vpop.f32.mrb[0].mxu0
        %v274 = vadd.f32 0.0, %v273
        %v275 = vpop.f32.mrb[0].mxu0
        %v276 = vadd.f32 0.0, %v275
        %277 = vmatprep.mubr.bf16.mxu0 0
        %278 = vmatmul.mubr.bf16.gmra.mrb[0].mxu0 %v226
        %v279 = vpop.f32.mrb[0].mxu0
        %v280 = vadd.f32 0.0, %v279
        %v281 = vpop.f32.mrb[0].mxu0
        %v282 = vadd.f32 0.0, %v281
        %v283 = vpop.f32.mrb[0].mxu0
        %v284 = vadd.f32 0.0, %v283
        %v285 = vpop.f32.mrb[0].mxu0
        %v286 = vadd.f32 0.0, %v285
        %287 = vdwg.mxu0
        %v288 = vlaneseq
        %v289 = vand.u32 %v288, 127
        %v290 = vadd.s32 %v289, 128
        %v291 = vcvt.s32.f32 %v289
        %v292 = vcvt.s32.f32 %v290
        %v293 = vrcp.pop 16.0
        %v294 = vmul.f32 %v291, %v293
        %v295 = vmul.f32 %v292, %v293
        %v296 = vfloor.f32 %v294
        %v297 = vfloor.f32 %v295
        %v298 = vmul.f32 %v296, 16.0
        %v299 = vmul.f32 %v297, 16.0
        %v300 = vsub.f32 %v291, %v298
        %v301 = vsub.f32 %v292, %v299
        %vm302 = vcmp.ge.s32.totalorder %v289, 16
        %vm303 = vcmp.ge.s32.totalorder %v290, 16
        %vm304 = vcmp.lt.s32.totalorder %v289, 240
        %vm305 = vcmp.lt.s32.totalorder %v290, 240
        %vm306 = vcmp.ge.f32.partialorder %v300, 0.5
        %vm307 = vcmp.ge.f32.partialorder %v301, 0.5
        %vm308 = vcmp.le.f32.partialorder %v300, 14.5
        %vm309 = vcmp.le.f32.partialorder %v301, 14.5
        %v310 = vld [vmem:[%s3] sm:$0xff]
        %v311 = vld [vmem:[%s3 + $0x8] sm:$0xff]
        %v312 = vld [vmem:[%s3 + $0x10] sm:$0xff]
        %v313 = vld [vmem:[%s3 + $0x18] sm:$0xff]
        %315 = vset.pattern.permute.xlu0 4
        %316 = vperm.xlu0 %315, %v310
        %v317 = vpop.permute.xlu0 %316
        %320 = vset.pattern.permute.xlu0 4
        %321 = vperm.xlu0 %320, %v311
        %v322 = vpop.permute.xlu0 %321
        %325 = vset.pattern.permute.xlu0 4
        %326 = vperm.xlu0 %325, %v312
        %v327 = vpop.permute.xlu0 %326
        %330 = vset.pattern.permute.xlu0 4
        %331 = vperm.xlu0 %330, %v313
        %v332 = vpop.permute.xlu0 %331
        %v334 = vmul.f32 %v270, %v317
        %v335 = vmul.f32 %v272, %v317
        %v336 = vmul.f32 %v274, %v322
        %v337 = vmul.f32 %v276, %v322
        %v338 = vmul.f32 %v280, %v327
        %v339 = vmul.f32 %v282, %v327
        %v340 = vmul.f32 %v284, %v332
        %v341 = vmul.f32 %v286, %v332
        %342 = vrot.lane.b32.xlu0 %v270, 17
        %v343 = vpop.permute.xlu0 %342
        %344 = vrot.lane.b32.xlu0 %v274, 17
        %v345 = vpop.permute.xlu0 %344
        %346 = vrot.lane.b32.xlu0 %v280, 17
        %v347 = vpop.permute.xlu0 %346
        %348 = vrot.lane.b32.xlu0 %v284, 17
        %v349 = vpop.permute.xlu0 %348
        %350 = vrot.lane.b32.xlu0 %v272, 17
        %v351 = vpop.permute.xlu0 %350
        %352 = vrot.lane.b32.xlu0 %v276, 17
        %v353 = vpop.permute.xlu0 %352
        %354 = vrot.lane.b32.xlu0 %v282, 17
        %v355 = vpop.permute.xlu0 %354
        %356 = vrot.lane.b32.xlu0 %v286, 17
        %v357 = vpop.permute.xlu0 %356
        %vm358 = vcmp.lt.s32.totalorder %v289, 17
        %v359 = vsel %vm358, %v343, %v351
        %v360 = vsel %vm358, %v345, %v353
        %v361 = vsel %vm358, %v347, %v355
        %v362 = vsel %vm358, %v349, %v357
        %v363 = vsel %vm358, %v351, %v343
        %v364 = vsel %vm358, %v353, %v345
        %v365 = vsel %vm358, %v355, %v347
        %v366 = vsel %vm358, %v357, %v349
        %vm367 = vmand %vm302, %vm306
        %vm368 = vmand %vm303, %vm307
        %v369 = vsel %vm367, 1, 0
        %v370 = vsel %vm368, 1, 0
        %vm371 = vcmp.eq.s32.totalorder %v369, 1
        %vm372 = vcmp.eq.s32.totalorder %v370, 1
        %v373 = vsel %vm371, %v363, 0.0
        %v374 = vsel %vm372, %v359, 0.0
        %v375 = vsel %vm371, %v364, 0.0
        %v376 = vsel %vm372, %v360, 0.0
        %v377 = vsel %vm371, %v365, 0.0
        %v378 = vsel %vm372, %v361, 0.0
        %v379 = vsel %vm371, %v366, 0.0
        %v380 = vsel %vm372, %v362, 0.0
        %381 = vset.pattern.permute.xlu0 0
        %382 = vperm.xlu0 %381, %v310
        %v383 = vpop.permute.xlu0 %382
        %385 = vset.pattern.permute.xlu0 0
        %386 = vperm.xlu0 %385, %v311
        %v387 = vpop.permute.xlu0 %386
        %389 = vset.pattern.permute.xlu0 0
        %390 = vperm.xlu0 %389, %v312
        %v391 = vpop.permute.xlu0 %390
        %393 = vset.pattern.permute.xlu0 0
        %394 = vperm.xlu0 %393, %v313
        %v395 = vpop.permute.xlu0 %394
        %v397 = vmul.f32 %v373, %v383
        %v398 = vmul.f32 %v374, %v383
        %v399 = vmul.f32 %v375, %v387
        %v400 = vmul.f32 %v376, %v387
        %v401 = vmul.f32 %v377, %v391
        %v402 = vmul.f32 %v378, %v391
        %v403 = vmul.f32 %v379, %v395
        %v404 = vmul.f32 %v380, %v395
        %v405 = vadd.f32 %v334, %v397
        %v406 = vadd.f32 %v335, %v398
        %v407 = vadd.f32 %v336, %v399
        %v408 = vadd.f32 %v337, %v400
        %v409 = vadd.f32 %v338, %v401
        %v410 = vadd.f32 %v339, %v402
        %v411 = vadd.f32 %v340, %v403
        %v412 = vadd.f32 %v341, %v404
        %413 = vrot.lane.b32.xlu0 %v270, 16
        %v414 = vpop.permute.xlu0 %413
        %415 = vrot.lane.b32.xlu0 %v274, 16
        %v416 = vpop.permute.xlu0 %415
        %417 = vrot.lane.b32.xlu0 %v280, 16
        %v418 = vpop.permute.xlu0 %417
        %419 = vrot.lane.b32.xlu0 %v284, 16
        %v420 = vpop.permute.xlu0 %419
        %421 = vrot.lane.b32.xlu0 %v272, 16
        %v422 = vpop.permute.xlu0 %421
        %423 = vrot.lane.b32.xlu0 %v276, 16
        %v424 = vpop.permute.xlu0 %423
        %425 = vrot.lane.b32.xlu0 %v282, 16
        %v426 = vpop.permute.xlu0 %425
        %427 = vrot.lane.b32.xlu0 %v286, 16
        %v428 = vpop.permute.xlu0 %427
        %vm429 = vcmp.lt.s32.totalorder %v289, 16
        %v430 = vsel %vm429, %v414, %v422
        %v431 = vsel %vm429, %v416, %v424
        %v432 = vsel %vm429, %v418, %v426
        %v433 = vsel %vm429, %v420, %v428
        %v434 = vsel %vm429, %v422, %v414
        %v435 = vsel %vm429, %v424, %v416
        %v436 = vsel %vm429, %v426, %v418
        %v437 = vsel %vm429, %v428, %v420
        %v438 = vsel %vm302, 1, 0
        %v439 = vsel %vm303, 1, 0
        %vm440 = vcmp.eq.s32.totalorder %v438, 1
        %vm441 = vcmp.eq.s32.totalorder %v439, 1
        %v442 = vsel %vm440, %v434, 0.0
        %v443 = vsel %vm441, %v430, 0.0
        %v444 = vsel %vm440, %v435, 0.0
        %v445 = vsel %vm441, %v431, 0.0
        %v446 = vsel %vm440, %v436, 0.0
        %v447 = vsel %vm441, %v432, 0.0
        %v448 = vsel %vm440, %v437, 0.0
        %v449 = vsel %vm441, %v433, 0.0
        %450 = vset.pattern.permute.xlu0 1
        %451 = vperm.xlu0 %450, %v310
        %v452 = vpop.permute.xlu0 %451
        %454 = vset.pattern.permute.xlu0 1
        %455 = vperm.xlu0 %454, %v311
        %v456 = vpop.permute.xlu0 %455
        %458 = vset.pattern.permute.xlu0 1
        %459 = vperm.xlu0 %458, %v312
        %v460 = vpop.permute.xlu0 %459
        %462 = vset.pattern.permute.xlu0 1
        %463 = vperm.xlu0 %462, %v313
        %v464 = vpop.permute.xlu0 %463
        %v466 = vmul.f32 %v442, %v452
        %v467 = vmul.f32 %v443, %v452
        %v468 = vmul.f32 %v444, %v456
        %v469 = vmul.f32 %v445, %v456
        %v470 = vmul.f32 %v446, %v460
        %v471 = vmul.f32 %v447, %v460
        %v472 = vmul.f32 %v448, %v464
        %v473 = vmul.f32 %v449, %v464
        %v474 = vadd.f32 %v405, %v466
        %v475 = vadd.f32 %v406, %v467
        %v476 = vadd.f32 %v407, %v468
        %v477 = vadd.f32 %v408, %v469
        %v478 = vadd.f32 %v409, %v470
        %v479 = vadd.f32 %v410, %v471
        %v480 = vadd.f32 %v411, %v472
        %v481 = vadd.f32 %v412, %v473
        %482 = vrot.lane.b32.xlu0 %v270, 15
        %v483 = vpop.permute.xlu0 %482
        %484 = vrot.lane.b32.xlu0 %v274, 15
        %v485 = vpop.permute.xlu0 %484
        %486 = vrot.lane.b32.xlu0 %v280, 15
        %v487 = vpop.permute.xlu0 %486
        %488 = vrot.lane.b32.xlu0 %v284, 15
        %v489 = vpop.permute.xlu0 %488
        %490 = vrot.lane.b32.xlu0 %v272, 15
        %v491 = vpop.permute.xlu0 %490
        %492 = vrot.lane.b32.xlu0 %v276, 15
        %v493 = vpop.permute.xlu0 %492
        %494 = vrot.lane.b32.xlu0 %v282, 15
        %v495 = vpop.permute.xlu0 %494
        %496 = vrot.lane.b32.xlu0 %v286, 15
        %v497 = vpop.permute.xlu0 %496
        %vm498 = vcmp.lt.s32.totalorder %v289, 15
        %v499 = vsel %vm498, %v483, %v491
        %v500 = vsel %vm498, %v485, %v493
        %v501 = vsel %vm498, %v487, %v495
        %v502 = vsel %vm498, %v489, %v497
        %v503 = vsel %vm498, %v491, %v483
        %v504 = vsel %vm498, %v493, %v485
        %v505 = vsel %vm498, %v495, %v487
        %v506 = vsel %vm498, %v497, %v489
        %vm507 = vmand %vm302, %vm308
        %vm508 = vmand %vm303, %vm309
        %v509 = vsel %vm507, 1, 0
        %v510 = vsel %vm508, 1, 0
        %vm511 = vcmp.eq.s32.totalorder %v509, 1
        %vm512 = vcmp.eq.s32.totalorder %v510, 1
        %v513 = vsel %vm511, %v503, 0.0
        %v514 = vsel %vm512, %v499, 0.0
        %v515 = vsel %vm511, %v504, 0.0
        %v516 = vsel %vm512, %v500, 0.0
        %v517 = vsel %vm511, %v505, 0.0
        %v518 = vsel %vm512, %v501, 0.0
        %v519 = vsel %vm511, %v506, 0.0
        %v520 = vsel %vm512, %v502, 0.0
        %521 = vset.pattern.permute.xlu0 2
        %522 = vperm.xlu0 %521, %v310
        %v523 = vpop.permute.xlu0 %522
        %525 = vset.pattern.permute.xlu0 2
        %526 = vperm.xlu0 %525, %v311
        %v527 = vpop.permute.xlu0 %526
        %529 = vset.pattern.permute.xlu0 2
        %530 = vperm.xlu0 %529, %v312
        %v531 = vpop.permute.xlu0 %530
        %533 = vset.pattern.permute.xlu0 2
        %534 = vperm.xlu0 %533, %v313
        %v535 = vpop.permute.xlu0 %534
        %v537 = vmul.f32 %v513, %v523
        %v538 = vmul.f32 %v514, %v523
        %v539 = vmul.f32 %v515, %v527
        %v540 = vmul.f32 %v516, %v527
        %v541 = vmul.f32 %v517, %v531
        %v542 = vmul.f32 %v518, %v531
        %v543 = vmul.f32 %v519, %v535
        %v544 = vmul.f32 %v520, %v535
        %v545 = vadd.f32 %v474, %v537
        %v546 = vadd.f32 %v475, %v538
        %v547 = vadd.f32 %v476, %v539
        %v548 = vadd.f32 %v477, %v540
        %v549 = vadd.f32 %v478, %v541
        %v550 = vadd.f32 %v479, %v542
        %v551 = vadd.f32 %v480, %v543
        %v552 = vadd.f32 %v481, %v544
        %553 = vrot.lane.b32.xlu0 %v270, 1
        %v554 = vpop.permute.xlu0 %553
        %555 = vrot.lane.b32.xlu0 %v274, 1
        %v556 = vpop.permute.xlu0 %555
        %557 = vrot.lane.b32.xlu0 %v280, 1
        %v558 = vpop.permute.xlu0 %557
        %559 = vrot.lane.b32.xlu0 %v284, 1
        %v560 = vpop.permute.xlu0 %559
        %561 = vrot.lane.b32.xlu0 %v272, 1
        %v562 = vpop.permute.xlu0 %561
        %563 = vrot.lane.b32.xlu0 %v276, 1
        %v564 = vpop.permute.xlu0 %563
        %565 = vrot.lane.b32.xlu0 %v282, 1
        %v566 = vpop.permute.xlu0 %565
        %567 = vrot.lane.b32.xlu0 %v286, 1
        %v568 = vpop.permute.xlu0 %567
        %vm569 = vcmp.lt.s32.totalorder %v289, 1
        %v570 = vsel %vm569, %v554, %v562
        %v571 = vsel %vm569, %v556, %v564
        %v572 = vsel %vm569, %v558, %v566
        %v573 = vsel %vm569, %v560, %v568
        %v574 = vsel %vm569, %v562, %v554
        %v575 = vsel %vm569, %v564, %v556
        %v576 = vsel %vm569, %v566, %v558
        %v577 = vsel %vm569, %v568, %v560
        %v578 = vsel %vm306, 1, 0
        %v579 = vsel %vm307, 1, 0
        %vm580 = vcmp.eq.s32.totalorder %v578, 1
        %vm581 = vcmp.eq.s32.totalorder %v579, 1
        %v582 = vsel %vm580, %v574, 0.0
        %v583 = vsel %vm581, %v570, 0.0
        %v584 = vsel %vm580, %v575, 0.0
        %v585 = vsel %vm581, %v571, 0.0
        %v586 = vsel %vm580, %v576, 0.0
        %v587 = vsel %vm581, %v572, 0.0
        %v588 = vsel %vm580, %v577, 0.0
        %v589 = vsel %vm581, %v573, 0.0
        %590 = vset.pattern.permute.xlu0 3
        %591 = vperm.xlu0 %590, %v310
        %v592 = vpop.permute.xlu0 %591
        %594 = vset.pattern.permute.xlu0 3
        %595 = vperm.xlu0 %594, %v311
        %v596 = vpop.permute.xlu0 %595
        %598 = vset.pattern.permute.xlu0 3
        %599 = vperm.xlu0 %598, %v312
        %v600 = vpop.permute.xlu0 %599
        %602 = vset.pattern.permute.xlu0 3
        %603 = vperm.xlu0 %602, %v313
        %v604 = vpop.permute.xlu0 %603
        %v606 = vmul.f32 %v582, %v592
        %v607 = vmul.f32 %v583, %v592
        %v608 = vmul.f32 %v584, %v596
        %v609 = vmul.f32 %v585, %v596
        %v610 = vmul.f32 %v586, %v600
        %v611 = vmul.f32 %v587, %v600
        %v612 = vmul.f32 %v588, %v604
        %v613 = vmul.f32 %v589, %v604
        %v614 = vadd.f32 %v545, %v606
        %v615 = vadd.f32 %v546, %v607
        %v616 = vadd.f32 %v547, %v608
        %v617 = vadd.f32 %v548, %v609
        %v618 = vadd.f32 %v549, %v610
        %v619 = vadd.f32 %v550, %v611
        %v620 = vadd.f32 %v551, %v612
        %v621 = vadd.f32 %v552, %v613
        %622 = vrot.lane.b32.xlu0 %v270, 127
        %v623 = vpop.permute.xlu0 %622
        %624 = vrot.lane.b32.xlu0 %v274, 127
        %v625 = vpop.permute.xlu0 %624
        %626 = vrot.lane.b32.xlu0 %v280, 127
        %v627 = vpop.permute.xlu0 %626
        %628 = vrot.lane.b32.xlu0 %v284, 127
        %v629 = vpop.permute.xlu0 %628
        %630 = vrot.lane.b32.xlu0 %v272, 127
        %v631 = vpop.permute.xlu0 %630
        %632 = vrot.lane.b32.xlu0 %v276, 127
        %v633 = vpop.permute.xlu0 %632
        %634 = vrot.lane.b32.xlu0 %v282, 127
        %v635 = vpop.permute.xlu0 %634
        %636 = vrot.lane.b32.xlu0 %v286, 127
        %v637 = vpop.permute.xlu0 %636
        %vm638 = vcmp.lt.s32.totalorder %v289, 127
        %v639 = vsel %vm638, %v623, %v631
        %v640 = vsel %vm638, %v625, %v633
        %v641 = vsel %vm638, %v627, %v635
        %v642 = vsel %vm638, %v629, %v637
        %v643 = vsel %vm638, %v631, %v623
        %v644 = vsel %vm638, %v633, %v625
        %v645 = vsel %vm638, %v635, %v627
        %v646 = vsel %vm638, %v637, %v629
        %v647 = vsel %vm308, 1, 0
        %v648 = vsel %vm309, 1, 0
        %vm649 = vcmp.eq.s32.totalorder %v647, 1
        %vm650 = vcmp.eq.s32.totalorder %v648, 1
        %v651 = vsel %vm649, %v639, 0.0
        %v652 = vsel %vm650, %v643, 0.0
        %v653 = vsel %vm649, %v640, 0.0
        %v654 = vsel %vm650, %v644, 0.0
        %v655 = vsel %vm649, %v641, 0.0
        %v656 = vsel %vm650, %v645, 0.0
        %v657 = vsel %vm649, %v642, 0.0
        %v658 = vsel %vm650, %v646, 0.0
        %659 = vset.pattern.permute.xlu0 5
        %660 = vperm.xlu0 %659, %v310
        %v661 = vpop.permute.xlu0 %660
        %663 = vset.pattern.permute.xlu0 5
        %664 = vperm.xlu0 %663, %v311
        %v665 = vpop.permute.xlu0 %664
        %667 = vset.pattern.permute.xlu0 5
        %668 = vperm.xlu0 %667, %v312
        %v669 = vpop.permute.xlu0 %668
        %671 = vset.pattern.permute.xlu0 5
        %672 = vperm.xlu0 %671, %v313
        %v673 = vpop.permute.xlu0 %672
        %v675 = vmul.f32 %v651, %v661
        %v676 = vmul.f32 %v652, %v661
        %v677 = vmul.f32 %v653, %v665
        %v678 = vmul.f32 %v654, %v665
        %v679 = vmul.f32 %v655, %v669
        %v680 = vmul.f32 %v656, %v669
        %v681 = vmul.f32 %v657, %v673
        %v682 = vmul.f32 %v658, %v673
        %v683 = vadd.f32 %v614, %v675
        %v684 = vadd.f32 %v615, %v676
        %v685 = vadd.f32 %v616, %v677
        %v686 = vadd.f32 %v617, %v678
        %v687 = vadd.f32 %v618, %v679
        %v688 = vadd.f32 %v619, %v680
        %v689 = vadd.f32 %v620, %v681
        %v690 = vadd.f32 %v621, %v682
        %691 = vrot.lane.b32.xlu0 %v270, 113
        %v692 = vpop.permute.xlu0 %691
        %693 = vrot.lane.b32.xlu0 %v274, 113
        %v694 = vpop.permute.xlu0 %693
        %695 = vrot.lane.b32.xlu0 %v280, 113
        %v696 = vpop.permute.xlu0 %695
        %697 = vrot.lane.b32.xlu0 %v284, 113
        %v698 = vpop.permute.xlu0 %697
        %699 = vrot.lane.b32.xlu0 %v272, 113
        %v700 = vpop.permute.xlu0 %699
        %701 = vrot.lane.b32.xlu0 %v276, 113
        %v702 = vpop.permute.xlu0 %701
        %703 = vrot.lane.b32.xlu0 %v282, 113
        %v704 = vpop.permute.xlu0 %703
        %705 = vrot.lane.b32.xlu0 %v286, 113
        %v706 = vpop.permute.xlu0 %705
        %vm707 = vcmp.lt.s32.totalorder %v289, 113
        %v708 = vsel %vm707, %v692, %v700
        %v709 = vsel %vm707, %v694, %v702
        %v710 = vsel %vm707, %v696, %v704
        %v711 = vsel %vm707, %v698, %v706
        %v712 = vsel %vm707, %v700, %v692
        %v713 = vsel %vm707, %v702, %v694
        %v714 = vsel %vm707, %v704, %v696
        %v715 = vsel %vm707, %v706, %v698
        %vm716 = vmand %vm304, %vm306
        %vm717 = vmand %vm305, %vm307
        %v718 = vsel %vm716, 1, 0
        %v719 = vsel %vm717, 1, 0
        %vm720 = vcmp.eq.s32.totalorder %v718, 1
        %vm721 = vcmp.eq.s32.totalorder %v719, 1
        %v722 = vsel %vm720, %v708, 0.0
        %v723 = vsel %vm721, %v712, 0.0
        %v724 = vsel %vm720, %v709, 0.0
        %v725 = vsel %vm721, %v713, 0.0
        %v726 = vsel %vm720, %v710, 0.0
        %v727 = vsel %vm721, %v714, 0.0
        %v728 = vsel %vm720, %v711, 0.0
        %v729 = vsel %vm721, %v715, 0.0
        %730 = vset.pattern.permute.xlu0 6
        %731 = vperm.xlu0 %730, %v310
        %v732 = vpop.permute.xlu0 %731
        %734 = vset.pattern.permute.xlu0 6
        %735 = vperm.xlu0 %734, %v311
        %v736 = vpop.permute.xlu0 %735
        %738 = vset.pattern.permute.xlu0 6
        %739 = vperm.xlu0 %738, %v312
        %v740 = vpop.permute.xlu0 %739
        %742 = vset.pattern.permute.xlu0 6
        %743 = vperm.xlu0 %742, %v313
        %v744 = vpop.permute.xlu0 %743
        %v746 = vmul.f32 %v722, %v732
        %v747 = vmul.f32 %v723, %v732
        %v748 = vmul.f32 %v724, %v736
        %v749 = vmul.f32 %v725, %v736
        %v750 = vmul.f32 %v726, %v740
        %v751 = vmul.f32 %v727, %v740
        %v752 = vmul.f32 %v728, %v744
        %v753 = vmul.f32 %v729, %v744
        %v754 = vadd.f32 %v683, %v746
        %v755 = vadd.f32 %v684, %v747
        %v756 = vadd.f32 %v685, %v748
        %v757 = vadd.f32 %v686, %v749
        %v758 = vadd.f32 %v687, %v750
        %v759 = vadd.f32 %v688, %v751
        %v760 = vadd.f32 %v689, %v752
        %v761 = vadd.f32 %v690, %v753
        %762 = vrot.lane.b32.xlu0 %v270, 112
        %v763 = vpop.permute.xlu0 %762
        %764 = vrot.lane.b32.xlu0 %v274, 112
        %v765 = vpop.permute.xlu0 %764
        %766 = vrot.lane.b32.xlu0 %v280, 112
        %v767 = vpop.permute.xlu0 %766
        %768 = vrot.lane.b32.xlu0 %v284, 112
        %v769 = vpop.permute.xlu0 %768
        %770 = vrot.lane.b32.xlu0 %v272, 112
        %v771 = vpop.permute.xlu0 %770
        %772 = vrot.lane.b32.xlu0 %v276, 112
        %v773 = vpop.permute.xlu0 %772
        %774 = vrot.lane.b32.xlu0 %v282, 112
        %v775 = vpop.permute.xlu0 %774
        %776 = vrot.lane.b32.xlu0 %v286, 112
        %v777 = vpop.permute.xlu0 %776
        %vm778 = vcmp.lt.s32.totalorder %v289, 112
        %v779 = vsel %vm778, %v763, %v771
        %v780 = vsel %vm778, %v765, %v773
        %v781 = vsel %vm778, %v767, %v775
        %v782 = vsel %vm778, %v769, %v777
        %v783 = vsel %vm778, %v771, %v763
        %v784 = vsel %vm778, %v773, %v765
        %v785 = vsel %vm778, %v775, %v767
        %v786 = vsel %vm778, %v777, %v769
        %v787 = vsel %vm304, 1, 0
        %v788 = vsel %vm305, 1, 0
        %vm789 = vcmp.eq.s32.totalorder %v787, 1
        %vm790 = vcmp.eq.s32.totalorder %v788, 1
        %v791 = vsel %vm789, %v779, 0.0
        %v792 = vsel %vm790, %v783, 0.0
        %v793 = vsel %vm789, %v780, 0.0
        %v794 = vsel %vm790, %v784, 0.0
        %v795 = vsel %vm789, %v781, 0.0
        %v796 = vsel %vm790, %v785, 0.0
        %v797 = vsel %vm789, %v782, 0.0
        %v798 = vsel %vm790, %v786, 0.0
        %799 = vset.pattern.permute.xlu0 7
        %800 = vperm.xlu0 %799, %v310
        %v801 = vpop.permute.xlu0 %800
        %803 = vset.pattern.permute.xlu0 7
        %804 = vperm.xlu0 %803, %v311
        %v805 = vpop.permute.xlu0 %804
        %807 = vset.pattern.permute.xlu0 7
        %808 = vperm.xlu0 %807, %v312
        %v809 = vpop.permute.xlu0 %808
        %811 = vset.pattern.permute.xlu0 7
        %812 = vperm.xlu0 %811, %v313
        %v813 = vpop.permute.xlu0 %812
        %v815 = vmul.f32 %v791, %v801
        %v816 = vmul.f32 %v792, %v801
        %v817 = vmul.f32 %v793, %v805
        %v818 = vmul.f32 %v794, %v805
        %v819 = vmul.f32 %v795, %v809
        %v820 = vmul.f32 %v796, %v809
        %v821 = vmul.f32 %v797, %v813
        %v822 = vmul.f32 %v798, %v813
        %v823 = vadd.f32 %v754, %v815
        %v824 = vadd.f32 %v755, %v816
        %v825 = vadd.f32 %v756, %v817
        %v826 = vadd.f32 %v757, %v818
        %v827 = vadd.f32 %v758, %v819
        %v828 = vadd.f32 %v759, %v820
        %v829 = vadd.f32 %v760, %v821
        %v830 = vadd.f32 %v761, %v822
        %831 = vrot.lane.b32.xlu0 %v270, 111
        %v832 = vpop.permute.xlu0 %831
        %833 = vrot.lane.b32.xlu0 %v274, 111
        %v834 = vpop.permute.xlu0 %833
        %835 = vrot.lane.b32.xlu0 %v280, 111
        %v836 = vpop.permute.xlu0 %835
        %837 = vrot.lane.b32.xlu0 %v284, 111
        %v838 = vpop.permute.xlu0 %837
        %839 = vrot.lane.b32.xlu0 %v272, 111
        %v840 = vpop.permute.xlu0 %839
        %841 = vrot.lane.b32.xlu0 %v276, 111
        %v842 = vpop.permute.xlu0 %841
        %843 = vrot.lane.b32.xlu0 %v282, 111
        %v844 = vpop.permute.xlu0 %843
        %845 = vrot.lane.b32.xlu0 %v286, 111
        %v846 = vpop.permute.xlu0 %845
        %vm847 = vcmp.lt.s32.totalorder %v289, 111
        %v848 = vsel %vm847, %v832, %v840
        %v849 = vsel %vm847, %v834, %v842
        %v850 = vsel %vm847, %v836, %v844
        %v851 = vsel %vm847, %v838, %v846
        %v852 = vsel %vm847, %v840, %v832
        %v853 = vsel %vm847, %v842, %v834
        %v854 = vsel %vm847, %v844, %v836
        %v855 = vsel %vm847, %v846, %v838
        %vm856 = vmand %vm304, %vm308
        %vm857 = vmand %vm305, %vm309
        %v858 = vsel %vm856, 1, 0
        %v859 = vsel %vm857, 1, 0
        %vm860 = vcmp.eq.s32.totalorder %v858, 1
        %vm861 = vcmp.eq.s32.totalorder %v859, 1
        %v862 = vsel %vm860, %v848, 0.0
        %v863 = vsel %vm861, %v852, 0.0
        %v864 = vsel %vm860, %v849, 0.0
        %v865 = vsel %vm861, %v853, 0.0
        %v866 = vsel %vm860, %v850, 0.0
        %v867 = vsel %vm861, %v854, 0.0
        %v868 = vsel %vm860, %v851, 0.0
        %v869 = vsel %vm861, %v855, 0.0
        %870 = vset.pattern.permute.xlu0 8
        %871 = vperm.xlu0 %870, %v310
        %v872 = vpop.permute.xlu0 %871
        %874 = vset.pattern.permute.xlu0 8
        %875 = vperm.xlu0 %874, %v311
        %v876 = vpop.permute.xlu0 %875
        %878 = vset.pattern.permute.xlu0 8
        %879 = vperm.xlu0 %878, %v312
        %v880 = vpop.permute.xlu0 %879
        %882 = vset.pattern.permute.xlu0 8
        %883 = vperm.xlu0 %882, %v313
        %v884 = vpop.permute.xlu0 %883
        %v886 = vmul.f32 %v862, %v872
        %v887 = vmul.f32 %v863, %v872
        %v888 = vmul.f32 %v864, %v876
        %v889 = vmul.f32 %v865, %v876
        %v890 = vmul.f32 %v866, %v880
        %v891 = vmul.f32 %v867, %v880
        %v892 = vmul.f32 %v868, %v884
        %v893 = vmul.f32 %v869, %v884
        %v894 = vadd.f32 %v823, %v886
        %v895 = vadd.f32 %v824, %v887
        %v896 = vadd.f32 %v825, %v888
        %v897 = vadd.f32 %v826, %v889
        %v898 = vadd.f32 %v827, %v890
        %v899 = vadd.f32 %v828, %v891
        %v900 = vadd.f32 %v829, %v892
        %v901 = vadd.f32 %v830, %v893
        %v902 = vrcp.pop 2.0
        %v903 = vmul.f32 %v296, %v902
        %v904 = vmul.f32 %v297, %v902
        %v905 = vfloor.f32 %v903
        %v906 = vfloor.f32 %v904
        %v907 = vmul.f32 %v905, 8.0
        %v908 = vmul.f32 %v906, 8.0
        %v909 = vmul.f32 %v300, %v902
        %v910 = vmul.f32 %v301, %v902
        %v911 = vfloor.f32 %v909
        %v912 = vfloor.f32 %v910
        %v913 = vadd.f32 %v907, %v911
        %v914 = vadd.f32 %v908, %v912
        %v915 = vlaneseq
        %v916 = vshrl.u32 %v915, 7
        %v917 = vadd.s32 %v916, 8
        %v918 = vadd.s32 %v916, 16
        %v919 = vadd.s32 %v916, 24
        %v920 = vadd.s32 %v916, 32
        %v921 = vadd.s32 %v916, 40
        %v922 = vadd.s32 %v916, 48
        %v923 = vadd.s32 %v916, 56
        %v924 = vcvt.s32.f32 %v916
        %v925 = vcvt.s32.f32 %v917
        %v926 = vcvt.s32.f32 %v918
        %v927 = vcvt.s32.f32 %v919
        %v928 = vcvt.s32.f32 %v920
        %v929 = vcvt.s32.f32 %v921
        %v930 = vcvt.s32.f32 %v922
        %v931 = vcvt.s32.f32 %v923
        %vm932 = vcmp.eq.f32.partialorder %v913, %v924
        %vm933 = vcmp.eq.f32.partialorder %v914, %v924
        %vm934 = vcmp.eq.f32.partialorder %v913, %v925
        %vm935 = vcmp.eq.f32.partialorder %v914, %v925
        %vm936 = vcmp.eq.f32.partialorder %v913, %v926
        %vm937 = vcmp.eq.f32.partialorder %v914, %v926
        %vm938 = vcmp.eq.f32.partialorder %v913, %v927
        %vm939 = vcmp.eq.f32.partialorder %v914, %v927
        %vm940 = vcmp.eq.f32.partialorder %v913, %v928
        %vm941 = vcmp.eq.f32.partialorder %v914, %v928
        %vm942 = vcmp.eq.f32.partialorder %v913, %v929
        %vm943 = vcmp.eq.f32.partialorder %v914, %v929
        %vm944 = vcmp.eq.f32.partialorder %v913, %v930
        %vm945 = vcmp.eq.f32.partialorder %v914, %v930
        %vm946 = vcmp.eq.f32.partialorder %v913, %v931
        %vm947 = vcmp.eq.f32.partialorder %v914, %v931
        %v948 = vsel %vm932, 1, 0
        %v949 = vsel %vm933, 1, 0
        %v950 = vsel %vm934, 1, 0
        %v951 = vsel %vm935, 1, 0
        %v952 = vsel %vm936, 1, 0
        %v953 = vsel %vm937, 1, 0
        %v954 = vsel %vm938, 1, 0
        %v955 = vsel %vm939, 1, 0
        %v956 = vsel %vm940, 1, 0
        %v957 = vsel %vm941, 1, 0
        %v958 = vsel %vm942, 1, 0
        %v959 = vsel %vm943, 1, 0
        %v960 = vsel %vm944, 1, 0
        %v961 = vsel %vm945, 1, 0
        %v962 = vsel %vm946, 1, 0
        %v963 = vsel %vm947, 1, 0
        %v964 = vcvt.s32.f32 %v948
        %v965 = vcvt.s32.f32 %v949
        %v966 = vcvt.s32.f32 %v950
        %v967 = vcvt.s32.f32 %v951
        %v968 = vcvt.s32.f32 %v952
        %v969 = vcvt.s32.f32 %v953
        %v970 = vcvt.s32.f32 %v954
        %v971 = vcvt.s32.f32 %v955
        %v972 = vcvt.s32.f32 %v956
        %v973 = vcvt.s32.f32 %v957
        %v974 = vcvt.s32.f32 %v958
        %v975 = vcvt.s32.f32 %v959
        %v976 = vcvt.s32.f32 %v960
        %v977 = vcvt.s32.f32 %v961
        %v978 = vcvt.s32.f32 %v962
        %v979 = vcvt.s32.f32 %v963
        %v980 = vpack.c.bf16 %v966, %v964
        %v981 = vpack.c.bf16 %v967, %v965
        %v982 = vpack.c.bf16 %v970, %v968
        %v983 = vpack.c.bf16 %v971, %v969
        %v984 = vpack.c.bf16 %v974, %v972
        %v985 = vpack.c.bf16 %v975, %v973
        %v986 = vpack.c.bf16 %v978, %v976
        %v987 = vpack.c.bf16 %v979, %v977
        %v988 = vpack.c.bf16 %v900, %v900
        %v989 = vpack.c.bf16 %v901, %v901
        %990 = vmatprep.subr.bf16.mxu0 %v981
        %991 = vmatpush1.bf16.xpose.msra.mxu0 %v980
        %992 = vmatprep.subr.bf16.mxu0 %v983
        %993 = vmatpush1.bf16.xpose.msra.mxu0 %v982
        %994 = vmatprep.subr.bf16.mxu0 %v985
        %995 = vmatpush1.bf16.xpose.msra.mxu0 %v984
        %996 = vmatprep.subr.bf16.mxu0 %v987
        %997 = vmatpush1.bf16.xpose.msra.mxu0 %v986
        %998 = vmatprep.subr.bf16.mxu0 0
        %999 = vmatpush1.bf16.xpose.msra.mxu0 0
        %1000 = vmatprep.subr.bf16.mxu0 0
        %1001 = vmatpush1.bf16.xpose.msra.mxu0 0
        %1002 = vmatprep.subr.bf16.mxu0 0
        %1003 = vmatpush1.bf16.xpose.msra.mxu0 0
        %1004 = vmatprep.subr.bf16.mxu0 0
        %1005 = vmatpush1.bf16.xpose.msra.mxu0 0
        %1006 = vmatprep.subr.bf16.mxu0 0
        %1007 = vmatpush1.bf16.xpose.msra.mxu0 0
        %1008 = vmatprep.subr.bf16.mxu0 0
        %1009 = vmatpush1.bf16.xpose.msra.mxu0 0
        %1010 = vmatprep.subr.bf16.mxu0 0
        %1011 = vmatpush1.bf16.xpose.msra.mxu0 0
        %1012 = vmatprep.subr.bf16.mxu0 0
        %1013 = vmatpush1.bf16.xpose.msra.mxu0 0
        %1014 = vmatprep.subr.bf16.mxu0 0
        %1015 = vmatpush1.bf16.xpose.msra.mxu0 0
        %1016 = vmatprep.subr.bf16.mxu0 0
        %1017 = vmatpush1.bf16.xpose.msra.mxu0 0
        %1018 = vmatprep.subr.bf16.mxu0 0
        %1019 = vmatpush1.bf16.xpose.msra.mxu0 0
        %1020 = vmatprep.subr.bf16.mxu0 0
        %1021 = vmatpush1.bf16.xpose.msra.mxu0 0
        %1022 = vmatprep.mubr.bf16.mxu0 %v989
        %1023 = vmatmul.mubr.bf16.gmra.mrb[0].mxu0 %v988
        %v1024 = vpop.f32.mrb[0].mxu0
        %v1025 = vadd.f32 0.0, %v1024
        %v1026 = vpop.f32.mrb[0].mxu0
        %v1027 = vpop.f32.mrb[0].mxu0
        %v1028 = vpop.f32.mrb[0].mxu0
        %1029 = vdwg.mxu0
        %v1030 = vmul.f32 %v1025, 0.25
        %v1031 = vpack.c.bf16 %v898, %v898
        %v1032 = vpack.c.bf16 %v899, %v899
        %v1033 = vmul.f32 %v894, %v894
        %v1034 = vmul.f32 %v895, %v895
        %v1035 = vmul.f32 %v896, %v896
        %v1036 = vmul.f32 %v897, %v897
        %s1037 = sld [smem:[#allocation2]]
        %v1038 = vsel %vm228, %v1033, 0.0
        %v1039 = vrot.slane %v1038, 4
        %v1040 = vadd.f32 %v1038, %v1039
        %v1041 = vrot.slane %v1040, 2
        %v1042 = vadd.f32 %v1040, %v1041
        %v1043 = vrot.slane %v1042, 1
        %v1044 = vadd.f32 %v1042, %v1043
        %v1045 = vsel %vm228, %v1034, 0.0
        %v1046 = vrot.slane %v1045, 4
        %v1047 = vadd.f32 %v1045, %v1046
        %v1048 = vrot.slane %v1047, 2
        %v1049 = vadd.f32 %v1047, %v1048
        %v1050 = vrot.slane %v1049, 1
        %v1051 = vadd.f32 %v1049, %v1050
        %v1052 = vrsqrt.pop %v1044
        %v1053 = vmul.f32 %v1044, %v1052
        %vm1054 = vcmp.eq.f32.partialorder %v1044, inf
        %v1055 = vsel %vm1054, %v1044, %v1053
        %vm1056 = vcmp.eq.f32.partialorder %v1044, 0.0
        %v1057 = vand.u32 %v1044, 2147483648
        %v1058 = vsel %vm1056, %v1057, %v1055
        %v1059 = vrsqrt.pop %v1051
        %v1060 = vmul.f32 %v1051, %v1059
        %vm1061 = vcmp.eq.f32.partialorder %v1051, inf
        %v1062 = vsel %vm1061, %v1051, %v1060
        %vm1063 = vcmp.eq.f32.partialorder %v1051, 0.0
        %v1064 = vand.u32 %v1051, 2147483648
        %v1065 = vsel %vm1063, %v1064, %v1062
        %v1066 = vmax.f32 %v1058, 1e-12
        %v1067 = vmax.f32 %v1065, 1e-12
        %v1068 = vrcp.pop %v1066
        %v1069 = vmul.f32 1.0, %v1068
        %v1070 = vrcp.pop %v1067
        %v1071 = vmul.f32 1.0, %v1070
        %v1072 = vsel %vm228, %v1035, 0.0
        %v1073 = vrot.slane %v1072, 4
        %v1074 = vadd.f32 %v1072, %v1073
        %v1075 = vrot.slane %v1074, 2
        %v1076 = vadd.f32 %v1074, %v1075
        %v1077 = vrot.slane %v1076, 1
        %v1078 = vadd.f32 %v1076, %v1077
        %v1079 = vsel %vm228, %v1036, 0.0
        %v1080 = vrot.slane %v1079, 4
        %v1081 = vadd.f32 %v1079, %v1080
        %v1082 = vrot.slane %v1081, 2
        %v1083 = vadd.f32 %v1081, %v1082
        %v1084 = vrot.slane %v1083, 1
        %v1085 = vadd.f32 %v1083, %v1084
        %v1086 = vrsqrt.pop %v1078
        %v1087 = vmul.f32 %v1078, %v1086
        %vm1088 = vcmp.eq.f32.partialorder %v1078, inf
        %v1089 = vsel %vm1088, %v1078, %v1087
        %vm1090 = vcmp.eq.f32.partialorder %v1078, 0.0
        %v1091 = vand.u32 %v1078, 2147483648
        %v1092 = vsel %vm1090, %v1091, %v1089
        %v1093 = vrsqrt.pop %v1085
        %v1094 = vmul.f32 %v1085, %v1093
        %vm1095 = vcmp.eq.f32.partialorder %v1085, inf
        %v1096 = vsel %vm1095, %v1085, %v1094
        %vm1097 = vcmp.eq.f32.partialorder %v1085, 0.0
        %v1098 = vand.u32 %v1085, 2147483648
        %v1099 = vsel %vm1097, %v1098, %v1096
        %v1100 = vmax.f32 %v1092, 1e-12
        %v1101 = vmax.f32 %v1099, 1e-12
        %v1102 = vrcp.pop %v1100
        %v1103 = vmul.f32 1.0, %v1102
        %v1104 = vrcp.pop %v1101
        %v1105 = vmul.f32 1.0, %v1104
        %v1106 = vmul.f32 %v894, %v1069
        %v1107 = vmul.f32 %v895, %v1071
        %v1108 = vpack.c.bf16 %v1106, %v1106
        %v1109 = vpack.c.bf16 %v1107, %v1107
        %v1110 = vmul.f32 %v896, %v1103
        %v1111 = vmul.f32 %v897, %v1105
        %v1112 = vpack.c.bf16 %v1110, %v1110
        %v1113 = vpack.c.bf16 %v1111, %v1111
        %v1114 = vpack.c.bf16 %v1030, %v1030
        %1115 = vxpose.xlu0.c.b16.start [1/8] %v1108, 128
        %1116 = vxpose.xlu0.c.b16.cont [2/8] 0, 128
        %1117 = vxpose.xlu0.c.b16.cont [3/8] 0, 128
        %1118 = vxpose.xlu0.c.b16.cont [4/8] 0, 128
        %1119 = vxpose.xlu0.c.b16.cont [5/8] 0, 128
        %1120 = vxpose.xlu0.c.b16.cont [6/8] 0, 128
        %1121 = vxpose.xlu0.c.b16.cont [7/8] 0, 128
        %1122 = vxpose.xlu0.c.b16.end [8/8] 0, 128
        %v1123 = vpop.trf.xlu0
        %v1124 = vpop.trf.xlu0
        %v1125 = vpop.trf.xlu0
        %v1126 = vpop.trf.xlu0
        %v1127 = vpop.trf.xlu0
        %v1128 = vpop.trf.xlu0
        %v1129 = vpop.trf.xlu0
        %v1130 = vpop.trf.xlu0
        %1131 = vxpose.xlu0.c.b16.start [1/8] %v1109, 128
        %1132 = vxpose.xlu0.c.b16.cont [2/8] 0, 128
        %1133 = vxpose.xlu0.c.b16.cont [3/8] 0, 128
        %1134 = vxpose.xlu0.c.b16.cont [4/8] 0, 128
        %1135 = vxpose.xlu0.c.b16.cont [5/8] 0, 128
        %1136 = vxpose.xlu0.c.b16.cont [6/8] 0, 128
        %1137 = vxpose.xlu0.c.b16.cont [7/8] 0, 128
        %1138 = vxpose.xlu0.c.b16.end [8/8] 0, 128
        %v1139 = vpop.trf.xlu0
        %v1140 = vpop.trf.xlu0
        %v1141 = vpop.trf.xlu0
        %v1142 = vpop.trf.xlu0
        %v1143 = vpop.trf.xlu0
        %v1144 = vpop.trf.xlu0
        %v1145 = vpop.trf.xlu0
        %v1146 = vpop.trf.xlu0
        %vm1147 = vcmask 31744
        %v1149 = vsel %vm1147, %v1123, 0
        %v1152 = vsel %vm1147, %v1124, 0
        %v1155 = vsel %vm1147, %v1125, 0
        %v1158 = vsel %vm1147, %v1126, 0
        %v1161 = vsel %vm1147, %v1127, 0
        %v1164 = vsel %vm1147, %v1128, 0
        %v1167 = vsel %vm1147, %v1129, 0
        %v1170 = vsel %vm1147, %v1130, 0
        %v1173 = vsel %vm1147, %v1139, 0
        %v1176 = vsel %vm1147, %v1140, 0
        %v1179 = vsel %vm1147, %v1141, 0
        %v1182 = vsel %vm1147, %v1142, 0
        %v1185 = vsel %vm1147, %v1143, 0
        %v1188 = vsel %vm1147, %v1144, 0
        %v1191 = vsel %vm1147, %v1145, 0
        %v1194 = vsel %vm1147, %v1146, 0
        %vm1196 = vcmask 1041408
        %v1198 = vsel %vm1196, %v1114, 0
        %1200 = vmatprep.subr.bf16.mxu0 0
        %1201 = vmatpush1.bf16.msra.mxu0 %v1198
        %1202 = vmatprep.subr.bf16.mxu0 0
        %1203 = vmatpush1.bf16.msra.mxu0 0
        %1204 = vmatprep.subr.bf16.mxu0 0
        %1205 = vmatpush1.bf16.msra.mxu0 0
        %1206 = vmatprep.subr.bf16.mxu0 0
        %1207 = vmatpush1.bf16.msra.mxu0 0
        %1208 = vmatprep.subr.bf16.mxu0 0
        %1209 = vmatpush1.bf16.msra.mxu0 0
        %1210 = vmatprep.subr.bf16.mxu0 0
        %1211 = vmatpush1.bf16.msra.mxu0 0
        %1212 = vmatprep.subr.bf16.mxu0 0
        %1213 = vmatpush1.bf16.msra.mxu0 0
        %1214 = vmatprep.subr.bf16.mxu0 0
        %1215 = vmatpush1.bf16.msra.mxu0 0
        %1216 = vmatprep.subr.bf16.mxu0 0
        %1217 = vmatpush1.bf16.msra.mxu0 0
        %1218 = vmatprep.subr.bf16.mxu0 0
        %1219 = vmatpush1.bf16.msra.mxu0 0
        %1220 = vmatprep.subr.bf16.mxu0 0
        %1221 = vmatpush1.bf16.msra.mxu0 0
        %1222 = vmatprep.subr.bf16.mxu0 0
        %1223 = vmatpush1.bf16.msra.mxu0 0
        %1224 = vmatprep.subr.bf16.mxu0 0
        %1225 = vmatpush1.bf16.msra.mxu0 0
        %1226 = vmatprep.subr.bf16.mxu0 0
        %1227 = vmatpush1.bf16.msra.mxu0 0
        %1228 = vmatprep.subr.bf16.mxu0 0
        %1229 = vmatpush1.bf16.msra.mxu0 0
        %1230 = vmatprep.subr.bf16.mxu0 0
        %1231 = vmatpush1.bf16.msra.mxu0 0
        %1232 = vmatprep.mubr.bf16.mxu0 0
        %1233 = vmatmul.mubr.bf16.gmra.mrb[0].mxu0 %v1149
        %v1234 = vpop.f32.mrb[0].mxu0
        %v1235 = vadd.f32 0.0, %v1234
        %v1236 = vpop.f32.mrb[0].mxu0
        %v1237 = vpop.f32.mrb[0].mxu0
        %v1238 = vadd.f32 0.0, %v1237
        %v1239 = vpop.f32.mrb[0].mxu0
        %1240 = vmatprep.mubr.bf16.mxu0 0
        %1241 = vmatmul.mubr.bf16.gmra.mrb[0].mxu0 %v1152
        %v1242 = vpop.f32.mrb[0].mxu0
        %v1243 = vadd.f32 0.0, %v1242
        %v1244 = vpop.f32.mrb[0].mxu0
        %v1245 = vpop.f32.mrb[0].mxu0
        %v1246 = vadd.f32 0.0, %v1245
        %v1247 = vpop.f32.mrb[0].mxu0
        %1248 = vmatprep.mubr.bf16.mxu0 0
        %1249 = vmatmul.mubr.bf16.gmra.mrb[0].mxu0 %v1155
        %v1250 = vpop.f32.mrb[0].mxu0
        %v1251 = vadd.f32 0.0, %v1250
        %v1252 = vpop.f32.mrb[0].mxu0
        %v1253 = vpop.f32.mrb[0].mxu0
        %v1254 = vadd.f32 0.0, %v1253
        %v1255 = vpop.f32.mrb[0].mxu0
        %1256 = vmatprep.mubr.bf16.mxu0 0
        %1257 = vmatmul.mubr.bf16.gmra.mrb[0].mxu0 %v1158
        %v1258 = vpop.f32.mrb[0].mxu0
        %v1259 = vadd.f32 0.0, %v1258
        %v1260 = vpop.f32.mrb[0].mxu0
        %v1261 = vpop.f32.mrb[0].mxu0
        %v1262 = vadd.f32 0.0, %v1261
        %v1263 = vpop.f32.mrb[0].mxu0
        %1264 = vmatprep.mubr.bf16.mxu0 0
        %1265 = vmatmul.mubr.bf16.gmra.mrb[0].mxu0 %v1161
        %v1266 = vpop.f32.mrb[0].mxu0
        %v1267 = vadd.f32 0.0, %v1266
        %v1268 = vpop.f32.mrb[0].mxu0
        %v1269 = vpop.f32.mrb[0].mxu0
        %v1270 = vadd.f32 0.0, %v1269
        %v1271 = vpop.f32.mrb[0].mxu0
        %1272 = vmatprep.mubr.bf16.mxu0 0
        %1273 = vmatmul.mubr.bf16.gmra.mrb[0].mxu0 %v1164
        %v1274 = vpop.f32.mrb[0].mxu0
        %v1275 = vadd.f32 0.0, %v1274
        %v1276 = vpop.f32.mrb[0].mxu0
        %v1277 = vpop.f32.mrb[0].mxu0
        %v1278 = vadd.f32 0.0, %v1277
        %v1279 = vpop.f32.mrb[0].mxu0
        %1280 = vmatprep.mubr.bf16.mxu0 0
        %1281 = vmatmul.mubr.bf16.gmra.mrb[0].mxu0 %v1167
        %v1282 = vpop.f32.mrb[0].mxu0
        %v1283 = vadd.f32 0.0, %v1282
        %v1284 = vpop.f32.mrb[0].mxu0
        %v1285 = vpop.f32.mrb[0].mxu0
        %v1286 = vadd.f32 0.0, %v1285
        %v1287 = vpop.f32.mrb[0].mxu0
        %1288 = vmatprep.mubr.bf16.mxu0 0
        %1289 = vmatmul.mubr.bf16.gmra.mrb[0].mxu0 %v1170
        %v1290 = vpop.f32.mrb[0].mxu0
        %v1291 = vadd.f32 0.0, %v1290
        %v1292 = vpop.f32.mrb[0].mxu0
        %v1293 = vpop.f32.mrb[0].mxu0
        %v1294 = vadd.f32 0.0, %v1293
        %v1295 = vpop.f32.mrb[0].mxu0
        %1296 = vmatprep.mubr.bf16.mxu0 0
        %1297 = vmatmul.mubr.bf16.gmra.mrb[0].mxu0 %v1173
        %v1298 = vpop.f32.mrb[0].mxu0
        %v1299 = vadd.f32 0.0, %v1298
        %v1300 = vpop.f32.mrb[0].mxu0
        %v1301 = vpop.f32.mrb[0].mxu0
        %v1302 = vadd.f32 0.0, %v1301
        %v1303 = vpop.f32.mrb[0].mxu0
        %1304 = vmatprep.mubr.bf16.mxu0 0
        %1305 = vmatmul.mubr.bf16.gmra.mrb[0].mxu0 %v1176
        %v1306 = vpop.f32.mrb[0].mxu0
        %v1307 = vadd.f32 0.0, %v1306
        %v1308 = vpop.f32.mrb[0].mxu0
        %v1309 = vpop.f32.mrb[0].mxu0
        %v1310 = vadd.f32 0.0, %v1309
        %v1311 = vpop.f32.mrb[0].mxu0
        %1312 = vmatprep.mubr.bf16.mxu0 0
        %1313 = vmatmul.mubr.bf16.gmra.mrb[0].mxu0 %v1179
        %v1314 = vpop.f32.mrb[0].mxu0
        %v1315 = vadd.f32 0.0, %v1314
        %v1316 = vpop.f32.mrb[0].mxu0
        %v1317 = vpop.f32.mrb[0].mxu0
        %v1318 = vadd.f32 0.0, %v1317
        %v1319 = vpop.f32.mrb[0].mxu0
        %1320 = vmatprep.mubr.bf16.mxu0 0
        %1321 = vmatmul.mubr.bf16.gmra.mrb[0].mxu0 %v1182
        %v1322 = vpop.f32.mrb[0].mxu0
        %v1323 = vadd.f32 0.0, %v1322
        %v1324 = vpop.f32.mrb[0].mxu0
        %v1325 = vpop.f32.mrb[0].mxu0
        %v1326 = vadd.f32 0.0, %v1325
        %v1327 = vpop.f32.mrb[0].mxu0
        %1328 = vmatprep.mubr.bf16.mxu0 0
        %1329 = vmatmul.mubr.bf16.gmra.mrb[0].mxu0 %v1185
        %v1330 = vpop.f32.mrb[0].mxu0
        %v1331 = vadd.f32 0.0, %v1330
        %v1332 = vpop.f32.mrb[0].mxu0
        %v1333 = vpop.f32.mrb[0].mxu0
        %v1334 = vadd.f32 0.0, %v1333
        %v1335 = vpop.f32.mrb[0].mxu0
        %1336 = vmatprep.mubr.bf16.mxu0 0
        %1337 = vmatmul.mubr.bf16.gmra.mrb[0].mxu0 %v1188
        %v1338 = vpop.f32.mrb[0].mxu0
        %v1339 = vadd.f32 0.0, %v1338
        %v1340 = vpop.f32.mrb[0].mxu0
        %v1341 = vpop.f32.mrb[0].mxu0
        %v1342 = vadd.f32 0.0, %v1341
        %v1343 = vpop.f32.mrb[0].mxu0
        %1344 = vmatprep.mubr.bf16.mxu0 0
        %1345 = vmatmul.mubr.bf16.gmra.mrb[0].mxu0 %v1191
        %v1346 = vpop.f32.mrb[0].mxu0
        %v1347 = vadd.f32 0.0, %v1346
        %v1348 = vpop.f32.mrb[0].mxu0
        %v1349 = vpop.f32.mrb[0].mxu0
        %v1350 = vadd.f32 0.0, %v1349
        %v1351 = vpop.f32.mrb[0].mxu0
        %1352 = vmatprep.mubr.bf16.mxu0 0
        %1353 = vmatmul.mubr.bf16.gmra.mrb[0].mxu0 %v1194
        %v1354 = vpop.f32.mrb[0].mxu0
        %v1355 = vadd.f32 0.0, %v1354
        %v1356 = vpop.f32.mrb[0].mxu0
        %v1357 = vpop.f32.mrb[0].mxu0
        %v1358 = vadd.f32 0.0, %v1357
        %v1359 = vpop.f32.mrb[0].mxu0
        %1360 = vdwg.mxu0
        %v1361 = vstv %s1037
        %v1362 = vmul.f32 %v1235, %v1361
        %v1363 = vmul.f32 %v1238, %v1361
        %v1364 = vmul.f32 %v1243, %v1361
        %v1365 = vmul.f32 %v1246, %v1361
        %v1366 = vmul.f32 %v1251, %v1361
        %v1367 = vmul.f32 %v1254, %v1361
        %v1368 = vmul.f32 %v1259, %v1361
        %v1369 = vmul.f32 %v1262, %v1361
        %v1370 = vmul.f32 %v1267, %v1361
        %v1371 = vmul.f32 %v1270, %v1361
        %v1372 = vmul.f32 %v1275, %v1361
        %v1373 = vmul.f32 %v1278, %v1361
        %v1374 = vmul.f32 %v1283, %v1361
        %v1375 = vmul.f32 %v1286, %v1361
        %v1376 = vmul.f32 %v1291, %v1361
        %v1377 = vmul.f32 %v1294, %v1361
        %v1378 = vmul.f32 %v1299, %v1361
        %v1379 = vmul.f32 %v1302, %v1361
        %v1380 = vmul.f32 %v1307, %v1361
        %v1381 = vmul.f32 %v1310, %v1361
        %v1382 = vmul.f32 %v1315, %v1361
        %v1383 = vmul.f32 %v1318, %v1361
        %v1384 = vmul.f32 %v1323, %v1361
        %v1385 = vmul.f32 %v1326, %v1361
        %v1386 = vmul.f32 %v1331, %v1361
        %v1387 = vmul.f32 %v1334, %v1361
        %v1388 = vmul.f32 %v1339, %v1361
        %v1389 = vmul.f32 %v1342, %v1361
        %v1390 = vmul.f32 %v1347, %v1361
        %v1391 = vmul.f32 %v1350, %v1361
        %v1392 = vmul.f32 %v1355, %v1361
        %v1393 = vmul.f32 %v1358, %v1361
        %vm1394 = vcmask 523264
        %v1395 = vsel %vm1394, %v1362, -inf
        %1396 = vmax.xlane.f32.xlu0 %v1395
        %v1397 = vpop.xlane.xlu0 %1396
        %v1398 = vsel %vm1394, %v1363, -inf
        %1399 = vmax.xlane.f32.xlu0 %v1398
        %v1400 = vpop.xlane.xlu0 %1399
        %v1401 = vsel %vm1394, %v1364, -inf
        %1402 = vmax.xlane.f32.xlu0 %v1401
        %v1403 = vpop.xlane.xlu0 %1402
        %v1404 = vsel %vm1394, %v1365, -inf
        %1405 = vmax.xlane.f32.xlu0 %v1404
        %v1406 = vpop.xlane.xlu0 %1405
        %v1407 = vsel %vm1394, %v1366, -inf
        %1408 = vmax.xlane.f32.xlu0 %v1407
        %v1409 = vpop.xlane.xlu0 %1408
        %v1410 = vsel %vm1394, %v1367, -inf
        %1411 = vmax.xlane.f32.xlu0 %v1410
        %v1412 = vpop.xlane.xlu0 %1411
        %v1413 = vsel %vm1394, %v1368, -inf
        %1414 = vmax.xlane.f32.xlu0 %v1413
        %v1415 = vpop.xlane.xlu0 %1414
        %v1416 = vsel %vm1394, %v1369, -inf
        %1417 = vmax.xlane.f32.xlu0 %v1416
        %v1418 = vpop.xlane.xlu0 %1417
        %v1419 = vsel %vm1394, %v1370, -inf
        %1420 = vmax.xlane.f32.xlu0 %v1419
        %v1421 = vpop.xlane.xlu0 %1420
        %v1422 = vsel %vm1394, %v1371, -inf
        %1423 = vmax.xlane.f32.xlu0 %v1422
        %v1424 = vpop.xlane.xlu0 %1423
        %v1425 = vsel %vm1394, %v1372, -inf
        %1426 = vmax.xlane.f32.xlu0 %v1425
        %v1427 = vpop.xlane.xlu0 %1426
        %v1428 = vsel %vm1394, %v1373, -inf
        %1429 = vmax.xlane.f32.xlu0 %v1428
        %v1430 = vpop.xlane.xlu0 %1429
        %v1431 = vsel %vm1394, %v1374, -inf
        %1432 = vmax.xlane.f32.xlu0 %v1431
        %v1433 = vpop.xlane.xlu0 %1432
        %v1434 = vsel %vm1394, %v1375, -inf
        %1435 = vmax.xlane.f32.xlu0 %v1434
        %v1436 = vpop.xlane.xlu0 %1435
        %v1437 = vsel %vm1394, %v1376, -inf
        %1438 = vmax.xlane.f32.xlu0 %v1437
        %v1439 = vpop.xlane.xlu0 %1438
        %v1440 = vsel %vm1394, %v1377, -inf
        %1441 = vmax.xlane.f32.xlu0 %v1440
        %v1442 = vpop.xlane.xlu0 %1441
        %v1443 = vsel %vm1394, %v1378, -inf
        %1444 = vmax.xlane.f32.xlu0 %v1443
        %v1445 = vpop.xlane.xlu0 %1444
        %v1446 = vsel %vm1394, %v1379, -inf
        %1447 = vmax.xlane.f32.xlu0 %v1446
        %v1448 = vpop.xlane.xlu0 %1447
        %v1449 = vsel %vm1394, %v1380, -inf
        %1450 = vmax.xlane.f32.xlu0 %v1449
        %v1451 = vpop.xlane.xlu0 %1450
        %v1452 = vsel %vm1394, %v1381, -inf
        %1453 = vmax.xlane.f32.xlu0 %v1452
        %v1454 = vpop.xlane.xlu0 %1453
        %v1455 = vsel %vm1394, %v1382, -inf
        %1456 = vmax.xlane.f32.xlu0 %v1455
        %v1457 = vpop.xlane.xlu0 %1456
        %v1458 = vsel %vm1394, %v1383, -inf
        %1459 = vmax.xlane.f32.xlu0 %v1458
        %v1460 = vpop.xlane.xlu0 %1459
        %v1461 = vsel %vm1394, %v1384, -inf
        %1462 = vmax.xlane.f32.xlu0 %v1461
        %v1463 = vpop.xlane.xlu0 %1462
        %v1464 = vsel %vm1394, %v1385, -inf
        %1465 = vmax.xlane.f32.xlu0 %v1464
        %v1466 = vpop.xlane.xlu0 %1465
        %v1467 = vsel %vm1394, %v1386, -inf
        %1468 = vmax.xlane.f32.xlu0 %v1467
        %v1469 = vpop.xlane.xlu0 %1468
        %v1470 = vsel %vm1394, %v1387, -inf
        %1471 = vmax.xlane.f32.xlu0 %v1470
        %v1472 = vpop.xlane.xlu0 %1471
        %v1473 = vsel %vm1394, %v1388, -inf
        %1474 = vmax.xlane.f32.xlu0 %v1473
        %v1475 = vpop.xlane.xlu0 %1474
        %v1476 = vsel %vm1394, %v1389, -inf
        %1477 = vmax.xlane.f32.xlu0 %v1476
        %v1478 = vpop.xlane.xlu0 %1477
        %v1479 = vsel %vm1394, %v1390, -inf
        %1480 = vmax.xlane.f32.xlu0 %v1479
        %v1481 = vpop.xlane.xlu0 %1480
        %v1482 = vsel %vm1394, %v1391, -inf
        %1483 = vmax.xlane.f32.xlu0 %v1482
        %v1484 = vpop.xlane.xlu0 %1483
        %v1485 = vsel %vm1394, %v1392, -inf
        %1486 = vmax.xlane.f32.xlu0 %v1485
        %v1487 = vpop.xlane.xlu0 %1486
        %v1488 = vsel %vm1394, %v1393, -inf
        %1489 = vmax.xlane.f32.xlu0 %v1488
        %v1490 = vpop.xlane.xlu0 %1489
        %v1491 = vsub.f32 %v1362, %v1397
        %v1492 = vsub.f32 %v1363, %v1400
        %v1493 = vsub.f32 %v1364, %v1403
        %v1494 = vsub.f32 %v1365, %v1406
        %v1495 = vsub.f32 %v1366, %v1409
        %v1496 = vsub.f32 %v1367, %v1412
        %v1497 = vsub.f32 %v1368, %v1415
        %v1498 = vsub.f32 %v1369, %v1418
        %v1499 = vsub.f32 %v1370, %v1421
        %v1500 = vsub.f32 %v1371, %v1424
        %v1501 = vsub.f32 %v1372, %v1427
        %v1502 = vsub.f32 %v1373, %v1430
        %v1503 = vsub.f32 %v1374, %v1433
        %v1504 = vsub.f32 %v1375, %v1436
        %v1505 = vsub.f32 %v1376, %v1439
        %v1506 = vsub.f32 %v1377, %v1442
        %v1507 = vsub.f32 %v1378, %v1445
        %v1508 = vsub.f32 %v1379, %v1448
        %v1509 = vsub.f32 %v1380, %v1451
        %v1510 = vsub.f32 %v1381, %v1454
        %v1511 = vsub.f32 %v1382, %v1457
        %v1512 = vsub.f32 %v1383, %v1460
        %v1513 = vsub.f32 %v1384, %v1463
        %v1514 = vsub.f32 %v1385, %v1466
        %v1515 = vsub.f32 %v1386, %v1469
        %v1516 = vsub.f32 %v1387, %v1472
        %v1517 = vsub.f32 %v1388, %v1475
        %v1518 = vsub.f32 %v1389, %v1478
        %v1519 = vsub.f32 %v1390, %v1481
        %v1520 = vsub.f32 %v1391, %v1484
        %v1521 = vsub.f32 %v1392, %v1487
        %v1522 = vsub.f32 %v1393, %v1490
        %v1523 = vmul.f32 %v1491, 1.442695
        %v1524 = vpow.pop %v1523
        %v1525 = vmul.f32 %v1492, 1.442695
        %v1526 = vpow.pop %v1525
        %v1527 = vmul.f32 %v1493, 1.442695
        %v1528 = vpow.pop %v1527
        %v1529 = vmul.f32 %v1494, 1.442695
        %v1530 = vpow.pop %v1529
        %v1531 = vmul.f32 %v1495, 1.442695
        %v1532 = vpow.pop %v1531
        %v1533 = vmul.f32 %v1496, 1.442695
        %v1534 = vpow.pop %v1533
        %v1535 = vmul.f32 %v1497, 1.442695
        %v1536 = vpow.pop %v1535
        %v1537 = vmul.f32 %v1498, 1.442695
        %v1538 = vpow.pop %v1537
        %v1539 = vmul.f32 %v1499, 1.442695
        %v1540 = vpow.pop %v1539
        %v1541 = vmul.f32 %v1500, 1.442695
        %v1542 = vpow.pop %v1541
        %v1543 = vmul.f32 %v1501, 1.442695
        %v1544 = vpow.pop %v1543
        %v1545 = vmul.f32 %v1502, 1.442695
        %v1546 = vpow.pop %v1545
        %v1547 = vmul.f32 %v1503, 1.442695
        %v1548 = vpow.pop %v1547
        %v1549 = vmul.f32 %v1504, 1.442695
        %v1550 = vpow.pop %v1549
        %v1551 = vmul.f32 %v1505, 1.442695
        %v1552 = vpow.pop %v1551
        %v1553 = vmul.f32 %v1506, 1.442695
        %v1554 = vpow.pop %v1553
        %v1555 = vmul.f32 %v1507, 1.442695
        %v1556 = vpow.pop %v1555
        %v1557 = vmul.f32 %v1508, 1.442695
        %v1558 = vpow.pop %v1557
        %v1559 = vmul.f32 %v1509, 1.442695
        %v1560 = vpow.pop %v1559
        %v1561 = vmul.f32 %v1510, 1.442695
        %v1562 = vpow.pop %v1561
        %v1563 = vmul.f32 %v1511, 1.442695
        %v1564 = vpow.pop %v1563
        %v1565 = vmul.f32 %v1512, 1.442695
        %v1566 = vpow.pop %v1565
        %v1567 = vmul.f32 %v1513, 1.442695
        %v1568 = vpow.pop %v1567
        %v1569 = vmul.f32 %v1514, 1.442695
        %v1570 = vpow.pop %v1569
        %v1571 = vmul.f32 %v1515, 1.442695
        %v1572 = vpow.pop %v1571
        %v1573 = vmul.f32 %v1516, 1.442695
        %v1574 = vpow.pop %v1573
        %v1575 = vmul.f32 %v1517, 1.442695
        %v1576 = vpow.pop %v1575
        %v1577 = vmul.f32 %v1518, 1.442695
        %v1578 = vpow.pop %v1577
        %v1579 = vmul.f32 %v1519, 1.442695
        %v1580 = vpow.pop %v1579
        %v1581 = vmul.f32 %v1520, 1.442695
        %v1582 = vpow.pop %v1581
        %v1583 = vmul.f32 %v1521, 1.442695
        %v1584 = vpow.pop %v1583
        %v1585 = vmul.f32 %v1522, 1.442695
        %v1586 = vpow.pop %v1585
        %v1587 = vsel %vm1394, %v1524, 0.0
        %1588 = vadd.xlane.f32.xlu0 %v1587
        %v1589 = vpop.xlane.xlu0 %1588
        %v1590 = vsel %vm1394, %v1526, 0.0
        %1591 = vadd.xlane.f32.xlu0 %v1590
        %v1592 = vpop.xlane.xlu0 %1591
        %v1593 = vsel %vm1394, %v1528, 0.0
        %1594 = vadd.xlane.f32.xlu0 %v1593
        %v1595 = vpop.xlane.xlu0 %1594
        %v1596 = vsel %vm1394, %v1530, 0.0
        %1597 = vadd.xlane.f32.xlu0 %v1596
        %v1598 = vpop.xlane.xlu0 %1597
        %v1599 = vsel %vm1394, %v1532, 0.0
        %1600 = vadd.xlane.f32.xlu0 %v1599
        %v1601 = vpop.xlane.xlu0 %1600
        %v1602 = vsel %vm1394, %v1534, 0.0
        %1603 = vadd.xlane.f32.xlu0 %v1602
        %v1604 = vpop.xlane.xlu0 %1603
        %v1605 = vsel %vm1394, %v1536, 0.0
        %1606 = vadd.xlane.f32.xlu0 %v1605
        %v1607 = vpop.xlane.xlu0 %1606
        %v1608 = vsel %vm1394, %v1538, 0.0
        %1609 = vadd.xlane.f32.xlu0 %v1608
        %v1610 = vpop.xlane.xlu0 %1609
        %v1611 = vsel %vm1394, %v1540, 0.0
        %1612 = vadd.xlane.f32.xlu0 %v1611
        %v1613 = vpop.xlane.xlu0 %1612
        %v1614 = vsel %vm1394, %v1542, 0.0
        %1615 = vadd.xlane.f32.xlu0 %v1614
        %v1616 = vpop.xlane.xlu0 %1615
        %v1617 = vsel %vm1394, %v1544, 0.0
        %1618 = vadd.xlane.f32.xlu0 %v1617
        %v1619 = vpop.xlane.xlu0 %1618
        %v1620 = vsel %vm1394, %v1546, 0.0
        %1621 = vadd.xlane.f32.xlu0 %v1620
        %v1622 = vpop.xlane.xlu0 %1621
        %v1623 = vsel %vm1394, %v1548, 0.0
        %1624 = vadd.xlane.f32.xlu0 %v1623
        %v1625 = vpop.xlane.xlu0 %1624
        %v1626 = vsel %vm1394, %v1550, 0.0
        %1627 = vadd.xlane.f32.xlu0 %v1626
        %v1628 = vpop.xlane.xlu0 %1627
        %v1629 = vsel %vm1394, %v1552, 0.0
        %1630 = vadd.xlane.f32.xlu0 %v1629
        %v1631 = vpop.xlane.xlu0 %1630
        %v1632 = vsel %vm1394, %v1554, 0.0
        %1633 = vadd.xlane.f32.xlu0 %v1632
        %v1634 = vpop.xlane.xlu0 %1633
        %v1635 = vsel %vm1394, %v1556, 0.0
        %1636 = vadd.xlane.f32.xlu0 %v1635
        %v1637 = vpop.xlane.xlu0 %1636
        %v1638 = vsel %vm1394, %v1558, 0.0
        %1639 = vadd.xlane.f32.xlu0 %v1638
        %v1640 = vpop.xlane.xlu0 %1639
        %v1641 = vsel %vm1394, %v1560, 0.0
        %1642 = vadd.xlane.f32.xlu0 %v1641
        %v1643 = vpop.xlane.xlu0 %1642
        %v1644 = vsel %vm1394, %v1562, 0.0
        %1645 = vadd.xlane.f32.xlu0 %v1644
        %v1646 = vpop.xlane.xlu0 %1645
        %v1647 = vsel %vm1394, %v1564, 0.0
        %1648 = vadd.xlane.f32.xlu0 %v1647
        %v1649 = vpop.xlane.xlu0 %1648
        %v1650 = vsel %vm1394, %v1566, 0.0
        %1651 = vadd.xlane.f32.xlu0 %v1650
        %v1652 = vpop.xlane.xlu0 %1651
        %v1653 = vsel %vm1394, %v1568, 0.0
        %1654 = vadd.xlane.f32.xlu0 %v1653
        %v1655 = vpop.xlane.xlu0 %1654
        %v1656 = vsel %vm1394, %v1570, 0.0
        %1657 = vadd.xlane.f32.xlu0 %v1656
        %v1658 = vpop.xlane.xlu0 %1657
        %v1659 = vsel %vm1394, %v1572, 0.0
        %1660 = vadd.xlane.f32.xlu0 %v1659
        %v1661 = vpop.xlane.xlu0 %1660
        %v1662 = vsel %vm1394, %v1574, 0.0
        %1663 = vadd.xlane.f32.xlu0 %v1662
        %v1664 = vpop.xlane.xlu0 %1663
        %v1665 = vsel %vm1394, %v1576, 0.0
        %1666 = vadd.xlane.f32.xlu0 %v1665
        %v1667 = vpop.xlane.xlu0 %1666
        %v1668 = vsel %vm1394, %v1578, 0.0
        %1669 = vadd.xlane.f32.xlu0 %v1668
        %v1670 = vpop.xlane.xlu0 %1669
        %v1671 = vsel %vm1394, %v1580, 0.0
        %1672 = vadd.xlane.f32.xlu0 %v1671
        %v1673 = vpop.xlane.xlu0 %1672
        %v1674 = vsel %vm1394, %v1582, 0.0
        %1675 = vadd.xlane.f32.xlu0 %v1674
        %v1676 = vpop.xlane.xlu0 %1675
        %v1677 = vsel %vm1394, %v1584, 0.0
        %1678 = vadd.xlane.f32.xlu0 %v1677
        %v1679 = vpop.xlane.xlu0 %1678
        %v1680 = vsel %vm1394, %v1586, 0.0
        %1681 = vadd.xlane.f32.xlu0 %v1680
        %v1682 = vpop.xlane.xlu0 %1681
        %v1683 = vrcp.pop %v1589
        %v1684 = vmul.f32 1.0, %v1683
        %v1685 = vrcp.pop %v1592
        %v1686 = vmul.f32 1.0, %v1685
        %v1687 = vrcp.pop %v1595
        %v1688 = vmul.f32 1.0, %v1687
        %v1689 = vrcp.pop %v1598
        %v1690 = vmul.f32 1.0, %v1689
        %v1691 = vrcp.pop %v1601
        %v1692 = vmul.f32 1.0, %v1691
        %v1693 = vrcp.pop %v1604
        %v1694 = vmul.f32 1.0, %v1693
        %v1695 = vrcp.pop %v1607
        %v1696 = vmul.f32 1.0, %v1695
        %v1697 = vrcp.pop %v1610
        %v1698 = vmul.f32 1.0, %v1697
        %v1699 = vrcp.pop %v1613
        %v1700 = vmul.f32 1.0, %v1699
        %v1701 = vrcp.pop %v1616
        %v1702 = vmul.f32 1.0, %v1701
        %v1703 = vrcp.pop %v1619
        %v1704 = vmul.f32 1.0, %v1703
        %v1705 = vrcp.pop %v1622
        %v1706 = vmul.f32 1.0, %v1705
        %v1707 = vrcp.pop %v1625
        %v1708 = vmul.f32 1.0, %v1707
        %v1709 = vrcp.pop %v1628
        %v1710 = vmul.f32 1.0, %v1709
        %v1711 = vrcp.pop %v1631
        %v1712 = vmul.f32 1.0, %v1711
        %v1713 = vrcp.pop %v1634
        %v1714 = vmul.f32 1.0, %v1713
        %v1715 = vrcp.pop %v1637
        %v1716 = vmul.f32 1.0, %v1715
        %v1717 = vrcp.pop %v1640
        %v1718 = vmul.f32 1.0, %v1717
        %v1719 = vrcp.pop %v1643
        %v1720 = vmul.f32 1.0, %v1719
        %v1721 = vrcp.pop %v1646
        %v1722 = vmul.f32 1.0, %v1721
        %v1723 = vrcp.pop %v1649
        %v1724 = vmul.f32 1.0, %v1723
        %v1725 = vrcp.pop %v1652
        %v1726 = vmul.f32 1.0, %v1725
        %v1727 = vrcp.pop %v1655
        %v1728 = vmul.f32 1.0, %v1727
        %v1729 = vrcp.pop %v1658
        %v1730 = vmul.f32 1.0, %v1729
        %v1731 = vrcp.pop %v1661
        %v1732 = vmul.f32 1.0, %v1731
        %v1733 = vrcp.pop %v1664
        %v1734 = vmul.f32 1.0, %v1733
        %v1735 = vrcp.pop %v1667
        %v1736 = vmul.f32 1.0, %v1735
        %v1737 = vrcp.pop %v1670
        %v1738 = vmul.f32 1.0, %v1737
        %v1739 = vrcp.pop %v1673
        %v1740 = vmul.f32 1.0, %v1739
        %v1741 = vrcp.pop %v1676
        %v1742 = vmul.f32 1.0, %v1741
        %v1743 = vrcp.pop %v1679
        %v1744 = vmul.f32 1.0, %v1743
        %v1745 = vrcp.pop %v1682
        %v1746 = vmul.f32 1.0, %v1745
        %v1747 = vmul.f32 %v1524, %v1684
        %v1748 = vmul.f32 %v1526, %v1686
        %v1749 = vmul.f32 %v1528, %v1688
        %v1750 = vmul.f32 %v1530, %v1690
        %v1751 = vmul.f32 %v1532, %v1692
        %v1752 = vmul.f32 %v1534, %v1694
        %v1753 = vmul.f32 %v1536, %v1696
        %v1754 = vmul.f32 %v1538, %v1698
        %v1755 = vmul.f32 %v1540, %v1700
        %v1756 = vmul.f32 %v1542, %v1702
        %v1757 = vmul.f32 %v1544, %v1704
        %v1758 = vmul.f32 %v1546, %v1706
        %v1759 = vmul.f32 %v1548, %v1708
        %v1760 = vmul.f32 %v1550, %v1710
        %v1761 = vmul.f32 %v1552, %v1712
        %v1762 = vmul.f32 %v1554, %v1714
        %v1763 = vmul.f32 %v1556, %v1716
        %v1764 = vmul.f32 %v1558, %v1718
        %v1765 = vmul.f32 %v1560, %v1720
        %v1766 = vmul.f32 %v1562, %v1722
        %v1767 = vmul.f32 %v1564, %v1724
        %v1768 = vmul.f32 %v1566, %v1726
        %v1769 = vmul.f32 %v1568, %v1728
        %v1770 = vmul.f32 %v1570, %v1730
        %v1771 = vmul.f32 %v1572, %v1732
        %v1772 = vmul.f32 %v1574, %v1734
        %v1773 = vmul.f32 %v1576, %v1736
        %v1774 = vmul.f32 %v1578, %v1738
        %v1775 = vmul.f32 %v1580, %v1740
        %v1776 = vmul.f32 %v1582, %v1742
        %v1777 = vmul.f32 %v1584, %v1744
        %v1778 = vmul.f32 %v1586, %v1746
        %1779 = vxpose.xlu0.c.b16.start [1/8] %v1114, 128
        %1780 = vxpose.xlu0.c.b16.cont [2/8] 0, 128
        %1781 = vxpose.xlu0.c.b16.cont [3/8] 0, 128
        %1782 = vxpose.xlu0.c.b16.cont [4/8] 0, 128
        %1783 = vxpose.xlu0.c.b16.cont [5/8] 0, 128
        %1784 = vxpose.xlu0.c.b16.cont [6/8] 0, 128
        %1785 = vxpose.xlu0.c.b16.cont [7/8] 0, 128
        %1786 = vxpose.xlu0.c.b16.end [8/8] 0, 128
        %v1787 = vpop.trf.xlu0
        %v1788 = vpop.trf.xlu0
        %v1789 = vpop.trf.xlu0
        %v1790 = vpop.trf.xlu0
        %v1791 = vpop.trf.xlu0
        %v1792 = vpop.trf.xlu0
        %v1793 = vpop.trf.xlu0
        %v1794 = vpop.trf.xlu0
        %v1796 = vsel %vm1147, %v1787, 0
        %v1799 = vsel %vm1147, %v1788, 0
        %v1802 = vsel %vm1147, %v1789, 0
        %v1805 = vsel %vm1147, %v1790, 0
        %v1808 = vsel %vm1196, %v1112, 0
        %v1811 = vsel %vm1196, %v1113, 0
        %1813 = vmatprep.subr.bf16.mxu0 %v1811
        %1814 = vmatpush1.bf16.msra.mxu0 %v1808
        %1815 = vmatprep.subr.bf16.mxu0 0
        %1816 = vmatpush1.bf16.msra.mxu0 0
        %1817 = vmatprep.subr.bf16.mxu0 0
        %1818 = vmatpush1.bf16.msra.mxu0 0
        %1819 = vmatprep.subr.bf16.mxu0 0
        %1820 = vmatpush1.bf16.msra.mxu0 0
        %1821 = vmatprep.subr.bf16.mxu0 0
        %1822 = vmatpush1.bf16.msra.mxu0 0
        %1823 = vmatprep.subr.bf16.mxu0 0
        %1824 = vmatpush1.bf16.msra.mxu0 0
        %1825 = vmatprep.subr.bf16.mxu0 0
        %1826 = vmatpush1.bf16.msra.mxu0 0
        %1827 = vmatprep.subr.bf16.mxu0 0
        %1828 = vmatpush1.bf16.msra.mxu0 0
        %1829 = vmatprep.subr.bf16.mxu0 0
        %1830 = vmatpush1.bf16.msra.mxu0 0
        %1831 = vmatprep.subr.bf16.mxu0 0
        %1832 = vmatpush1.bf16.msra.mxu0 0
        %1833 = vmatprep.subr.bf16.mxu0 0
        %1834 = vmatpush1.bf16.msra.mxu0 0
        %1835 = vmatprep.subr.bf16.mxu0 0
        %1836 = vmatpush1.bf16.msra.mxu0 0
        %1837 = vmatprep.subr.bf16.mxu0 0
        %1838 = vmatpush1.bf16.msra.mxu0 0
        %1839 = vmatprep.subr.bf16.mxu0 0
        %1840 = vmatpush1.bf16.msra.mxu0 0
        %1841 = vmatprep.subr.bf16.mxu0 0
        %1842 = vmatpush1.bf16.msra.mxu0 0
        %1843 = vmatprep.subr.bf16.mxu0 0
        %1844 = vmatpush1.bf16.msra.mxu0 0
        %1845 = vmatprep.mubr.bf16.mxu0 0
        %1846 = vmatmul.mubr.bf16.gmra.mrb[0].mxu0 %v1796
        %v1847 = vpop.f32.mrb[0].mxu0
        %v1848 = vadd.f32 0.0, %v1847
        %v1849 = vpop.f32.mrb[0].mxu0
        %v1850 = vadd.f32 0.0, %v1849
        %v1851 = vpop.f32.mrb[0].mxu0
        %v1852 = vadd.f32 0.0, %v1851
        %v1853 = vpop.f32.mrb[0].mxu0
        %v1854 = vadd.f32 0.0, %v1853
        %1855 = vmatprep.mubr.bf16.mxu0 0
        %1856 = vmatmul.mubr.bf16.gmra.mrb[0].mxu0 %v1799
        %v1857 = vpop.f32.mrb[0].mxu0
        %v1858 = vadd.f32 0.0, %v1857
        %v1859 = vpop.f32.mrb[0].mxu0
        %v1860 = vadd.f32 0.0, %v1859
        %v1861 = vpop.f32.mrb[0].mxu0
        %v1862 = vadd.f32 0.0, %v1861
        %v1863 = vpop.f32.mrb[0].mxu0
        %v1864 = vadd.f32 0.0, %v1863
        %1865 = vmatprep.mubr.bf16.mxu0 0
        %1866 = vmatmul.mubr.bf16.gmra.mrb[0].mxu0 %v1802
        %v1867 = vpop.f32.mrb[0].mxu0
        %v1868 = vadd.f32 0.0, %v1867
        %v1869 = vpop.f32.mrb[0].mxu0
        %v1870 = vadd.f32 0.0, %v1869
        %v1871 = vpop.f32.mrb[0].mxu0
        %v1872 = vadd.f32 0.0, %v1871
        %v1873 = vpop.f32.mrb[0].mxu0
        %v1874 = vadd.f32 0.0, %v1873
        %1875 = vmatprep.mubr.bf16.mxu0 0
        %1876 = vmatmul.mubr.bf16.gmra.mrb[0].mxu0 %v1805
        %v1877 = vpop.f32.mrb[0].mxu0
        %v1878 = vadd.f32 0.0, %v1877
        %v1879 = vpop.f32.mrb[0].mxu0
        %v1880 = vadd.f32 0.0, %v1879
        %v1881 = vpop.f32.mrb[0].mxu0
        %v1882 = vadd.f32 0.0, %v1881
        %v1883 = vpop.f32.mrb[0].mxu0
        %v1884 = vadd.f32 0.0, %v1883
        %1885 = vdwg.mxu0
        %v1886 = vmul.f32 %v1848, %v1361
        %v1887 = vmul.f32 %v1850, %v1361
        %v1888 = vmul.f32 %v1852, %v1361
        %v1889 = vmul.f32 %v1854, %v1361
        %v1890 = vmul.f32 %v1858, %v1361
        %v1891 = vmul.f32 %v1860, %v1361
        %v1892 = vmul.f32 %v1862, %v1361
        %v1893 = vmul.f32 %v1864, %v1361
        %v1894 = vmul.f32 %v1868, %v1361
        %v1895 = vmul.f32 %v1870, %v1361
        %v1896 = vmul.f32 %v1872, %v1361
        %v1897 = vmul.f32 %v1874, %v1361
        %v1898 = vmul.f32 %v1878, %v1361
        %v1899 = vmul.f32 %v1880, %v1361
        %v1900 = vmul.f32 %v1882, %v1361
        %v1901 = vmul.f32 %v1884, %v1361
        %v1902 = vmax.f32 %v1886, %v1887
        %1903 = vmax.xlane.f32.xlu0 %v1902
        %v1904 = vpop.xlane.xlu0 %1903
        %v1905 = vmax.f32 %v1888, %v1889
        %1906 = vmax.xlane.f32.xlu0 %v1905
        %v1907 = vpop.xlane.xlu0 %1906
        %v1908 = vmax.f32 %v1890, %v1891
        %1909 = vmax.xlane.f32.xlu0 %v1908
        %v1910 = vpop.xlane.xlu0 %1909
        %v1911 = vmax.f32 %v1892, %v1893
        %1912 = vmax.xlane.f32.xlu0 %v1911
        %v1913 = vpop.xlane.xlu0 %1912
        %v1914 = vmax.f32 %v1894, %v1895
        %1915 = vmax.xlane.f32.xlu0 %v1914
        %v1916 = vpop.xlane.xlu0 %1915
        %v1917 = vmax.f32 %v1896, %v1897
        %1918 = vmax.xlane.f32.xlu0 %v1917
        %v1919 = vpop.xlane.xlu0 %1918
        %v1920 = vmax.f32 %v1898, %v1899
        %1921 = vmax.xlane.f32.xlu0 %v1920
        %v1922 = vpop.xlane.xlu0 %1921
        %v1923 = vmax.f32 %v1900, %v1901
        %1924 = vmax.xlane.f32.xlu0 %v1923
        %v1925 = vpop.xlane.xlu0 %1924
        %v1926 = vsub.f32 %v1886, %v1904
        %v1927 = vsub.f32 %v1887, %v1904
        %v1928 = vsub.f32 %v1888, %v1907
        %v1929 = vsub.f32 %v1889, %v1907
        %v1930 = vsub.f32 %v1890, %v1910
        %v1931 = vsub.f32 %v1891, %v1910
        %v1932 = vsub.f32 %v1892, %v1913
        %v1933 = vsub.f32 %v1893, %v1913
        %v1934 = vsub.f32 %v1894, %v1916
        %v1935 = vsub.f32 %v1895, %v1916
        %v1936 = vsub.f32 %v1896, %v1919
        %v1937 = vsub.f32 %v1897, %v1919
        %v1938 = vsub.f32 %v1898, %v1922
        %v1939 = vsub.f32 %v1899, %v1922
        %v1940 = vsub.f32 %v1900, %v1925
        %v1941 = vsub.f32 %v1901, %v1925
        %v1942 = vmul.f32 %v1926, 1.442695
        %v1943 = vpow.pop %v1942
        %v1944 = vmul.f32 %v1927, 1.442695
        %v1945 = vpow.pop %v1944
        %v1946 = vmul.f32 %v1928, 1.442695
        %v1947 = vpow.pop %v1946
        %v1948 = vmul.f32 %v1929, 1.442695
        %v1949 = vpow.pop %v1948
        %v1950 = vmul.f32 %v1930, 1.442695
        %v1951 = vpow.pop %v1950
        %v1952 = vmul.f32 %v1931, 1.442695
        %v1953 = vpow.pop %v1952
        %v1954 = vmul.f32 %v1932, 1.442695
        %v1955 = vpow.pop %v1954
        %v1956 = vmul.f32 %v1933, 1.442695
        %v1957 = vpow.pop %v1956
        %v1958 = vmul.f32 %v1934, 1.442695
        %v1959 = vpow.pop %v1958
        %v1960 = vmul.f32 %v1935, 1.442695
        %v1961 = vpow.pop %v1960
        %v1962 = vmul.f32 %v1936, 1.442695
        %v1963 = vpow.pop %v1962
        %v1964 = vmul.f32 %v1937, 1.442695
        %v1965 = vpow.pop %v1964
        %v1966 = vmul.f32 %v1938, 1.442695
        %v1967 = vpow.pop %v1966
        %v1968 = vmul.f32 %v1939, 1.442695
        %v1969 = vpow.pop %v1968
        %v1970 = vmul.f32 %v1940, 1.442695
        %v1971 = vpow.pop %v1970
        %v1972 = vmul.f32 %v1941, 1.442695
        %v1973 = vpow.pop %v1972
        %v1974 = vadd.f32 %v1943, %v1945
        %1975 = vadd.xlane.f32.xlu0 %v1974
        %v1976 = vpop.xlane.xlu0 %1975
        %v1977 = vadd.f32 %v1947, %v1949
        %1978 = vadd.xlane.f32.xlu0 %v1977
        %v1979 = vpop.xlane.xlu0 %1978
        %v1980 = vadd.f32 %v1951, %v1953
        %1981 = vadd.xlane.f32.xlu0 %v1980
        %v1982 = vpop.xlane.xlu0 %1981
        %v1983 = vadd.f32 %v1955, %v1957
        %1984 = vadd.xlane.f32.xlu0 %v1983
        %v1985 = vpop.xlane.xlu0 %1984
        %v1986 = vadd.f32 %v1959, %v1961
        %1987 = vadd.xlane.f32.xlu0 %v1986
        %v1988 = vpop.xlane.xlu0 %1987
        %v1989 = vadd.f32 %v1963, %v1965
        %1990 = vadd.xlane.f32.xlu0 %v1989
        %v1991 = vpop.xlane.xlu0 %1990
        %v1992 = vadd.f32 %v1967, %v1969
        %1993 = vadd.xlane.f32.xlu0 %v1992
        %v1994 = vpop.xlane.xlu0 %1993
        %v1995 = vadd.f32 %v1971, %v1973
        %1996 = vadd.xlane.f32.xlu0 %v1995
        %v1997 = vpop.xlane.xlu0 %1996
        %v1998 = vrcp.pop %v1976
        %v1999 = vmul.f32 1.0, %v1998
        %v2000 = vrcp.pop %v1979
        %v2001 = vmul.f32 1.0, %v2000
        %v2002 = vrcp.pop %v1982
        %v2003 = vmul.f32 1.0, %v2002
        %v2004 = vrcp.pop %v1985
        %v2005 = vmul.f32 1.0, %v2004
        %v2006 = vrcp.pop %v1988
        %v2007 = vmul.f32 1.0, %v2006
        %v2008 = vrcp.pop %v1991
        %v2009 = vmul.f32 1.0, %v2008
        %v2010 = vrcp.pop %v1994
        %v2011 = vmul.f32 1.0, %v2010
        %v2012 = vrcp.pop %v1997
        %v2013 = vmul.f32 1.0, %v2012
        %v2014 = vmul.f32 %v1943, %v1999
        %v2015 = vmul.f32 %v1945, %v1999
        %v2016 = vmul.f32 %v1947, %v2001
        %v2017 = vmul.f32 %v1949, %v2001
        %v2018 = vmul.f32 %v1951, %v2003
        %v2019 = vmul.f32 %v1953, %v2003
        %v2020 = vmul.f32 %v1955, %v2005
        %v2021 = vmul.f32 %v1957, %v2005
        %v2022 = vmul.f32 %v1959, %v2007
        %v2023 = vmul.f32 %v1961, %v2007
        %v2024 = vmul.f32 %v1963, %v2009
        %v2025 = vmul.f32 %v1965, %v2009
        %v2026 = vmul.f32 %v1967, %v2011
        %v2027 = vmul.f32 %v1969, %v2011
        %v2028 = vmul.f32 %v1971, %v2013
        %v2029 = vmul.f32 %v1973, %v2013
        %v2030 = vpack.c.bf16 %v1748, %v1747
        %v2031 = vpack.c.bf16 %v1750, %v1749
        %v2032 = vpack.c.bf16 %v1752, %v1751
        %v2033 = vpack.c.bf16 %v1754, %v1753
        %v2034 = vpack.c.bf16 %v1756, %v1755
        %v2035 = vpack.c.bf16 %v1758, %v1757
        %v2036 = vpack.c.bf16 %v1760, %v1759
        %v2037 = vpack.c.bf16 %v1762, %v1761
        %v2038 = vpack.c.bf16 %v1764, %v1763
        %v2039 = vpack.c.bf16 %v1766, %v1765
        %v2040 = vpack.c.bf16 %v1768, %v1767
        %v2041 = vpack.c.bf16 %v1770, %v1769
        %v2042 = vpack.c.bf16 %v1772, %v1771
        %v2043 = vpack.c.bf16 %v1774, %v1773
        %v2044 = vpack.c.bf16 %v1776, %v1775
        %v2045 = vpack.c.bf16 %v1778, %v1777
        %v2046 = vpack.c.bf16 %v2016, %v2014
        %v2047 = vpack.c.bf16 %v2017, %v2015
        %v2048 = vpack.c.bf16 %v2020, %v2018
        %v2049 = vpack.c.bf16 %v2021, %v2019
        %v2050 = vpack.c.bf16 %v2024, %v2022
        %v2051 = vpack.c.bf16 %v2025, %v2023
        %v2052 = vpack.c.bf16 %v2028, %v2026
        %v2053 = vpack.c.bf16 %v2029, %v2027
        %2054 = vmatprep.subr.bf16.mxu0 %v2047
        %2055 = vmatpush1.bf16.xpose.msra.mxu0 %v2046
        %2056 = vmatprep.subr.bf16.mxu0 %v2049
        %2057 = vmatpush1.bf16.xpose.msra.mxu0 %v2048
        %2058 = vmatprep.subr.bf16.mxu0 %v2051
        %2059 = vmatpush1.bf16.xpose.msra.mxu0 %v2050
        %2060 = vmatprep.subr.bf16.mxu0 %v2053
        %2061 = vmatpush1.bf16.xpose.msra.mxu0 %v2052
        %2062 = vmatprep.subr.bf16.mxu0 0
        %2063 = vmatpush1.bf16.xpose.msra.mxu0 0
        %2064 = vmatprep.subr.bf16.mxu0 0
        %2065 = vmatpush1.bf16.xpose.msra.mxu0 0
        %2066 = vmatprep.subr.bf16.mxu0 0
        %2067 = vmatpush1.bf16.xpose.msra.mxu0 0
        %2068 = vmatprep.subr.bf16.mxu0 0
        %2069 = vmatpush1.bf16.xpose.msra.mxu0 0
        %2070 = vmatprep.subr.bf16.mxu0 0
        %2071 = vmatpush1.bf16.xpose.msra.mxu0 0
        %2072 = vmatprep.subr.bf16.mxu0 0
        %2073 = vmatpush1.bf16.xpose.msra.mxu0 0
        %2074 = vmatprep.subr.bf16.mxu0 0
        %2075 = vmatpush1.bf16.xpose.msra.mxu0 0
        %2076 = vmatprep.subr.bf16.mxu0 0
        %2077 = vmatpush1.bf16.xpose.msra.mxu0 0
        %2078 = vmatprep.subr.bf16.mxu0 0
        %2079 = vmatpush1.bf16.xpose.msra.mxu0 0
        %2080 = vmatprep.subr.bf16.mxu0 0
        %2081 = vmatpush1.bf16.xpose.msra.mxu0 0
        %2082 = vmatprep.subr.bf16.mxu0 0
        %2083 = vmatpush1.bf16.xpose.msra.mxu0 0
        %2084 = vmatprep.subr.bf16.mxu0 0
        %2085 = vmatpush1.bf16.xpose.msra.mxu0 0
        %2086 = vmatprep.mubr.bf16.mxu0 %v1032
        %2087 = vmatmul.mubr.bf16.gmra.mrb[0].mxu0 %v1031
        %v2088 = vpop.f32.mrb[0].mxu0
        %v2089 = vadd.f32 0.0, %v2088
        %v2090 = vpop.f32.mrb[0].mxu0
        %v2091 = vpop.f32.mrb[0].mxu0
        %v2092 = vpop.f32.mrb[0].mxu0
        %2093 = vdwg.mxu0
        %v2094 = vpack.c.bf16 %v2089, %v2089
        %v2096 = vsel %vm1394, %v2094, 0
        %v2099 = vsel %vm1394, %v2030, 0
        %v2102 = vsel %vm1394, %v2031, 0
        %v2105 = vsel %vm1394, %v2032, 0
        %v2108 = vsel %vm1394, %v2033, 0
        %v2111 = vsel %vm1394, %v2034, 0
        %v2114 = vsel %vm1394, %v2035, 0
        %v2117 = vsel %vm1394, %v2036, 0
        %v2120 = vsel %vm1394, %v2037, 0
        %v2123 = vsel %vm1394, %v2038, 0
        %v2126 = vsel %vm1394, %v2039, 0
        %v2129 = vsel %vm1394, %v2040, 0
        %v2132 = vsel %vm1394, %v2041, 0
        %v2135 = vsel %vm1394, %v2042, 0
        %v2138 = vsel %vm1394, %v2043, 0
        %v2141 = vsel %vm1394, %v2044, 0
        %v2144 = vsel %vm1394, %v2045, 0
        %2146 = vmatprep.subr.bf16.mxu0 0
        %2147 = vmatpush1.bf16.xpose.msra.mxu0 %v2099
        %2148 = vmatprep.subr.bf16.mxu0 0
        %2149 = vmatpush1.bf16.xpose.msra.mxu0 %v2102
        %2150 = vmatprep.subr.bf16.mxu0 0
        %2151 = vmatpush1.bf16.xpose.msra.mxu0 %v2105
        %2152 = vmatprep.subr.bf16.mxu0 0
        %2153 = vmatpush1.bf16.xpose.msra.mxu0 %v2108
        %2154 = vmatprep.subr.bf16.mxu0 0
        %2155 = vmatpush1.bf16.xpose.msra.mxu0 %v2111
        %2156 = vmatprep.subr.bf16.mxu0 0
        %2157 = vmatpush1.bf16.xpose.msra.mxu0 %v2114
        %2158 = vmatprep.subr.bf16.mxu0 0
        %2159 = vmatpush1.bf16.xpose.msra.mxu0 %v2117
        %2160 = vmatprep.subr.bf16.mxu0 0
        %2161 = vmatpush1.bf16.xpose.msra.mxu0 %v2120
        %2162 = vmatprep.subr.bf16.mxu0 0
        %2163 = vmatpush1.bf16.xpose.msra.mxu0 %v2123
        %2164 = vmatprep.subr.bf16.mxu0 0
        %2165 = vmatpush1.bf16.xpose.msra.mxu0 %v2126
        %2166 = vmatprep.subr.bf16.mxu0 0
        %2167 = vmatpush1.bf16.xpose.msra.mxu0 %v2129
        %2168 = vmatprep.subr.bf16.mxu0 0
        %2169 = vmatpush1.bf16.xpose.msra.mxu0 %v2132
        %2170 = vmatprep.subr.bf16.mxu0 0
        %2171 = vmatpush1.bf16.xpose.msra.mxu0 %v2135
        %2172 = vmatprep.subr.bf16.mxu0 0
        %2173 = vmatpush1.bf16.xpose.msra.mxu0 %v2138
        %2174 = vmatprep.subr.bf16.mxu0 0
        %2175 = vmatpush1.bf16.xpose.msra.mxu0 %v2141
        %2176 = vmatprep.subr.bf16.mxu0 0
        %2177 = vmatpush1.bf16.xpose.msra.mxu0 %v2144
        %2178 = vmatprep.mubr.bf16.mxu0 0
        %2179 = vmatmul.mubr.bf16.gmra.mrb[0].mxu0 %v2096
        %v2180 = vpop.f32.mrb[0].mxu0
        %v2181 = vadd.f32 0.0, %v2180
        %v2182 = vpop.f32.mrb[0].mxu0
        %v2183 = vadd.f32 0.0, %v2182
        %v2184 = vpop.f32.mrb[0].mxu0
        %v2185 = vpop.f32.mrb[0].mxu0
        %2186 = vdwg.mxu0
        %s2187 = sld [smem:[#allocation2 + $0x1]]
        %v2190 = vrot.slane %v1033, 4
        %v2191 = vrot.slane %v1034, 4
        %v2194 = vsel %vm228, %v2190, 0.0
        %v2195 = vrot.slane %v2194, 4
        %v2196 = vadd.f32 %v2194, %v2195
        %v2197 = vrot.slane %v2196, 2
        %v2198 = vadd.f32 %v2196, %v2197
        %v2199 = vrot.slane %v2198, 1
        %v2200 = vadd.f32 %v2198, %v2199
        %v2201 = vsel %vm228, %v2191, 0.0
        %v2202 = vrot.slane %v2201, 4
        %v2203 = vadd.f32 %v2201, %v2202
        %v2204 = vrot.slane %v2203, 2
        %v2205 = vadd.f32 %v2203, %v2204
        %v2206 = vrot.slane %v2205, 1
        %v2207 = vadd.f32 %v2205, %v2206
        %v2208 = vrsqrt.pop %v2200
        %v2209 = vmul.f32 %v2200, %v2208
        %vm2210 = vcmp.eq.f32.partialorder %v2200, inf
        %v2211 = vsel %vm2210, %v2200, %v2209
        %vm2212 = vcmp.eq.f32.partialorder %v2200, 0.0
        %v2213 = vand.u32 %v2200, 2147483648
        %v2214 = vsel %vm2212, %v2213, %v2211
        %v2215 = vrsqrt.pop %v2207
        %v2216 = vmul.f32 %v2207, %v2215
        %vm2217 = vcmp.eq.f32.partialorder %v2207, inf
        %v2218 = vsel %vm2217, %v2207, %v2216
        %vm2219 = vcmp.eq.f32.partialorder %v2207, 0.0
        %v2220 = vand.u32 %v2207, 2147483648
        %v2221 = vsel %vm2219, %v2220, %v2218
        %v2222 = vmax.f32 %v2214, 1e-12
        %v2223 = vmax.f32 %v2221, 1e-12
        %v2224 = vrcp.pop %v2222
        %v2225 = vmul.f32 1.0, %v2224
        %v2226 = vrcp.pop %v2223
        %v2227 = vmul.f32 1.0, %v2226
        %v2230 = vrot.slane %v1035, 4
        %v2231 = vrot.slane %v1036, 4
        %v2234 = vsel %vm228, %v2230, 0.0
        %v2235 = vrot.slane %v2234, 4
        %v2236 = vadd.f32 %v2234, %v2235
        %v2237 = vrot.slane %v2236, 2
        %v2238 = vadd.f32 %v2236, %v2237
        %v2239 = vrot.slane %v2238, 1
        %v2240 = vadd.f32 %v2238, %v2239
        %v2241 = vsel %vm228, %v2231, 0.0
        %v2242 = vrot.slane %v2241, 4
        %v2243 = vadd.f32 %v2241, %v2242
        %v2244 = vrot.slane %v2243, 2
        %v2245 = vadd.f32 %v2243, %v2244
        %v2246 = vrot.slane %v2245, 1
        %v2247 = vadd.f32 %v2245, %v2246
        %v2248 = vrsqrt.pop %v2240
        %v2249 = vmul.f32 %v2240, %v2248
        %vm2250 = vcmp.eq.f32.partialorder %v2240, inf
        %v2251 = vsel %vm2250, %v2240, %v2249
        %vm2252 = vcmp.eq.f32.partialorder %v2240, 0.0
        %v2253 = vand.u32 %v2240, 2147483648
        %v2254 = vsel %vm2252, %v2253, %v2251
        %v2255 = vrsqrt.pop %v2247
        %v2256 = vmul.f32 %v2247, %v2255
        %vm2257 = vcmp.eq.f32.partialorder %v2247, inf
        %v2258 = vsel %vm2257, %v2247, %v2256
        %vm2259 = vcmp.eq.f32.partialorder %v2247, 0.0
        %v2260 = vand.u32 %v2247, 2147483648
        %v2261 = vsel %vm2259, %v2260, %v2258
        %v2262 = vmax.f32 %v2254, 1e-12
        %v2263 = vmax.f32 %v2261, 1e-12
        %v2264 = vrcp.pop %v2262
        %v2265 = vmul.f32 1.0, %v2264
        %v2266 = vrcp.pop %v2263
        %v2267 = vmul.f32 1.0, %v2266
        %v2268 = vmul.f32 %v894, %v2225
        %v2269 = vmul.f32 %v895, %v2227
        %v2270 = vpack.c.bf16 %v2268, %v2268
        %v2271 = vpack.c.bf16 %v2269, %v2269
        %v2272 = vmul.f32 %v896, %v2265
        %v2273 = vmul.f32 %v897, %v2267
        %v2274 = vpack.c.bf16 %v2272, %v2272
        %v2275 = vpack.c.bf16 %v2273, %v2273
        %v2278 = vrot.slane %v2270, 2
        %v2279 = vrot.slane %v2271, 2
        %2282 = vxpose.xlu0.c.b16.start [1/8] %v2278, 128
        %2283 = vxpose.xlu0.c.b16.cont [2/8] 0, 128
        %2284 = vxpose.xlu0.c.b16.cont [3/8] 0, 128
        %2285 = vxpose.xlu0.c.b16.cont [4/8] 0, 128
        %2286 = vxpose.xlu0.c.b16.cont [5/8] 0, 128
        %2287 = vxpose.xlu0.c.b16.cont [6/8] 0, 128
        %2288 = vxpose.xlu0.c.b16.cont [7/8] 0, 128
        %2289 = vxpose.xlu0.c.b16.end [8/8] 0, 128
        %v2290 = vpop.trf.xlu0
        %v2291 = vpop.trf.xlu0
        %v2292 = vpop.trf.xlu0
        %v2293 = vpop.trf.xlu0
        %v2294 = vpop.trf.xlu0
        %v2295 = vpop.trf.xlu0
        %v2296 = vpop.trf.xlu0
        %v2297 = vpop.trf.xlu0
        %2298 = vxpose.xlu0.c.b16.start [1/8] %v2279, 128
        %2299 = vxpose.xlu0.c.b16.cont [2/8] 0, 128
        %2300 = vxpose.xlu0.c.b16.cont [3/8] 0, 128
        %2301 = vxpose.xlu0.c.b16.cont [4/8] 0, 128
        %2302 = vxpose.xlu0.c.b16.cont [5/8] 0, 128
        %2303 = vxpose.xlu0.c.b16.cont [6/8] 0, 128
        %2304 = vxpose.xlu0.c.b16.cont [7/8] 0, 128
        %2305 = vxpose.xlu0.c.b16.end [8/8] 0, 128
        %v2306 = vpop.trf.xlu0
        %v2307 = vpop.trf.xlu0
        %v2308 = vpop.trf.xlu0
        %v2309 = vpop.trf.xlu0
        %v2310 = vpop.trf.xlu0
        %v2311 = vpop.trf.xlu0
        %v2312 = vpop.trf.xlu0
        %v2313 = vpop.trf.xlu0
        %v2315 = vrot.slane %v1114, 2
        %v2317 = vsel %vm1147, %v2290, 0
        %v2320 = vsel %vm1147, %v2291, 0
        %v2323 = vsel %vm1147, %v2292, 0
        %v2326 = vsel %vm1147, %v2293, 0
        %v2329 = vsel %vm1147, %v2294, 0
        %v2332 = vsel %vm1147, %v2295, 0
        %v2335 = vsel %vm1147, %v2296, 0
        %v2338 = vsel %vm1147, %v2297, 0
        %v2341 = vsel %vm1147, %v2306, 0
        %v2344 = vsel %vm1147, %v2307, 0
        %v2347 = vsel %vm1147, %v2308, 0
        %v2350 = vsel %vm1147, %v2309, 0
        %v2353 = vsel %vm1147, %v2310, 0
        %v2356 = vsel %vm1147, %v2311, 0
        %v2359 = vsel %vm1147, %v2312, 0
        %v2362 = vsel %vm1147, %v2313, 0
        %v2365 = vsel %vm1196, %v2315, 0
        %2367 = vmatprep.subr.bf16.mxu0 0
        %2368 = vmatpush1.bf16.msra.mxu0 %v2365
        %2369 = vmatprep.subr.bf16.mxu0 0
        %2370 = vmatpush1.bf16.msra.mxu0 0
        %2371 = vmatprep.subr.bf16.mxu0 0
        %2372 = vmatpush1.bf16.msra.mxu0 0
        %2373 = vmatprep.subr.bf16.mxu0 0
        %2374 = vmatpush1.bf16.msra.mxu0 0
        %2375 = vmatprep.subr.bf16.mxu0 0
        %2376 = vmatpush1.bf16.msra.mxu0 0
        %2377 = vmatprep.subr.bf16.mxu0 0
        %2378 = vmatpush1.bf16.msra.mxu0 0
        %2379 = vmatprep.subr.bf16.mxu0 0
        %2380 = vmatpush1.bf16.msra.mxu0 0
        %2381 = vmatprep.subr.bf16.mxu0 0
        %2382 = vmatpush1.bf16.msra.mxu0 0
        %2383 = vmatprep.subr.bf16.mxu0 0
        %2384 = vmatpush1.bf16.msra.mxu0 0
        %2385 = vmatprep.subr.bf16.mxu0 0
        %2386 = vmatpush1.bf16.msra.mxu0 0
        %2387 = vmatprep.subr.bf16.mxu0 0
        %2388 = vmatpush1.bf16.msra.mxu0 0
        %2389 = vmatprep.subr.bf16.mxu0 0
        %2390 = vmatpush1.bf16.msra.mxu0 0
        %2391 = vmatprep.subr.bf16.mxu0 0
        %2392 = vmatpush1.bf16.msra.mxu0 0
        %2393 = vmatprep.subr.bf16.mxu0 0
        %2394 = vmatpush1.bf16.msra.mxu0 0
        %2395 = vmatprep.subr.bf16.mxu0 0
        %2396 = vmatpush1.bf16.msra.mxu0 0
        %2397 = vmatprep.subr.bf16.mxu0 0
        %2398 = vmatpush1.bf16.msra.mxu0 0
        %2399 = vmatprep.mubr.bf16.mxu0 0
        %2400 = vmatmul.mubr.bf16.gmra.mrb[0].mxu0 %v2317
        %v2401 = vpop.f32.mrb[0].mxu0
        %v2402 = vadd.f32 0.0, %v2401
        %v2403 = vpop.f32.mrb[0].mxu0
        %v2404 = vpop.f32.mrb[0].mxu0
        %v2405 = vadd.f32 0.0, %v2404
        %v2406 = vpop.f32.mrb[0].mxu0
        %2407 = vmatprep.mubr.bf16.mxu0 0
        %2408 = vmatmul.mubr.bf16.gmra.mrb[0].mxu0 %v2320
        %v2409 = vpop.f32.mrb[0].mxu0
        %v2410 = vadd.f32 0.0, %v2409
        %v2411 = vpop.f32.mrb[0].mxu0
        %v2412 = vpop.f32.mrb[0].mxu0
        %v2413 = vadd.f32 0.0, %v2412
        %v2414 = vpop.f32.mrb[0].mxu0
        %2415 = vmatprep.mubr.bf16.mxu0 0
        %2416 = vmatmul.mubr.bf16.gmra.mrb[0].mxu0 %v2323
        %v2417 = vpop.f32.mrb[0].mxu0
        %v2418 = vadd.f32 0.0, %v2417
        %v2419 = vpop.f32.mrb[0].mxu0
        %v2420 = vpop.f32.mrb[0].mxu0
        %v2421 = vadd.f32 0.0, %v2420
        %v2422 = vpop.f32.mrb[0].mxu0
        %2423 = vmatprep.mubr.bf16.mxu0 0
        %2424 = vmatmul.mubr.bf16.gmra.mrb[0].mxu0 %v2326
        %v2425 = vpop.f32.mrb[0].mxu0
        %v2426 = vadd.f32 0.0, %v2425
        %v2427 = vpop.f32.mrb[0].mxu0
        %v2428 = vpop.f32.mrb[0].mxu0
        %v2429 = vadd.f32 0.0, %v2428
        %v2430 = vpop.f32.mrb[0].mxu0
        %2431 = vmatprep.mubr.bf16.mxu0 0
        %2432 = vmatmul.mubr.bf16.gmra.mrb[0].mxu0 %v2329
        %v2433 = vpop.f32.mrb[0].mxu0
        %v2434 = vadd.f32 0.0, %v2433
        %v2435 = vpop.f32.mrb[0].mxu0
        %v2436 = vpop.f32.mrb[0].mxu0
        %v2437 = vadd.f32 0.0, %v2436
        %v2438 = vpop.f32.mrb[0].mxu0
        %2439 = vmatprep.mubr.bf16.mxu0 0
        %2440 = vmatmul.mubr.bf16.gmra.mrb[0].mxu0 %v2332
        %v2441 = vpop.f32.mrb[0].mxu0
        %v2442 = vadd.f32 0.0, %v2441
        %v2443 = vpop.f32.mrb[0].mxu0
        %v2444 = vpop.f32.mrb[0].mxu0
        %v2445 = vadd.f32 0.0, %v2444
        %v2446 = vpop.f32.mrb[0].mxu0
        %2447 = vmatprep.mubr.bf16.mxu0 0
        %2448 = vmatmul.mubr.bf16.gmra.mrb[0].mxu0 %v2335
        %v2449 = vpop.f32.mrb[0].mxu0
        %v2450 = vadd.f32 0.0, %v2449
        %v2451 = vpop.f32.mrb[0].mxu0
        %v2452 = vpop.f32.mrb[0].mxu0
        %v2453 = vadd.f32 0.0, %v2452
        %v2454 = vpop.f32.mrb[0].mxu0
        %2455 = vmatprep.mubr.bf16.mxu0 0
        %2456 = vmatmul.mubr.bf16.gmra.mrb[0].mxu0 %v2338
        %v2457 = vpop.f32.mrb[0].mxu0
        %v2458 = vadd.f32 0.0, %v2457
        %v2459 = vpop.f32.mrb[0].mxu0
        %v2460 = vpop.f32.mrb[0].mxu0
        %v2461 = vadd.f32 0.0, %v2460
        %v2462 = vpop.f32.mrb[0].mxu0
        %2463 = vmatprep.mubr.bf16.mxu0 0
        %2464 = vmatmul.mubr.bf16.gmra.mrb[0].mxu0 %v2341
        %v2465 = vpop.f32.mrb[0].mxu0
        %v2466 = vadd.f32 0.0, %v2465
        %v2467 = vpop.f32.mrb[0].mxu0
        %v2468 = vpop.f32.mrb[0].mxu0
        %v2469 = vadd.f32 0.0, %v2468
        %v2470 = vpop.f32.mrb[0].mxu0
        %2471 = vmatprep.mubr.bf16.mxu0 0
        %2472 = vmatmul.mubr.bf16.gmra.mrb[0].mxu0 %v2344
        %v2473 = vpop.f32.mrb[0].mxu0
        %v2474 = vadd.f32 0.0, %v2473
        %v2475 = vpop.f32.mrb[0].mxu0
        %v2476 = vpop.f32.mrb[0].mxu0
        %v2477 = vadd.f32 0.0, %v2476
        %v2478 = vpop.f32.mrb[0].mxu0
        %2479 = vmatprep.mubr.bf16.mxu0 0
        %2480 = vmatmul.mubr.bf16.gmra.mrb[0].mxu0 %v2347
        %v2481 = vpop.f32.mrb[0].mxu0
        %v2482 = vadd.f32 0.0, %v2481
        %v2483 = vpop.f32.mrb[0].mxu0
        %v2484 = vpop.f32.mrb[0].mxu0
        %v2485 = vadd.f32 0.0, %v2484
        %v2486 = vpop.f32.mrb[0].mxu0
        %2487 = vmatprep.mubr.bf16.mxu0 0
        %2488 = vmatmul.mubr.bf16.gmra.mrb[0].mxu0 %v2350
        %v2489 = vpop.f32.mrb[0].mxu0
        %v2490 = vadd.f32 0.0, %v2489
        %v2491 = vpop.f32.mrb[0].mxu0
        %v2492 = vpop.f32.mrb[0].mxu0
        %v2493 = vadd.f32 0.0, %v2492
        %v2494 = vpop.f32.mrb[0].mxu0
        %2495 = vmatprep.mubr.bf16.mxu0 0
        %2496 = vmatmul.mubr.bf16.gmra.mrb[0].mxu0 %v2353
        %v2497 = vpop.f32.mrb[0].mxu0
        %v2498 = vadd.f32 0.0, %v2497
        %v2499 = vpop.f32.mrb[0].mxu0
        %v2500 = vpop.f32.mrb[0].mxu0
        %v2501 = vadd.f32 0.0, %v2500
        %v2502 = vpop.f32.mrb[0].mxu0
        %2503 = vmatprep.mubr.bf16.mxu0 0
        %2504 = vmatmul.mubr.bf16.gmra.mrb[0].mxu0 %v2356
        %v2505 = vpop.f32.mrb[0].mxu0
        %v2506 = vadd.f32 0.0, %v2505
        %v2507 = vpop.f32.mrb[0].mxu0
        %v2508 = vpop.f32.mrb[0].mxu0
        %v2509 = vadd.f32 0.0, %v2508
        %v2510 = vpop.f32.mrb[0].mxu0
        %2511 = vmatprep.mubr.bf16.mxu0 0
        %2512 = vmatmul.mubr.bf16.gmra.mrb[0].mxu0 %v2359
        %v2513 = vpop.f32.mrb[0].mxu0
        %v2514 = vadd.f32 0.0, %v2513
        %v2515 = vpop.f32.mrb[0].mxu0
        %v2516 = vpop.f32.mrb[0].mxu0
        %v2517 = vadd.f32 0.0, %v2516
        %v2518 = vpop.f32.mrb[0].mxu0
        %2519 = vmatprep.mubr.bf16.mxu0 0
        %2520 = vmatmul.mubr.bf16.gmra.mrb[0].mxu0 %v2362
        %v2521 = vpop.f32.mrb[0].mxu0
        %v2522 = vadd.f32 0.0, %v2521
        %v2523 = vpop.f32.mrb[0].mxu0
        %v2524 = vpop.f32.mrb[0].mxu0
        %v2525 = vadd.f32 0.0, %v2524
        %v2526 = vpop.f32.mrb[0].mxu0
        %2527 = vdwg.mxu0
        %v2528 = vstv %s2187
        %v2529 = vmul.f32 %v2402, %v2528
        %v2530 = vmul.f32 %v2405, %v2528
        %v2531 = vmul.f32 %v2410, %v2528
        %v2532 = vmul.f32 %v2413, %v2528
        %v2533 = vmul.f32 %v2418, %v2528
        %v2534 = vmul.f32 %v2421, %v2528
        %v2535 = vmul.f32 %v2426, %v2528
        %v2536 = vmul.f32 %v2429, %v2528
        %v2537 = vmul.f32 %v2434, %v2528
        %v2538 = vmul.f32 %v2437, %v2528
        %v2539 = vmul.f32 %v2442, %v2528
        %v2540 = vmul.f32 %v2445, %v2528
        %v2541 = vmul.f32 %v2450, %v2528
        %v2542 = vmul.f32 %v2453, %v2528
        %v2543 = vmul.f32 %v2458, %v2528
        %v2544 = vmul.f32 %v2461, %v2528
        %v2545 = vmul.f32 %v2466, %v2528
        %v2546 = vmul.f32 %v2469, %v2528
        %v2547 = vmul.f32 %v2474, %v2528
        %v2548 = vmul.f32 %v2477, %v2528
        %v2549 = vmul.f32 %v2482, %v2528
        %v2550 = vmul.f32 %v2485, %v2528
        %v2551 = vmul.f32 %v2490, %v2528
        %v2552 = vmul.f32 %v2493, %v2528
        %v2553 = vmul.f32 %v2498, %v2528
        %v2554 = vmul.f32 %v2501, %v2528
        %v2555 = vmul.f32 %v2506, %v2528
        %v2556 = vmul.f32 %v2509, %v2528
        %v2557 = vmul.f32 %v2514, %v2528
        %v2558 = vmul.f32 %v2517, %v2528
        %v2559 = vmul.f32 %v2522, %v2528
        %v2560 = vmul.f32 %v2525, %v2528
        %v2561 = vsel %vm1394, %v2529, -inf
        %2562 = vmax.xlane.f32.xlu0 %v2561
        %v2563 = vpop.xlane.xlu0 %2562
        %v2564 = vsel %vm1394, %v2530, -inf
        %2565 = vmax.xlane.f32.xlu0 %v2564
        %v2566 = vpop.xlane.xlu0 %2565
        %v2567 = vsel %vm1394, %v2531, -inf
        %2568 = vmax.xlane.f32.xlu0 %v2567
        %v2569 = vpop.xlane.xlu0 %2568
        %v2570 = vsel %vm1394, %v2532, -inf
        %2571 = vmax.xlane.f32.xlu0 %v2570
        %v2572 = vpop.xlane.xlu0 %2571
        %v2573 = vsel %vm1394, %v2533, -inf
        %2574 = vmax.xlane.f32.xlu0 %v2573
        %v2575 = vpop.xlane.xlu0 %2574
        %v2576 = vsel %vm1394, %v2534, -inf
        %2577 = vmax.xlane.f32.xlu0 %v2576
        %v2578 = vpop.xlane.xlu0 %2577
        %v2579 = vsel %vm1394, %v2535, -inf
        %2580 = vmax.xlane.f32.xlu0 %v2579
        %v2581 = vpop.xlane.xlu0 %2580
        %v2582 = vsel %vm1394, %v2536, -inf
        %2583 = vmax.xlane.f32.xlu0 %v2582
        %v2584 = vpop.xlane.xlu0 %2583
        %v2585 = vsel %vm1394, %v2537, -inf
        %2586 = vmax.xlane.f32.xlu0 %v2585
        %v2587 = vpop.xlane.xlu0 %2586
        %v2588 = vsel %vm1394, %v2538, -inf
        %2589 = vmax.xlane.f32.xlu0 %v2588
        %v2590 = vpop.xlane.xlu0 %2589
        %v2591 = vsel %vm1394, %v2539, -inf
        %2592 = vmax.xlane.f32.xlu0 %v2591
        %v2593 = vpop.xlane.xlu0 %2592
        %v2594 = vsel %vm1394, %v2540, -inf
        %2595 = vmax.xlane.f32.xlu0 %v2594
        %v2596 = vpop.xlane.xlu0 %2595
        %v2597 = vsel %vm1394, %v2541, -inf
        %2598 = vmax.xlane.f32.xlu0 %v2597
        %v2599 = vpop.xlane.xlu0 %2598
        %v2600 = vsel %vm1394, %v2542, -inf
        %2601 = vmax.xlane.f32.xlu0 %v2600
        %v2602 = vpop.xlane.xlu0 %2601
        %v2603 = vsel %vm1394, %v2543, -inf
        %2604 = vmax.xlane.f32.xlu0 %v2603
        %v2605 = vpop.xlane.xlu0 %2604
        %v2606 = vsel %vm1394, %v2544, -inf
        %2607 = vmax.xlane.f32.xlu0 %v2606
        %v2608 = vpop.xlane.xlu0 %2607
        %v2609 = vsel %vm1394, %v2545, -inf
        %2610 = vmax.xlane.f32.xlu0 %v2609
        %v2611 = vpop.xlane.xlu0 %2610
        %v2612 = vsel %vm1394, %v2546, -inf
        %2613 = vmax.xlane.f32.xlu0 %v2612
        %v2614 = vpop.xlane.xlu0 %2613
        %v2615 = vsel %vm1394, %v2547, -inf
        %2616 = vmax.xlane.f32.xlu0 %v2615
        %v2617 = vpop.xlane.xlu0 %2616
        %v2618 = vsel %vm1394, %v2548, -inf
        %2619 = vmax.xlane.f32.xlu0 %v2618
        %v2620 = vpop.xlane.xlu0 %2619
        %v2621 = vsel %vm1394, %v2549, -inf
        %2622 = vmax.xlane.f32.xlu0 %v2621
        %v2623 = vpop.xlane.xlu0 %2622
        %v2624 = vsel %vm1394, %v2550, -inf
        %2625 = vmax.xlane.f32.xlu0 %v2624
        %v2626 = vpop.xlane.xlu0 %2625
        %v2627 = vsel %vm1394, %v2551, -inf
        %2628 = vmax.xlane.f32.xlu0 %v2627
        %v2629 = vpop.xlane.xlu0 %2628
        %v2630 = vsel %vm1394, %v2552, -inf
        %2631 = vmax.xlane.f32.xlu0 %v2630
        %v2632 = vpop.xlane.xlu0 %2631
        %v2633 = vsel %vm1394, %v2553, -inf
        %2634 = vmax.xlane.f32.xlu0 %v2633
        %v2635 = vpop.xlane.xlu0 %2634
        %v2636 = vsel %vm1394, %v2554, -inf
        %2637 = vmax.xlane.f32.xlu0 %v2636
        %v2638 = vpop.xlane.xlu0 %2637
        %v2639 = vsel %vm1394, %v2555, -inf
        %2640 = vmax.xlane.f32.xlu0 %v2639
        %v2641 = vpop.xlane.xlu0 %2640
        %v2642 = vsel %vm1394, %v2556, -inf
        %2643 = vmax.xlane.f32.xlu0 %v2642
        %v2644 = vpop.xlane.xlu0 %2643
        %v2645 = vsel %vm1394, %v2557, -inf
        %2646 = vmax.xlane.f32.xlu0 %v2645
        %v2647 = vpop.xlane.xlu0 %2646
        %v2648 = vsel %vm1394, %v2558, -inf
        %2649 = vmax.xlane.f32.xlu0 %v2648
        %v2650 = vpop.xlane.xlu0 %2649
        %v2651 = vsel %vm1394, %v2559, -inf
        %2652 = vmax.xlane.f32.xlu0 %v2651
        %v2653 = vpop.xlane.xlu0 %2652
        %v2654 = vsel %vm1394, %v2560, -inf
        %2655 = vmax.xlane.f32.xlu0 %v2654
        %v2656 = vpop.xlane.xlu0 %2655
        %v2657 = vsub.f32 %v2529, %v2563
        %v2658 = vsub.f32 %v2530, %v2566
        %v2659 = vsub.f32 %v2531, %v2569
        %v2660 = vsub.f32 %v2532, %v2572
        %v2661 = vsub.f32 %v2533, %v2575
        %v2662 = vsub.f32 %v2534, %v2578
        %v2663 = vsub.f32 %v2535, %v2581
        %v2664 = vsub.f32 %v2536, %v2584
        %v2665 = vsub.f32 %v2537, %v2587
        %v2666 = vsub.f32 %v2538, %v2590
        %v2667 = vsub.f32 %v2539, %v2593
        %v2668 = vsub.f32 %v2540, %v2596
        %v2669 = vsub.f32 %v2541, %v2599
        %v2670 = vsub.f32 %v2542, %v2602
        %v2671 = vsub.f32 %v2543, %v2605
        %v2672 = vsub.f32 %v2544, %v2608
        %v2673 = vsub.f32 %v2545, %v2611
        %v2674 = vsub.f32 %v2546, %v2614
        %v2675 = vsub.f32 %v2547, %v2617
        %v2676 = vsub.f32 %v2548, %v2620
        %v2677 = vsub.f32 %v2549, %v2623
        %v2678 = vsub.f32 %v2550, %v2626
        %v2679 = vsub.f32 %v2551, %v2629
        %v2680 = vsub.f32 %v2552, %v2632
        %v2681 = vsub.f32 %v2553, %v2635
        %v2682 = vsub.f32 %v2554, %v2638
        %v2683 = vsub.f32 %v2555, %v2641
        %v2684 = vsub.f32 %v2556, %v2644
        %v2685 = vsub.f32 %v2557, %v2647
        %v2686 = vsub.f32 %v2558, %v2650
        %v2687 = vsub.f32 %v2559, %v2653
        %v2688 = vsub.f32 %v2560, %v2656
        %v2689 = vmul.f32 %v2657, 1.442695
        %v2690 = vpow.pop %v2689
        %v2691 = vmul.f32 %v2658, 1.442695
        %v2692 = vpow.pop %v2691
        %v2693 = vmul.f32 %v2659, 1.442695
        %v2694 = vpow.pop %v2693
        %v2695 = vmul.f32 %v2660, 1.442695
        %v2696 = vpow.pop %v2695
        %v2697 = vmul.f32 %v2661, 1.442695
        %v2698 = vpow.pop %v2697
        %v2699 = vmul.f32 %v2662, 1.442695
        %v2700 = vpow.pop %v2699
        %v2701 = vmul.f32 %v2663, 1.442695
        %v2702 = vpow.pop %v2701
        %v2703 = vmul.f32 %v2664, 1.442695
        %v2704 = vpow.pop %v2703
        %v2705 = vmul.f32 %v2665, 1.442695
        %v2706 = vpow.pop %v2705
        %v2707 = vmul.f32 %v2666, 1.442695
        %v2708 = vpow.pop %v2707
        %v2709 = vmul.f32 %v2667, 1.442695
        %v2710 = vpow.pop %v2709
        %v2711 = vmul.f32 %v2668, 1.442695
        %v2712 = vpow.pop %v2711
        %v2713 = vmul.f32 %v2669, 1.442695
        %v2714 = vpow.pop %v2713
        %v2715 = vmul.f32 %v2670, 1.442695
        %v2716 = vpow.pop %v2715
        %v2717 = vmul.f32 %v2671, 1.442695
        %v2718 = vpow.pop %v2717
        %v2719 = vmul.f32 %v2672, 1.442695
        %v2720 = vpow.pop %v2719
        %v2721 = vmul.f32 %v2673, 1.442695
        %v2722 = vpow.pop %v2721
        %v2723 = vmul.f32 %v2674, 1.442695
        %v2724 = vpow.pop %v2723
        %v2725 = vmul.f32 %v2675, 1.442695
        %v2726 = vpow.pop %v2725
        %v2727 = vmul.f32 %v2676, 1.442695
        %v2728 = vpow.pop %v2727
        %v2729 = vmul.f32 %v2677, 1.442695
        %v2730 = vpow.pop %v2729
        %v2731 = vmul.f32 %v2678, 1.442695
        %v2732 = vpow.pop %v2731
        %v2733 = vmul.f32 %v2679, 1.442695
        %v2734 = vpow.pop %v2733
        %v2735 = vmul.f32 %v2680, 1.442695
        %v2736 = vpow.pop %v2735
        %v2737 = vmul.f32 %v2681, 1.442695
        %v2738 = vpow.pop %v2737
        %v2739 = vmul.f32 %v2682, 1.442695
        %v2740 = vpow.pop %v2739
        %v2741 = vmul.f32 %v2683, 1.442695
        %v2742 = vpow.pop %v2741
        %v2743 = vmul.f32 %v2684, 1.442695
        %v2744 = vpow.pop %v2743
        %v2745 = vmul.f32 %v2685, 1.442695
        %v2746 = vpow.pop %v2745
        %v2747 = vmul.f32 %v2686, 1.442695
        %v2748 = vpow.pop %v2747
        %v2749 = vmul.f32 %v2687, 1.442695
        %v2750 = vpow.pop %v2749
        %v2751 = vmul.f32 %v2688, 1.442695
        %v2752 = vpow.pop %v2751
        %v2753 = vsel %vm1394, %v2690, 0.0
        %2754 = vadd.xlane.f32.xlu0 %v2753
        %v2755 = vpop.xlane.xlu0 %2754
        %v2756 = vsel %vm1394, %v2692, 0.0
        %2757 = vadd.xlane.f32.xlu0 %v2756
        %v2758 = vpop.xlane.xlu0 %2757
        %v2759 = vsel %vm1394, %v2694, 0.0
        %2760 = vadd.xlane.f32.xlu0 %v2759
        %v2761 = vpop.xlane.xlu0 %2760
        %v2762 = vsel %vm1394, %v2696, 0.0
        %2763 = vadd.xlane.f32.xlu0 %v2762
        %v2764 = vpop.xlane.xlu0 %2763
        %v2765 = vsel %vm1394, %v2698, 0.0
        %2766 = vadd.xlane.f32.xlu0 %v2765
        %v2767 = vpop.xlane.xlu0 %2766
        %v2768 = vsel %vm1394, %v2700, 0.0
        %2769 = vadd.xlane.f32.xlu0 %v2768
        %v2770 = vpop.xlane.xlu0 %2769
        %v2771 = vsel %vm1394, %v2702, 0.0
        %2772 = vadd.xlane.f32.xlu0 %v2771
        %v2773 = vpop.xlane.xlu0 %2772
        %v2774 = vsel %vm1394, %v2704, 0.0
        %2775 = vadd.xlane.f32.xlu0 %v2774
        %v2776 = vpop.xlane.xlu0 %2775
        %v2777 = vsel %vm1394, %v2706, 0.0
        %2778 = vadd.xlane.f32.xlu0 %v2777
        %v2779 = vpop.xlane.xlu0 %2778
        %v2780 = vsel %vm1394, %v2708, 0.0
        %2781 = vadd.xlane.f32.xlu0 %v2780
        %v2782 = vpop.xlane.xlu0 %2781
        %v2783 = vsel %vm1394, %v2710, 0.0
        %2784 = vadd.xlane.f32.xlu0 %v2783
        %v2785 = vpop.xlane.xlu0 %2784
        %v2786 = vsel %vm1394, %v2712, 0.0
        %2787 = vadd.xlane.f32.xlu0 %v2786
        %v2788 = vpop.xlane.xlu0 %2787
        %v2789 = vsel %vm1394, %v2714, 0.0
        %2790 = vadd.xlane.f32.xlu0 %v2789
        %v2791 = vpop.xlane.xlu0 %2790
        %v2792 = vsel %vm1394, %v2716, 0.0
        %2793 = vadd.xlane.f32.xlu0 %v2792
        %v2794 = vpop.xlane.xlu0 %2793
        %v2795 = vsel %vm1394, %v2718, 0.0
        %2796 = vadd.xlane.f32.xlu0 %v2795
        %v2797 = vpop.xlane.xlu0 %2796
        %v2798 = vsel %vm1394, %v2720, 0.0
        %2799 = vadd.xlane.f32.xlu0 %v2798
        %v2800 = vpop.xlane.xlu0 %2799
        %v2801 = vsel %vm1394, %v2722, 0.0
        %2802 = vadd.xlane.f32.xlu0 %v2801
        %v2803 = vpop.xlane.xlu0 %2802
        %v2804 = vsel %vm1394, %v2724, 0.0
        %2805 = vadd.xlane.f32.xlu0 %v2804
        %v2806 = vpop.xlane.xlu0 %2805
        %v2807 = vsel %vm1394, %v2726, 0.0
        %2808 = vadd.xlane.f32.xlu0 %v2807
        %v2809 = vpop.xlane.xlu0 %2808
        %v2810 = vsel %vm1394, %v2728, 0.0
        %2811 = vadd.xlane.f32.xlu0 %v2810
        %v2812 = vpop.xlane.xlu0 %2811
        %v2813 = vsel %vm1394, %v2730, 0.0
        %2814 = vadd.xlane.f32.xlu0 %v2813
        %v2815 = vpop.xlane.xlu0 %2814
        %v2816 = vsel %vm1394, %v2732, 0.0
        %2817 = vadd.xlane.f32.xlu0 %v2816
        %v2818 = vpop.xlane.xlu0 %2817
        %v2819 = vsel %vm1394, %v2734, 0.0
        %2820 = vadd.xlane.f32.xlu0 %v2819
        %v2821 = vpop.xlane.xlu0 %2820
        %v2822 = vsel %vm1394, %v2736, 0.0
        %2823 = vadd.xlane.f32.xlu0 %v2822
        %v2824 = vpop.xlane.xlu0 %2823
        %v2825 = vsel %vm1394, %v2738, 0.0
        %2826 = vadd.xlane.f32.xlu0 %v2825
        %v2827 = vpop.xlane.xlu0 %2826
        %v2828 = vsel %vm1394, %v2740, 0.0
        %2829 = vadd.xlane.f32.xlu0 %v2828
        %v2830 = vpop.xlane.xlu0 %2829
        %v2831 = vsel %vm1394, %v2742, 0.0
        %2832 = vadd.xlane.f32.xlu0 %v2831
        %v2833 = vpop.xlane.xlu0 %2832
        %v2834 = vsel %vm1394, %v2744, 0.0
        %2835 = vadd.xlane.f32.xlu0 %v2834
        %v2836 = vpop.xlane.xlu0 %2835
        %v2837 = vsel %vm1394, %v2746, 0.0
        %2838 = vadd.xlane.f32.xlu0 %v2837
        %v2839 = vpop.xlane.xlu0 %2838
        %v2840 = vsel %vm1394, %v2748, 0.0
        %2841 = vadd.xlane.f32.xlu0 %v2840
        %v2842 = vpop.xlane.xlu0 %2841
        %v2843 = vsel %vm1394, %v2750, 0.0
        %2844 = vadd.xlane.f32.xlu0 %v2843
        %v2845 = vpop.xlane.xlu0 %2844
        %v2846 = vsel %vm1394, %v2752, 0.0
        %2847 = vadd.xlane.f32.xlu0 %v2846
        %v2848 = vpop.xlane.xlu0 %2847
        %v2849 = vrcp.pop %v2755
        %v2850 = vmul.f32 1.0, %v2849
        %v2851 = vrcp.pop %v2758
        %v2852 = vmul.f32 1.0, %v2851
        %v2853 = vrcp.pop %v2761
        %v2854 = vmul.f32 1.0, %v2853
        %v2855 = vrcp.pop %v2764
        %v2856 = vmul.f32 1.0, %v2855
        %v2857 = vrcp.pop %v2767
        %v2858 = vmul.f32 1.0, %v2857
        %v2859 = vrcp.pop %v2770
        %v2860 = vmul.f32 1.0, %v2859
        %v2861 = vrcp.pop %v2773
        %v2862 = vmul.f32 1.0, %v2861
        %v2863 = vrcp.pop %v2776
        %v2864 = vmul.f32 1.0, %v2863
        %v2865 = vrcp.pop %v2779
        %v2866 = vmul.f32 1.0, %v2865
        %v2867 = vrcp.pop %v2782
        %v2868 = vmul.f32 1.0, %v2867
        %v2869 = vrcp.pop %v2785
        %v2870 = vmul.f32 1.0, %v2869
        %v2871 = vrcp.pop %v2788
        %v2872 = vmul.f32 1.0, %v2871
        %v2873 = vrcp.pop %v2791
        %v2874 = vmul.f32 1.0, %v2873
        %v2875 = vrcp.pop %v2794
        %v2876 = vmul.f32 1.0, %v2875
        %v2877 = vrcp.pop %v2797
        %v2878 = vmul.f32 1.0, %v2877
        %v2879 = vrcp.pop %v2800
        %v2880 = vmul.f32 1.0, %v2879
        %v2881 = vrcp.pop %v2803
        %v2882 = vmul.f32 1.0, %v2881
        %v2883 = vrcp.pop %v2806
        %v2884 = vmul.f32 1.0, %v2883
        %v2885 = vrcp.pop %v2809
        %v2886 = vmul.f32 1.0, %v2885
        %v2887 = vrcp.pop %v2812
        %v2888 = vmul.f32 1.0, %v2887
        %v2889 = vrcp.pop %v2815
        %v2890 = vmul.f32 1.0, %v2889
        %v2891 = vrcp.pop %v2818
        %v2892 = vmul.f32 1.0, %v2891
        %v2893 = vrcp.pop %v2821
        %v2894 = vmul.f32 1.0, %v2893
        %v2895 = vrcp.pop %v2824
        %v2896 = vmul.f32 1.0, %v2895
        %v2897 = vrcp.pop %v2827
        %v2898 = vmul.f32 1.0, %v2897
        %v2899 = vrcp.pop %v2830
        %v2900 = vmul.f32 1.0, %v2899
        %v2901 = vrcp.pop %v2833
        %v2902 = vmul.f32 1.0, %v2901
        %v2903 = vrcp.pop %v2836
        %v2904 = vmul.f32 1.0, %v2903
        %v2905 = vrcp.pop %v2839
        %v2906 = vmul.f32 1.0, %v2905
        %v2907 = vrcp.pop %v2842
        %v2908 = vmul.f32 1.0, %v2907
        %v2909 = vrcp.pop %v2845
        %v2910 = vmul.f32 1.0, %v2909
        %v2911 = vrcp.pop %v2848
        %v2912 = vmul.f32 1.0, %v2911
        %v2913 = vmul.f32 %v2690, %v2850
        %v2914 = vmul.f32 %v2692, %v2852
        %v2915 = vmul.f32 %v2694, %v2854
        %v2916 = vmul.f32 %v2696, %v2856
        %v2917 = vmul.f32 %v2698, %v2858
        %v2918 = vmul.f32 %v2700, %v2860
        %v2919 = vmul.f32 %v2702, %v2862
        %v2920 = vmul.f32 %v2704, %v2864
        %v2921 = vmul.f32 %v2706, %v2866
        %v2922 = vmul.f32 %v2708, %v2868
        %v2923 = vmul.f32 %v2710, %v2870
        %v2924 = vmul.f32 %v2712, %v2872
        %v2925 = vmul.f32 %v2714, %v2874
        %v2926 = vmul.f32 %v2716, %v2876
        %v2927 = vmul.f32 %v2718, %v2878
        %v2928 = vmul.f32 %v2720, %v2880
        %v2929 = vmul.f32 %v2722, %v2882
        %v2930 = vmul.f32 %v2724, %v2884
        %v2931 = vmul.f32 %v2726, %v2886
        %v2932 = vmul.f32 %v2728, %v2888
        %v2933 = vmul.f32 %v2730, %v2890
        %v2934 = vmul.f32 %v2732, %v2892
        %v2935 = vmul.f32 %v2734, %v2894
        %v2936 = vmul.f32 %v2736, %v2896
        %v2937 = vmul.f32 %v2738, %v2898
        %v2938 = vmul.f32 %v2740, %v2900
        %v2939 = vmul.f32 %v2742, %v2902
        %v2940 = vmul.f32 %v2744, %v2904
        %v2941 = vmul.f32 %v2746, %v2906
        %v2942 = vmul.f32 %v2748, %v2908
        %v2943 = vmul.f32 %v2750, %v2910
        %v2944 = vmul.f32 %v2752, %v2912
        %2946 = vxpose.xlu0.c.b16.start [1/8] %v2315, 128
        %2947 = vxpose.xlu0.c.b16.cont [2/8] 0, 128
        %2948 = vxpose.xlu0.c.b16.cont [3/8] 0, 128
        %2949 = vxpose.xlu0.c.b16.cont [4/8] 0, 128
        %2950 = vxpose.xlu0.c.b16.cont [5/8] 0, 128
        %2951 = vxpose.xlu0.c.b16.cont [6/8] 0, 128
        %2952 = vxpose.xlu0.c.b16.cont [7/8] 0, 128
        %2953 = vxpose.xlu0.c.b16.end [8/8] 0, 128
        %v2954 = vpop.trf.xlu0
        %v2955 = vpop.trf.xlu0
        %v2956 = vpop.trf.xlu0
        %v2957 = vpop.trf.xlu0
        %v2958 = vpop.trf.xlu0
        %v2959 = vpop.trf.xlu0
        %v2960 = vpop.trf.xlu0
        %v2961 = vpop.trf.xlu0
        %v2964 = vrot.slane %v2274, 2
        %v2965 = vrot.slane %v2275, 2
        %v2967 = vsel %vm1147, %v2954, 0
        %v2970 = vsel %vm1147, %v2955, 0
        %v2973 = vsel %vm1147, %v2956, 0
        %v2976 = vsel %vm1147, %v2957, 0
        %v2979 = vsel %vm1196, %v2964, 0
        %v2982 = vsel %vm1196, %v2965, 0
        %2984 = vmatprep.subr.bf16.mxu0 %v2982
        %2985 = vmatpush1.bf16.msra.mxu0 %v2979
        %2986 = vmatprep.subr.bf16.mxu0 0
        %2987 = vmatpush1.bf16.msra.mxu0 0
        %2988 = vmatprep.subr.bf16.mxu0 0
        %2989 = vmatpush1.bf16.msra.mxu0 0
        %2990 = vmatprep.subr.bf16.mxu0 0
        %2991 = vmatpush1.bf16.msra.mxu0 0
        %2992 = vmatprep.subr.bf16.mxu0 0
        %2993 = vmatpush1.bf16.msra.mxu0 0
        %2994 = vmatprep.subr.bf16.mxu0 0
        %2995 = vmatpush1.bf16.msra.mxu0 0
        %2996 = vmatprep.subr.bf16.mxu0 0
        %2997 = vmatpush1.bf16.msra.mxu0 0
        %2998 = vmatprep.subr.bf16.mxu0 0
        %2999 = vmatpush1.bf16.msra.mxu0 0
        %3000 = vmatprep.subr.bf16.mxu0 0
        %3001 = vmatpush1.bf16.msra.mxu0 0
        %3002 = vmatprep.subr.bf16.mxu0 0
        %3003 = vmatpush1.bf16.msra.mxu0 0
        %3004 = vmatprep.subr.bf16.mxu0 0
        %3005 = vmatpush1.bf16.msra.mxu0 0
        %3006 = vmatprep.subr.bf16.mxu0 0
        %3007 = vmatpush1.bf16.msra.mxu0 0
        %3008 = vmatprep.subr.bf16.mxu0 0
        %3009 = vmatpush1.bf16.msra.mxu0 0
        %3010 = vmatprep.subr.bf16.mxu0 0
        %3011 = vmatpush1.bf16.msra.mxu0 0
        %3012 = vmatprep.subr.bf16.mxu0 0
        %3013 = vmatpush1.bf16.msra.mxu0 0
        %3014 = vmatprep.subr.bf16.mxu0 0
        %3015 = vmatpush1.bf16.msra.mxu0 0
        %3016 = vmatprep.mubr.bf16.mxu0 0
        %3017 = vmatmul.mubr.bf16.gmra.mrb[0].mxu0 %v2967
        %v3018 = vpop.f32.mrb[0].mxu0
        %v3019 = vadd.f32 0.0, %v3018
        %v3020 = vpop.f32.mrb[0].mxu0
        %v3021 = vadd.f32 0.0, %v3020
        %v3022 = vpop.f32.mrb[0].mxu0
        %v3023 = vadd.f32 0.0, %v3022
        %v3024 = vpop.f32.mrb[0].mxu0
        %v3025 = vadd.f32 0.0, %v3024
        %3026 = vmatprep.mubr.bf16.mxu0 0
        %3027 = vmatmul.mubr.bf16.gmra.mrb[0].mxu0 %v2970
        %v3028 = vpop.f32.mrb[0].mxu0
        %v3029 = vadd.f32 0.0, %v3028
        %v3030 = vpop.f32.mrb[0].mxu0
        %v3031 = vadd.f32 0.0, %v3030
        %v3032 = vpop.f32.mrb[0].mxu0
        %v3033 = vadd.f32 0.0, %v3032
        %v3034 = vpop.f32.mrb[0].mxu0
        %v3035 = vadd.f32 0.0, %v3034
        %3036 = vmatprep.mubr.bf16.mxu0 0
        %3037 = vmatmul.mubr.bf16.gmra.mrb[0].mxu0 %v2973
        %v3038 = vpop.f32.mrb[0].mxu0
        %v3039 = vadd.f32 0.0, %v3038
        %v3040 = vpop.f32.mrb[0].mxu0
        %v3041 = vadd.f32 0.0, %v3040
        %v3042 = vpop.f32.mrb[0].mxu0
        %v3043 = vadd.f32 0.0, %v3042
        %v3044 = vpop.f32.mrb[0].mxu0
        %v3045 = vadd.f32 0.0, %v3044
        %3046 = vmatprep.mubr.bf16.mxu0 0
        %3047 = vmatmul.mubr.bf16.gmra.mrb[0].mxu0 %v2976
        %v3048 = vpop.f32.mrb[0].mxu0
        %v3049 = vadd.f32 0.0, %v3048
        %v3050 = vpop.f32.mrb[0].mxu0
        %v3051 = vadd.f32 0.0, %v3050
        %v3052 = vpop.f32.mrb[0].mxu0
        %v3053 = vadd.f32 0.0, %v3052
        %v3054 = vpop.f32.mrb[0].mxu0
        %v3055 = vadd.f32 0.0, %v3054
        %3056 = vdwg.mxu0
        %v3057 = vmul.f32 %v3019, %v2528
        %v3058 = vmul.f32 %v3021, %v2528
        %v3059 = vmul.f32 %v3023, %v2528
        %v3060 = vmul.f32 %v3025, %v2528
        %v3061 = vmul.f32 %v3029, %v2528
        %v3062 = vmul.f32 %v3031, %v2528
        %v3063 = vmul.f32 %v3033, %v2528
        %v3064 = vmul.f32 %v3035, %v2528
        %v3065 = vmul.f32 %v3039, %v2528
        %v3066 = vmul.f32 %v3041, %v2528
        %v3067 = vmul.f32 %v3043, %v2528
        %v3068 = vmul.f32 %v3045, %v2528
        %v3069 = vmul.f32 %v3049, %v2528
        %v3070 = vmul.f32 %v3051, %v2528
        %v3071 = vmul.f32 %v3053, %v2528
        %v3072 = vmul.f32 %v3055, %v2528
        %v3073 = vmax.f32 %v3057, %v3058
        %3074 = vmax.xlane.f32.xlu0 %v3073
        %v3075 = vpop.xlane.xlu0 %3074
        %v3076 = vmax.f32 %v3059, %v3060
        %3077 = vmax.xlane.f32.xlu0 %v3076
        %v3078 = vpop.xlane.xlu0 %3077
        %v3079 = vmax.f32 %v3061, %v3062
        %3080 = vmax.xlane.f32.xlu0 %v3079
        %v3081 = vpop.xlane.xlu0 %3080
        %v3082 = vmax.f32 %v3063, %v3064
        %3083 = vmax.xlane.f32.xlu0 %v3082
        %v3084 = vpop.xlane.xlu0 %3083
        %v3085 = vmax.f32 %v3065, %v3066
        %3086 = vmax.xlane.f32.xlu0 %v3085
        %v3087 = vpop.xlane.xlu0 %3086
        %v3088 = vmax.f32 %v3067, %v3068
        %3089 = vmax.xlane.f32.xlu0 %v3088
        %v3090 = vpop.xlane.xlu0 %3089
        %v3091 = vmax.f32 %v3069, %v3070
        %3092 = vmax.xlane.f32.xlu0 %v3091
        %v3093 = vpop.xlane.xlu0 %3092
        %v3094 = vmax.f32 %v3071, %v3072
        %3095 = vmax.xlane.f32.xlu0 %v3094
        %v3096 = vpop.xlane.xlu0 %3095
        %v3097 = vsub.f32 %v3057, %v3075
        %v3098 = vsub.f32 %v3058, %v3075
        %v3099 = vsub.f32 %v3059, %v3078
        %v3100 = vsub.f32 %v3060, %v3078
        %v3101 = vsub.f32 %v3061, %v3081
        %v3102 = vsub.f32 %v3062, %v3081
        %v3103 = vsub.f32 %v3063, %v3084
        %v3104 = vsub.f32 %v3064, %v3084
        %v3105 = vsub.f32 %v3065, %v3087
        %v3106 = vsub.f32 %v3066, %v3087
        %v3107 = vsub.f32 %v3067, %v3090
        %v3108 = vsub.f32 %v3068, %v3090
        %v3109 = vsub.f32 %v3069, %v3093
        %v3110 = vsub.f32 %v3070, %v3093
        %v3111 = vsub.f32 %v3071, %v3096
        %v3112 = vsub.f32 %v3072, %v3096
        %v3113 = vmul.f32 %v3097, 1.442695
        %v3114 = vpow.pop %v3113
        %v3115 = vmul.f32 %v3098, 1.442695
        %v3116 = vpow.pop %v3115
        %v3117 = vmul.f32 %v3099, 1.442695
        %v3118 = vpow.pop %v3117
        %v3119 = vmul.f32 %v3100, 1.442695
        %v3120 = vpow.pop %v3119
        %v3121 = vmul.f32 %v3101, 1.442695
        %v3122 = vpow.pop %v3121
        %v3123 = vmul.f32 %v3102, 1.442695
        %v3124 = vpow.pop %v3123
        %v3125 = vmul.f32 %v3103, 1.442695
        %v3126 = vpow.pop %v3125
        %v3127 = vmul.f32 %v3104, 1.442695
        %v3128 = vpow.pop %v3127
        %v3129 = vmul.f32 %v3105, 1.442695
        %v3130 = vpow.pop %v3129
        %v3131 = vmul.f32 %v3106, 1.442695
        %v3132 = vpow.pop %v3131
        %v3133 = vmul.f32 %v3107, 1.442695
        %v3134 = vpow.pop %v3133
        %v3135 = vmul.f32 %v3108, 1.442695
        %v3136 = vpow.pop %v3135
        %v3137 = vmul.f32 %v3109, 1.442695
        %v3138 = vpow.pop %v3137
        %v3139 = vmul.f32 %v3110, 1.442695
        %v3140 = vpow.pop %v3139
        %v3141 = vmul.f32 %v3111, 1.442695
        %v3142 = vpow.pop %v3141
        %v3143 = vmul.f32 %v3112, 1.442695
        %v3144 = vpow.pop %v3143
        %v3145 = vadd.f32 %v3114, %v3116
        %3146 = vadd.xlane.f32.xlu0 %v3145
        %v3147 = vpop.xlane.xlu0 %3146
        %v3148 = vadd.f32 %v3118, %v3120
        %3149 = vadd.xlane.f32.xlu0 %v3148
        %v3150 = vpop.xlane.xlu0 %3149
        %v3151 = vadd.f32 %v3122, %v3124
        %3152 = vadd.xlane.f32.xlu0 %v3151
        %v3153 = vpop.xlane.xlu0 %3152
        %v3154 = vadd.f32 %v3126, %v3128
        %3155 = vadd.xlane.f32.xlu0 %v3154
        %v3156 = vpop.xlane.xlu0 %3155
        %v3157 = vadd.f32 %v3130, %v3132
        %3158 = vadd.xlane.f32.xlu0 %v3157
        %v3159 = vpop.xlane.xlu0 %3158
        %v3160 = vadd.f32 %v3134, %v3136
        %3161 = vadd.xlane.f32.xlu0 %v3160
        %v3162 = vpop.xlane.xlu0 %3161
        %v3163 = vadd.f32 %v3138, %v3140
        %3164 = vadd.xlane.f32.xlu0 %v3163
        %v3165 = vpop.xlane.xlu0 %3164
        %v3166 = vadd.f32 %v3142, %v3144
        %3167 = vadd.xlane.f32.xlu0 %v3166
        %v3168 = vpop.xlane.xlu0 %3167
        %v3169 = vrcp.pop %v3147
        %v3170 = vmul.f32 1.0, %v3169
        %v3171 = vrcp.pop %v3150
        %v3172 = vmul.f32 1.0, %v3171
        %v3173 = vrcp.pop %v3153
        %v3174 = vmul.f32 1.0, %v3173
        %v3175 = vrcp.pop %v3156
        %v3176 = vmul.f32 1.0, %v3175
        %v3177 = vrcp.pop %v3159
        %v3178 = vmul.f32 1.0, %v3177
        %v3179 = vrcp.pop %v3162
        %v3180 = vmul.f32 1.0, %v3179
        %v3181 = vrcp.pop %v3165
        %v3182 = vmul.f32 1.0, %v3181
        %v3183 = vrcp.pop %v3168
        %v3184 = vmul.f32 1.0, %v3183
        %v3185 = vmul.f32 %v3114, %v3170
        %v3186 = vmul.f32 %v3116, %v3170
        %v3187 = vmul.f32 %v3118, %v3172
        %v3188 = vmul.f32 %v3120, %v3172
        %v3189 = vmul.f32 %v3122, %v3174
        %v3190 = vmul.f32 %v3124, %v3174
        %v3191 = vmul.f32 %v3126, %v3176
        %v3192 = vmul.f32 %v3128, %v3176
        %v3193 = vmul.f32 %v3130, %v3178
        %v3194 = vmul.f32 %v3132, %v3178
        %v3195 = vmul.f32 %v3134, %v3180
        %v3196 = vmul.f32 %v3136, %v3180
        %v3197 = vmul.f32 %v3138, %v3182
        %v3198 = vmul.f32 %v3140, %v3182
        %v3199 = vmul.f32 %v3142, %v3184
        %v3200 = vmul.f32 %v3144, %v3184
        %v3201 = vpack.c.bf16 %v2914, %v2913
        %v3202 = vpack.c.bf16 %v2916, %v2915
        %v3203 = vpack.c.bf16 %v2918, %v2917
        %v3204 = vpack.c.bf16 %v2920, %v2919
        %v3205 = vpack.c.bf16 %v2922, %v2921
        %v3206 = vpack.c.bf16 %v2924, %v2923
        %v3207 = vpack.c.bf16 %v2926, %v2925
        %v3208 = vpack.c.bf16 %v2928, %v2927
        %v3209 = vpack.c.bf16 %v2930, %v2929
        %v3210 = vpack.c.bf16 %v2932, %v2931
        %v3211 = vpack.c.bf16 %v2934, %v2933
        %v3212 = vpack.c.bf16 %v2936, %v2935
        %v3213 = vpack.c.bf16 %v2938, %v2937
        %v3214 = vpack.c.bf16 %v2940, %v2939
        %v3215 = vpack.c.bf16 %v2942, %v2941
        %v3216 = vpack.c.bf16 %v2944, %v2943
        %v3217 = vpack.c.bf16 %v3187, %v3185
        %v3218 = vpack.c.bf16 %v3188, %v3186
        %v3219 = vpack.c.bf16 %v3191, %v3189
        %v3220 = vpack.c.bf16 %v3192, %v3190
        %v3221 = vpack.c.bf16 %v3195, %v3193
        %v3222 = vpack.c.bf16 %v3196, %v3194
        %v3223 = vpack.c.bf16 %v3199, %v3197
        %v3224 = vpack.c.bf16 %v3200, %v3198
        %v3227 = vrot.slane %v1031, 2
        %v3228 = vrot.slane %v1032, 2
        %3231 = vmatprep.subr.bf16.mxu0 %v3218
        %3232 = vmatpush1.bf16.xpose.msra.mxu0 %v3217
        %3233 = vmatprep.subr.bf16.mxu0 %v3220
        %3234 = vmatpush1.bf16.xpose.msra.mxu0 %v3219
        %3235 = vmatprep.subr.bf16.mxu0 %v3222
        %3236 = vmatpush1.bf16.xpose.msra.mxu0 %v3221
        %3237 = vmatprep.subr.bf16.mxu0 %v3224
        %3238 = vmatpush1.bf16.xpose.msra.mxu0 %v3223
        %3239 = vmatprep.subr.bf16.mxu0 0
        %3240 = vmatpush1.bf16.xpose.msra.mxu0 0
        %3241 = vmatprep.subr.bf16.mxu0 0
        %3242 = vmatpush1.bf16.xpose.msra.mxu0 0
        %3243 = vmatprep.subr.bf16.mxu0 0
        %3244 = vmatpush1.bf16.xpose.msra.mxu0 0
        %3245 = vmatprep.subr.bf16.mxu0 0
        %3246 = vmatpush1.bf16.xpose.msra.mxu0 0
        %3247 = vmatprep.subr.bf16.mxu0 0
        %3248 = vmatpush1.bf16.xpose.msra.mxu0 0
        %3249 = vmatprep.subr.bf16.mxu0 0
        %3250 = vmatpush1.bf16.xpose.msra.mxu0 0
        %3251 = vmatprep.subr.bf16.mxu0 0
        %3252 = vmatpush1.bf16.xpose.msra.mxu0 0
        %3253 = vmatprep.subr.bf16.mxu0 0
        %3254 = vmatpush1.bf16.xpose.msra.mxu0 0
        %3255 = vmatprep.subr.bf16.mxu0 0
        %3256 = vmatpush1.bf16.xpose.msra.mxu0 0
        %3257 = vmatprep.subr.bf16.mxu0 0
        %3258 = vmatpush1.bf16.xpose.msra.mxu0 0
        %3259 = vmatprep.subr.bf16.mxu0 0
        %3260 = vmatpush1.bf16.xpose.msra.mxu0 0
        %3261 = vmatprep.subr.bf16.mxu0 0
        %3262 = vmatpush1.bf16.xpose.msra.mxu0 0
        %3263 = vmatprep.mubr.bf16.mxu0 %v3228
        %3264 = vmatmul.mubr.bf16.gmra.mrb[0].mxu0 %v3227
        %v3265 = vpop.f32.mrb[0].mxu0
        %v3266 = vadd.f32 0.0, %v3265
        %v3267 = vpop.f32.mrb[0].mxu0
        %v3268 = vpop.f32.mrb[0].mxu0
        %v3269 = vpop.f32.mrb[0].mxu0
        %3270 = vdwg.mxu0
        %v3271 = vpack.c.bf16 %v3266, %v3266
        %v3273 = vsel %vm1394, %v3271, 0
        %v3276 = vsel %vm1394, %v3201, 0
        %v3279 = vsel %vm1394, %v3202, 0
        %v3282 = vsel %vm1394, %v3203, 0
        %v3285 = vsel %vm1394, %v3204, 0
        %v3288 = vsel %vm1394, %v3205, 0
        %v3291 = vsel %vm1394, %v3206, 0
        %v3294 = vsel %vm1394, %v3207, 0
        %v3297 = vsel %vm1394, %v3208, 0
        %v3300 = vsel %vm1394, %v3209, 0
        %v3303 = vsel %vm1394, %v3210, 0
        %v3306 = vsel %vm1394, %v3211, 0
        %v3309 = vsel %vm1394, %v3212, 0
        %v3312 = vsel %vm1394, %v3213, 0
        %v3315 = vsel %vm1394, %v3214, 0
        %v3318 = vsel %vm1394, %v3215, 0
        %v3321 = vsel %vm1394, %v3216, 0
        %3323 = vmatprep.subr.bf16.mxu0 0
        %3324 = vmatpush1.bf16.xpose.msra.mxu0 %v3276
        %3325 = vmatprep.subr.bf16.mxu0 0
        %3326 = vmatpush1.bf16.xpose.msra.mxu0 %v3279
        %3327 = vmatprep.subr.bf16.mxu0 0
        %3328 = vmatpush1.bf16.xpose.msra.mxu0 %v3282
        %3329 = vmatprep.subr.bf16.mxu0 0
        %3330 = vmatpush1.bf16.xpose.msra.mxu0 %v3285
        %3331 = vmatprep.subr.bf16.mxu0 0
        %3332 = vmatpush1.bf16.xpose.msra.mxu0 %v3288
        %3333 = vmatprep.subr.bf16.mxu0 0
        %3334 = vmatpush1.bf16.xpose.msra.mxu0 %v3291
        %3335 = vmatprep.subr.bf16.mxu0 0
        %3336 = vmatpush1.bf16.xpose.msra.mxu0 %v3294
        %3337 = vmatprep.subr.bf16.mxu0 0
        %3338 = vmatpush1.bf16.xpose.msra.mxu0 %v3297
        %3339 = vmatprep.subr.bf16.mxu0 0
        %3340 = vmatpush1.bf16.xpose.msra.mxu0 %v3300
        %3341 = vmatprep.subr.bf16.mxu0 0
        %3342 = vmatpush1.bf16.xpose.msra.mxu0 %v3303
        %3343 = vmatprep.subr.bf16.mxu0 0
        %3344 = vmatpush1.bf16.xpose.msra.mxu0 %v3306
        %3345 = vmatprep.subr.bf16.mxu0 0
        %3346 = vmatpush1.bf16.xpose.msra.mxu0 %v3309
        %3347 = vmatprep.subr.bf16.mxu0 0
        %3348 = vmatpush1.bf16.xpose.msra.mxu0 %v3312
        %3349 = vmatprep.subr.bf16.mxu0 0
        %3350 = vmatpush1.bf16.xpose.msra.mxu0 %v3315
        %3351 = vmatprep.subr.bf16.mxu0 0
        %3352 = vmatpush1.bf16.xpose.msra.mxu0 %v3318
        %3353 = vmatprep.subr.bf16.mxu0 0
        %3354 = vmatpush1.bf16.xpose.msra.mxu0 %v3321
        %3355 = vmatprep.mubr.bf16.mxu0 0
        %3356 = vmatmul.mubr.bf16.gmra.mrb[0].mxu0 %v3273
        %v3357 = vpop.f32.mrb[0].mxu0
        %v3358 = vadd.f32 0.0, %v3357
        %v3359 = vpop.f32.mrb[0].mxu0
        %v3360 = vadd.f32 0.0, %v3359
        %v3361 = vpop.f32.mrb[0].mxu0
        %v3362 = vpop.f32.mrb[0].mxu0
        %3363 = vdwg.mxu0
        %v3366 = vrot.slane %v3358, 4
        %v3367 = vrot.slane %v3360, 4
        %v3370 = vsel %vm228, %v2181, %v3366
        %v3371 = vsel %vm228, %v2183, %v3367
        %v3372 = vadd.f32 %v3370, %v3371
        %3373 = vadd.xlane.f32.xlu0 %v3372
        %v3374 = vpop.xlane.xlu0 %3373
        %v3375 = vrcp.pop 256.0
        %v3376 = vmul.f32 %v3374, %v3375
        %v3377 = vsub.f32 %v3370, %v3376
        %v3378 = vsub.f32 %v3371, %v3376
        %v3379 = vmul.f32 %v3377, %v3377
        %v3380 = vmul.f32 %v3378, %v3378
        %v3381 = vadd.f32 %v3379, %v3380
        %3382 = vadd.xlane.f32.xlu0 %v3381
        %v3383 = vpop.xlane.xlu0 %3382
        %v3384 = vmul.f32 %v3383, 0.003921569
        %v3385 = vadd.f32 %v3384, 0.0001
        %v3386 = vmul.f32 %v3385, 4.0
        %v3387 = vrcp.pop %v3386
        %v3388 = vmul.f32 1.0, %v3387
        %v3389 = vmul.f32 %v3379, %v3388
        %v3390 = vmul.f32 %v3380, %v3388
        %v3391 = vadd.f32 %v3389, 0.5
        %v3392 = vadd.f32 %v3390, 0.5
        %v3393 = vmul.f32 %v3391, 0.5
        %v3394 = vmul.f32 %v3392, 0.5
        %v3395 = vtanh.pop %v3393
        %v3396 = vtanh.pop %v3394
        %v3397 = vmul.f32 %v3395, 0.5
        %v3398 = vmul.f32 %v3396, 0.5
        %v3399 = vadd.f32 %v3397, 0.5
        %v3400 = vadd.f32 %v3398, 0.5
        %v3401 = vmul.f32 %v3370, %v3399
        %v3402 = vmul.f32 %v3371, %v3400
        %3403 = vst [vmem:[%s204] sm:$0xff] %v3401
        %3404 = vst [vmem:[%s204 + $0x8] sm:$0xff] %v3402
        %s3405 = sand.u32 %s116, 1
        %s3406 = scalar_lea.sflag [#allocation3], %s3405
        %s3407 = sand.u32 %s116, 1
        %s3408 = smul.addr %s3407, 16
        %s3409 = scalar_lea.vmem [#allocation5], %s3408
        // Predicated region
        $region41: #{tpu_custom_call.1} parent=35 // pred_check
          %p3410 = pneg %p126
        $region42: #{tpu_custom_call.1} parent=35 // pred_check_branch
          %3412 = sbr.rel (%p3410) target = $region44
        $region43: #{tpu_custom_call.1} parent=35 // pred_region
          %s3414 = ssub.s32 256, 256
          %3415 = vsyncadd %s3406, %s3414
          %s3416 = smul.addr %s19, 2
          %s3417 = smul.addr %s3416, 128
          %s3418 = scalar_lea.hbm %s4, %s3417
          %s3420 = sshll.u32 %s3409, 4
          %s3421 = int_to_ptr.vmem [resolvable:$true] %s3420
          %3423 = dma.vmem_to_hbm [thread:$0]  %s3421, 256, %s3418, %s3406
        $region44: #{tpu_custom_call.1} parent=35 // pred_fallthru
          _
      $region36: #{tpu_custom_call.1} parent=5 // pred_fallthru
        _
      %p3424 = scmp.le.s32.totalorder 2, %s14
      // Predicated region
      $region45: #{tpu_custom_call.1} parent=5 // pred_check
        %p3425 = pneg %p3424
      $region46: #{tpu_custom_call.1} parent=5 // pred_check_branch
        %3427 = sbr.rel (%p3425) target = $region48
      $region47: #{tpu_custom_call.1} parent=5 // pred_region
        %s3428 = ssub.s32 %s14, 2
        // Predicated region
        $region49: #{tpu_custom_call.1} parent=47 // pred_check
          %p3429 = pneg %p132
        $region50: #{tpu_custom_call.1} parent=47 // pred_check_branch
          %3431 = sbr.rel (%p3429) target = $region52
        $region51: #{tpu_custom_call.1} parent=47 // pred_region
          %s3432 = sand.u32 %s117, 1
          %s3433 = scalar_lea.sflag [#allocation3], %s3432
          %s3434 = sand.u32 %s117, 1
          %s3435 = smul.addr %s3434, 16
          %s3436 = scalar_lea.vmem [#allocation5], %s3435
          %3437 = dma.done %s3433, 256
        $region52: #{tpu_custom_call.1} parent=47 // pred_fallthru
          _
      $region48: #{tpu_custom_call.1} parent=5 // pred_fallthru
        _
    $region6: #{tpu_custom_call.1} parent=1 // loop_footer
      %s18 = sadd.s32 1, %s14
    $region7: #{tpu_custom_call.1} parent=1 // loop_footer_branch
      %13 = sbr.rel target = $region3
    $region8: #{tpu_custom_call.1} parent=1 // loop_exit
      _
    %3438 = vsyncpa [#allocation3], 1
    %s3439 = scalar_lea.sflag [#allocation3], 1
    %3440 = vsyncpa %s3439, 1
    %3441 = vsyncpa [#allocation4], 1
    %s3442 = scalar_lea.sflag [#allocation4], 1
    %3443 = vsyncpa %s3442, 1

</llo_original>
